<compile_context>
chip_gen: v6e
topology: v6e:2x2x1
jax: 0.10.0
libtpu: 0.0.40
codegen_flags: <defaults>
</compile_context>

<pallas_src>
import functools
import math

import jax
import jax.numpy as jnp
from jax.experimental import pallas as pl
from jax.experimental.pallas import tpu as pltpu  # noqa: F401  (kept for compiler_params use at scale)


CFG = dict(
    vocab_size=100,
    max_pos=64,
    type_vocab=2,
    hidden=32,
    num_heads=4,
    num_layers=2,
    intermediate=64,
    num_labels=5,        # len(target_cols)
    one_sided_window=2,  # Longformer attention_window // 2
)


# ----------------------------- in-kernel helpers -----------------------------

def _mm(a, b):
    """MXU matmul: bf16 inputs, f32 accumulation."""
    return jnp.dot(a.astype(jnp.bfloat16), b.astype(jnp.bfloat16),
                   preferred_element_type=jnp.float32)


def _bmm(a, b, eq):
    """Batched MXU matmul (batch over B), bf16 inputs, f32 accumulation."""
    return jnp.einsum(eq, a.astype(jnp.bfloat16), b.astype(jnp.bfloat16),
                      preferred_element_type=jnp.float32)


def _layernorm(x, g, b):
    x = x.astype(jnp.float32)
    mu = jnp.mean(x, axis=-1, keepdims=True)
    var = jnp.mean(jnp.square(x - mu), axis=-1, keepdims=True)
    return (x - mu) * jax.lax.rsqrt(var + 1e-5) * g + b


def _gelu(x):
    # tanh-approximation GELU (HF Longformer uses erf-based gelu; difference ~1e-3).
    c = 0.7978845608028654  # sqrt(2/pi)
    return 0.5 * x * (1.0 + jnp.tanh(c * (x + 0.044715 * x * x * x)))


# ------------------------------- fused kernel --------------------------------

def _forward_kernel(emb_ref, am_ref, gq_ref, gk_ref,
                    emb_g_ref, emb_b_ref,
                    wqkv_ref, bqkv_ref, wo_ref, bo_ref,
                    ln1_g_ref, ln1_b_ref,
                    w1_ref, b1_ref, w2_ref, b2_ref,
                    ln2_g_ref, ln2_b_ref,
                    pool_w_ref, pool_b_ref, fc_w_ref, fc_b_ref,
                    logits_ref, *, B, S, H, nH, L, window):
    Dh = H // nH
    scale = 1.0 / math.sqrt(Dh)

    # ---- sliding-window + global attention mask as an additive bias, built in-kernel ----
    # TODO(synk): at real Longformer lengths (S~4096) tile the query axis (grid axis marked
    # "parallel" for v7x's 2 TensorCores) and only materialize (tq, window+global) score
    # blocks instead of a dense (B,S,S) score matrix.
    ii = jax.lax.broadcasted_iota(jnp.int32, (1, S, S), 1)
    jj = jax.lax.broadcasted_iota(jnp.int32, (1, S, S), 2)
    local = (jnp.abs(ii - jj) <= window).astype(jnp.float32)             # (1, S, S)
    allowed = jnp.maximum(jnp.maximum(local, gq_ref[...]), gk_ref[...])  # OR  -> (B, S, S)
    allowed = allowed * am_ref[...]                                      # AND non-padded keys
    bias = (allowed - 1.0) * 1e9                                         # 0 where allowed, -1e9 else

    # ---- embeddings layernorm ----
    x2 = _layernorm(emb_ref[...], emb_g_ref[...], emb_b_ref[...])        # (B*S, H)

    # ---- encoder layers (static unroll, weights read once each) ----
    for l in range(L):
        # fused QKV projection: one (H, 3H) matmul (wider lane fill) instead of 3 launches.
        qkv = _mm(x2, wqkv_ref[l]) + bqkv_ref[l]                         # (B*S, 3H)
        wo_l = wo_ref[l]                                                 # (H, H)

        attn = jnp.zeros((B * S, H), jnp.float32)
        # TODO(synk): Longformer uses separate query/key/value_global projections for global
        # tokens; shared projections are used here for both local and global attention.
        for h in range(nH):
            lo = h * Dh
            qh = qkv[:, lo:lo + Dh].reshape(B, S, Dh) * scale
            kh = qkv[:, H + lo:H + lo + Dh].reshape(B, S, Dh)
            vh = qkv[:, 2 * H + lo:2 * H + lo + Dh].reshape(B, S, Dh)

            s = _bmm(qh, kh, 'bqd,bkd->bqk') + bias                      # (B, S, S)
            m = jnp.max(s, axis=-1, keepdims=True)
            p = jnp.exp(s - m)
            denom = jnp.sum(p, axis=-1, keepdims=True)
            p = p * pl.reciprocal(denom, approx=True)                    # EUP reciprocal
            ah = _bmm(p, vh, 'bqk,bkd->bqd')                             # (B, S, Dh)

            # fold the per-head output projection straight into the residual accumulator
            # (avoids an explicit head transpose / concat inside the kernel).
            attn = attn + _mm(ah.reshape(B * S, Dh), wo_l[lo:lo + Dh, :])
        attn = attn + bo_ref[l]

        x2 = _layernorm(x2 + attn, ln1_g_ref[l], ln1_b_ref[l])
        ff = _gelu(_mm(x2, w1_ref[l]) + b1_ref[l])
        ff = _mm(ff, w2_ref[l]) + b2_ref[l]
        x2 = _layernorm(x2 + ff, ln2_g_ref[l], ln2_b_ref[l])

    # ---- pooler (tanh(W h[:,0] + b)) fused with the classification head ----
    cls = jnp.concatenate([x2[b * S:b * S + 1, :] for b in range(B)], axis=0)  # (B, H)
    pooled = jnp.tanh(_mm(cls, pool_w_ref[...]) + pool_b_ref[...])
    # dropout branch in the PyTorch forward is dead code (output overwritten by fc(features)).
    logits = _mm(pooled, fc_w_ref[...]) + fc_b_ref[...]
    logits_ref[...] = logits.astype(logits_ref.dtype)


# ------------------------------ params & wrapper ------------------------------

def init_params(key, cfg):
    H, I, L = cfg["hidden"], cfg["intermediate"], cfg["num_layers"]

    def nrm(k, shape, scale=0.02):
        return (scale * jax.random.normal(k, shape)).astype(jnp.float32)

    keys = iter(jax.random.split(key, 16))
    return {
        "word_emb": nrm(next(keys), (cfg["vocab_size"], H)),
        "pos_emb": nrm(next(keys), (cfg["max_pos"], H)),
        "type_emb": nrm(next(keys), (cfg["type_vocab"], H)),
        "emb_ln_g": jnp.ones((1, H), jnp.float32),
        "emb_ln_b": jnp.zeros((1, H), jnp.float32),
        # per-layer weights stacked on a leading axis; q|k|v fused into one (H, 3H) weight
        "wqkv": nrm(next(keys), (L, H, 3 * H)),
        "bqkv": jnp.zeros((L, 1, 3 * H), jnp.float32),
        "wo": nrm(next(keys), (L, H, H)),
        "bo": jnp.zeros((L, 1, H), jnp.float32),
        "ln1_g": jnp.ones((L, 1, H), jnp.float32),
        "ln1_b": jnp.zeros((L, 1, H), jnp.float32),
        "w1": nrm(next(keys), (L, H, I)),
        "b1": jnp.zeros((L, 1, I), jnp.float32),
        "w2": nrm(next(keys), (L, I, H)),
        "b2": jnp.zeros((L, 1, H), jnp.float32),
        "ln2_g": jnp.ones((L, 1, H), jnp.float32),
        "ln2_b": jnp.zeros((L, 1, H), jnp.float32),
        "pooler_w": nrm(next(keys), (H, H)),
        "pooler_b": jnp.zeros((1, H), jnp.float32),
        "fc_w": nrm(next(keys), (H, cfg["num_labels"])),
        "fc_b": jnp.zeros((1, cfg["num_labels"]), jnp.float32),
    }


def longformer_articles_labeling_forward(params, input_ids, attention_mask=None,
                                         global_attention_mask=None, token_type_ids=None,
                                         position_ids=None, cfg=CFG):
    B, S = input_ids.shape
    H = cfg["hidden"]
    if attention_mask is None:
        attention_mask = jnp.ones_like(input_ids)
    if global_attention_mask is None:
        # matches: zeros_like(input_ids); global_attention_mask[:, 0] = 1
        global_attention_mask = jnp.zeros_like(input_ids).at[:, 0].set(1)
    if token_type_ids is None:
        token_type_ids = jnp.zeros_like(input_ids)
    if position_ids is None:
        position_ids = jnp.broadcast_to(jnp.arange(S, dtype=jnp.int32), (B, S))

    # Embedding gather is glue; everything downstream runs inside one fused Pallas kernel.
    emb = (params["word_emb"][input_ids]
           + params["pos_emb"][position_ids]
           + params["type_emb"][token_type_ids]).reshape(B * S, H).astype(jnp.float32)

    am = attention_mask.astype(jnp.float32)[:, None, :]        # (B, 1, S) key mask
    g = global_attention_mask.astype(jnp.float32)
    gq = g[:, :, None]                                         # (B, S, 1) global query rows
    gk = g[:, None, :]                                         # (B, 1, S) global key cols

    kernel = functools.partial(
        _forward_kernel, B=B, S=S, H=H, nH=cfg["num_heads"],
        L=cfg["num_layers"], window=cfg["one_sided_window"])

    # Single program: no grid; every array is a whole-block VMEM resident (model is tiny).
    # TODO(synk): at larger B/S add a ("parallel",) batch / query-tile grid axis so work
    # shards across v7x's two TensorCores.
    return pl.pallas_call(
        kernel,
        out_shape=jax.ShapeDtypeStruct((B, cfg["num_labels"]), jnp.float32),
    )(emb, am, gq, gk,
      params["emb_ln_g"], params["emb_ln_b"],
      params["wqkv"], params["bqkv"], params["wo"], params["bo"],
      params["ln1_g"], params["ln1_b"],
      params["w1"], params["b1"], params["w2"], params["b2"],
      params["ln2_g"], params["ln2_b"],
      params["pooler_w"], params["pooler_b"], params["fc_w"], params["fc_b"])


# --------------------------------- main ---------------------------------------

if __name__ == "__main__":
    B, S = 2, 16
    key = jax.random.PRNGKey(0)
    k_param, k_ids = jax.random.split(key, 2)

    params = init_params(k_param, CFG)
    input_ids = jax.random.randint(k_ids, (B, S), 0, CFG["vocab_size"], dtype=jnp.int32)
    # pad the tail of the second sequence to exercise the attention mask
    attention_mask = jnp.ones((B, S), jnp.int32).at[1, S - 4:].set(0)

    fwd = jax.jit(longformer_articles_labeling_forward)
    logits = fwd(params, input_ids, attention_mask)
    logits = jax.block_until_ready(logits)

    assert logits.shape == (B, CFG["num_labels"])
    assert bool(jnp.all(jnp.isfinite(logits)))
    print("KERNEL_OK")
</pallas_src>

<mosaic_0001>
module attributes {stable_mosaic.version = 11 : i64} {
  func.func @_forward_kernel(%arg0: memref<32x32xf32, #tpu.memory_space<vmem>>, %arg1: memref<2x1x16xf32, #tpu.memory_space<vmem>>, %arg2: memref<2x16x1xf32, #tpu.memory_space<vmem>>, %arg3: memref<2x1x16xf32, #tpu.memory_space<vmem>>, %arg4: memref<1x32xf32, #tpu.memory_space<vmem>>, %arg5: memref<1x32xf32, #tpu.memory_space<vmem>>, %arg6: memref<2x32x96xf32, #tpu.memory_space<vmem>>, %arg7: memref<2x1x96xf32, #tpu.memory_space<vmem>>, %arg8: memref<2x32x32xf32, #tpu.memory_space<vmem>>, %arg9: memref<2x1x32xf32, #tpu.memory_space<vmem>>, %arg10: memref<2x1x32xf32, #tpu.memory_space<vmem>>, %arg11: memref<2x1x32xf32, #tpu.memory_space<vmem>>, %arg12: memref<2x32x64xf32, #tpu.memory_space<vmem>>, %arg13: memref<2x1x64xf32, #tpu.memory_space<vmem>>, %arg14: memref<2x64x32xf32, #tpu.memory_space<vmem>>, %arg15: memref<2x1x32xf32, #tpu.memory_space<vmem>>, %arg16: memref<2x1x32xf32, #tpu.memory_space<vmem>>, %arg17: memref<2x1x32xf32, #tpu.memory_space<vmem>>, %arg18: memref<32x32xf32, #tpu.memory_space<vmem>>, %arg19: memref<1x32xf32, #tpu.memory_space<vmem>>, %arg20: memref<32x5xf32, #tpu.memory_space<vmem>>, %arg21: memref<1x5xf32, #tpu.memory_space<vmem>>, %arg22: memref<2x5xf32, #tpu.memory_space<vmem>>) attributes {dimension_semantics = [], scalar_prefetch = 0 : i64, scratch_operands = 0 : i64, tpu.core_type = #tpu.core_type<tc>} {
    %0 = tpu.iota {dimensions = array<i32: 1>} : vector<1x16x16xi32>
    %1 = tpu.iota {dimensions = array<i32: 2>} : vector<1x16x16xi32>
    %2 = arith.subi %0, %1 : vector<1x16x16xi32>
    %3 = math.absi %2 : vector<1x16x16xi32>
    %c2_i32 = arith.constant 2 : i32
    %4 = vector.broadcast %c2_i32 : i32 to vector<1x16x16xi32>
    %5 = arith.cmpi sle, %3, %4 : vector<1x16x16xi32>
    %6 = arith.extui %5 : vector<1x16x16xi1> to vector<1x16x16xi32>
    %7 = arith.sitofp %6 : vector<1x16x16xi32> to vector<1x16x16xf32>
    %c0 = arith.constant 0 : index
    %c0_0 = arith.constant 0 : index
    %c0_1 = arith.constant 0 : index
    %8 = vector.load %arg2[%c0, %c0_0, %c0_1] : memref<2x16x1xf32, #tpu.memory_space<vmem>>, vector<2x16x1xf32>
    %9 = vector.broadcast %7 : vector<1x16x16xf32> to vector<2x16x16xf32>
    %10 = vector.broadcast %8 : vector<2x16x1xf32> to vector<2x16x16xf32>
    %11 = arith.maximumf %9, %10 : vector<2x16x16xf32>
    %c0_2 = arith.constant 0 : index
    %c0_3 = arith.constant 0 : index
    %c0_4 = arith.constant 0 : index
    %12 = vector.load %arg3[%c0_2, %c0_3, %c0_4] : memref<2x1x16xf32, #tpu.memory_space<vmem>>, vector<2x1x16xf32>
    %13 = vector.broadcast %12 : vector<2x1x16xf32> to vector<2x16x16xf32>
    %14 = arith.maximumf %11, %13 : vector<2x16x16xf32>
    %c0_5 = arith.constant 0 : index
    %c0_6 = arith.constant 0 : index
    %c0_7 = arith.constant 0 : index
    %15 = vector.load %arg1[%c0_5, %c0_6, %c0_7] : memref<2x1x16xf32, #tpu.memory_space<vmem>>, vector<2x1x16xf32>
    %16 = vector.broadcast %15 : vector<2x1x16xf32> to vector<2x16x16xf32>
    %17 = arith.mulf %14, %16 : vector<2x16x16xf32>
    %cst = arith.constant 1.000000e+00 : f32
    %18 = vector.broadcast %cst : f32 to vector<2x16x16xf32>
    %19 = arith.subf %17, %18 : vector<2x16x16xf32>
    %cst_8 = arith.constant 1.000000e+09 : f32
    %20 = vector.broadcast %cst_8 : f32 to vector<2x16x16xf32>
    %21 = arith.mulf %19, %20 : vector<2x16x16xf32>
    %c0_9 = arith.constant 0 : index
    %c0_10 = arith.constant 0 : index
    %22 = vector.load %arg0[%c0_9, %c0_10] : memref<32x32xf32, #tpu.memory_space<vmem>>, vector<32x32xf32>
    %c0_11 = arith.constant 0 : index
    %c0_12 = arith.constant 0 : index
    %23 = vector.load %arg4[%c0_11, %c0_12] : memref<1x32xf32, #tpu.memory_space<vmem>>, vector<1x32xf32>
    %c0_13 = arith.constant 0 : index
    %c0_14 = arith.constant 0 : index
    %24 = vector.load %arg5[%c0_13, %c0_14] : memref<1x32xf32, #tpu.memory_space<vmem>>, vector<1x32xf32>
    %cst_15 = arith.constant dense<0.000000e+00> : vector<32xf32>
    %25 = vector.multi_reduction <add>, %22, %cst_15 [1] : vector<32x32xf32> to vector<32xf32>
    %26 = vector.shape_cast %25 : vector<32xf32> to vector<32x1xf32>
    %cst_16 = arith.constant 3.200000e+01 : f32
    %27 = vector.broadcast %cst_16 : f32 to vector<32x1xf32>
    %28 = arith.divf %26, %27 : vector<32x1xf32>
    %29 = vector.broadcast %28 : vector<32x1xf32> to vector<32x32xf32>
    %30 = arith.subf %22, %29 : vector<32x32xf32>
    %31 = arith.mulf %30, %30 : vector<32x32xf32>
    %cst_17 = arith.constant dense<0.000000e+00> : vector<32xf32>
    %32 = vector.multi_reduction <add>, %31, %cst_17 [1] : vector<32x32xf32> to vector<32xf32>
    %33 = vector.shape_cast %32 : vector<32xf32> to vector<32x1xf32>
    %cst_18 = arith.constant 3.200000e+01 : f32
    %34 = vector.broadcast %cst_18 : f32 to vector<32x1xf32>
    %35 = arith.divf %33, %34 : vector<32x1xf32>
    %36 = vector.broadcast %28 : vector<32x1xf32> to vector<32x32xf32>
    %37 = arith.subf %22, %36 : vector<32x32xf32>
    %cst_19 = arith.constant 9.99999974E-6 : f32
    %38 = vector.broadcast %cst_19 : f32 to vector<32x1xf32>
    %39 = arith.addf %35, %38 : vector<32x1xf32>
    %40 = math.rsqrt %39 : vector<32x1xf32>
    %41 = vector.broadcast %40 : vector<32x1xf32> to vector<32x32xf32>
    %42 = arith.mulf %37, %41 : vector<32x32xf32>
    %43 = vector.broadcast %23 : vector<1x32xf32> to vector<32x32xf32>
    %44 = arith.mulf %42, %43 : vector<32x32xf32>
    %45 = vector.broadcast %24 : vector<1x32xf32> to vector<32x32xf32>
    %46 = arith.addf %44, %45 : vector<32x32xf32>
    %c0_20 = arith.constant 0 : index
    %c0_21 = arith.constant 0 : index
    %c0_22 = arith.constant 0 : index
    %47 = vector.load %arg6[%c0_20, %c0_21, %c0_22] : memref<2x32x96xf32, #tpu.memory_space<vmem>>, vector<1x32x96xf32>
    %48 = vector.shape_cast %47 : vector<1x32x96xf32> to vector<32x96xf32>
    %49 = arith.truncf %46 : vector<32x32xf32> to vector<32x32xbf16>
    %50 = arith.truncf %48 : vector<32x96xf32> to vector<32x96xbf16>
    %cst_23 = arith.constant dense<0.000000e+00> : vector<32x96xf32>
    %51 = tpu.matmul %49, %50, %cst_23 {dimension_numbers = #tpu.dot_dimension_numbers<[1], [0], [0], [1], [0, 0, 1, 1], [], []>} : vector<32x32xbf16>, vector<32x96xbf16>, vector<32x96xf32> -> vector<32x96xf32>
    %c0_24 = arith.constant 0 : index
    %c0_25 = arith.constant 0 : index
    %c0_26 = arith.constant 0 : index
    %52 = vector.load %arg7[%c0_24, %c0_25, %c0_26] : memref<2x1x96xf32, #tpu.memory_space<vmem>>, vector<1x1x96xf32>
    %53 = vector.shape_cast %52 : vector<1x1x96xf32> to vector<1x96xf32>
    %54 = vector.broadcast %53 : vector<1x96xf32> to vector<32x96xf32>
    %55 = arith.addf %51, %54 : vector<32x96xf32>
    %c0_27 = arith.constant 0 : index
    %c0_28 = arith.constant 0 : index
    %c0_29 = arith.constant 0 : index
    %56 = vector.load %arg8[%c0_27, %c0_28, %c0_29] : memref<2x32x32xf32, #tpu.memory_space<vmem>>, vector<1x32x32xf32>
    %57 = vector.shape_cast %56 : vector<1x32x32xf32> to vector<32x32xf32>
    %cst_30 = arith.constant 0.000000e+00 : f32
    %58 = vector.broadcast %cst_30 : f32 to vector<32x32xf32>
    %59 = vector.extract_strided_slice %55 {offsets = [0, 0], sizes = [32, 8], strides = [1, 1]} : vector<32x96xf32> to vector<32x8xf32>
    %60 = vector.shape_cast %59 : vector<32x8xf32> to vector<2x16x8xf32>
    %cst_31 = arith.constant 0.353553385 : f32
    %61 = vector.broadcast %cst_31 : f32 to vector<2x16x8xf32>
    %62 = arith.mulf %60, %61 : vector<2x16x8xf32>
    %63 = vector.extract_strided_slice %55 {offsets = [0, 32], sizes = [32, 8], strides = [1, 1]} : vector<32x96xf32> to vector<32x8xf32>
    %64 = vector.shape_cast %63 : vector<32x8xf32> to vector<2x16x8xf32>
    %65 = vector.extract_strided_slice %55 {offsets = [0, 64], sizes = [32, 8], strides = [1, 1]} : vector<32x96xf32> to vector<32x8xf32>
    %66 = vector.shape_cast %65 : vector<32x8xf32> to vector<2x16x8xf32>
    %67 = arith.truncf %62 : vector<2x16x8xf32> to vector<2x16x8xbf16>
    %68 = arith.truncf %64 : vector<2x16x8xf32> to vector<2x16x8xbf16>
    "tpu.trace_start"() <{level = 10 : i32, message = "bqd,bkd->bqk"}> : () -> ()
    %cst_32 = arith.constant dense<0.000000e+00> : vector<2x16x16xf32>
    %69 = tpu.matmul %67, %68, %cst_32 {dimension_numbers = #tpu.dot_dimension_numbers<[2], [2], [1], [1], [0, 0, 0, 1, 1, 1], [0], [0]>} : vector<2x16x8xbf16>, vector<2x16x8xbf16>, vector<2x16x16xf32> -> vector<2x16x16xf32>
    "tpu.trace_stop"() : () -> ()
    %70 = arith.addf %69, %21 : vector<2x16x16xf32>
    %cst_33 = arith.constant dense<0xFF800000> : vector<2x16xf32>
    %71 = vector.multi_reduction <maximumf>, %70, %cst_33 [2] : vector<2x16x16xf32> to vector<2x16xf32>
    %72 = vector.shape_cast %71 : vector<2x16xf32> to vector<2x16x1xf32>
    %73 = vector.broadcast %72 : vector<2x16x1xf32> to vector<2x16x16xf32>
    %74 = arith.subf %70, %73 : vector<2x16x16xf32>
    %75 = math.exp %74 : vector<2x16x16xf32>
    %cst_34 = arith.constant dense<0.000000e+00> : vector<2x16xf32>
    %76 = vector.multi_reduction <add>, %75, %cst_34 [2] : vector<2x16x16xf32> to vector<2x16xf32>
    %77 = vector.shape_cast %76 : vector<2x16xf32> to vector<2x16x1xf32>
    %78 = tpu.reciprocal %77 {approx = true} : vector<2x16x1xf32> -> vector<2x16x1xf32>
    %79 = vector.broadcast %78 : vector<2x16x1xf32> to vector<2x16x16xf32>
    %80 = arith.mulf %75, %79 : vector<2x16x16xf32>
    %81 = arith.truncf %80 : vector<2x16x16xf32> to vector<2x16x16xbf16>
    %82 = arith.truncf %66 : vector<2x16x8xf32> to vector<2x16x8xbf16>
    "tpu.trace_start"() <{level = 10 : i32, message = "bqk,bkd->bqd"}> : () -> ()
    %cst_35 = arith.constant dense<0.000000e+00> : vector<2x16x8xf32>
    %83 = tpu.matmul %81, %82, %cst_35 {dimension_numbers = #tpu.dot_dimension_numbers<[2], [1], [1], [2], [0, 0, 0, 1, 1, 2], [0], [0]>} : vector<2x16x16xbf16>, vector<2x16x8xbf16>, vector<2x16x8xf32> -> vector<2x16x8xf32>
    "tpu.trace_stop"() : () -> ()
    %84 = vector.shape_cast %83 : vector<2x16x8xf32> to vector<32x8xf32>
    %85 = vector.extract_strided_slice %57 {offsets = [0, 0], sizes = [8, 32], strides = [1, 1]} : vector<32x32xf32> to vector<8x32xf32>
    %86 = arith.truncf %84 : vector<32x8xf32> to vector<32x8xbf16>
    %87 = arith.truncf %85 : vector<8x32xf32> to vector<8x32xbf16>
    %cst_36 = arith.constant dense<0.000000e+00> : vector<32x32xf32>
    %88 = tpu.matmul %86, %87, %cst_36 {dimension_numbers = #tpu.dot_dimension_numbers<[1], [0], [0], [1], [0, 0, 1, 1], [], []>} : vector<32x8xbf16>, vector<8x32xbf16>, vector<32x32xf32> -> vector<32x32xf32>
    %89 = arith.addf %58, %88 : vector<32x32xf32>
    %90 = vector.extract_strided_slice %55 {offsets = [0, 8], sizes = [32, 8], strides = [1, 1]} : vector<32x96xf32> to vector<32x8xf32>
    %91 = vector.shape_cast %90 : vector<32x8xf32> to vector<2x16x8xf32>
    %cst_37 = arith.constant 0.353553385 : f32
    %92 = vector.broadcast %cst_37 : f32 to vector<2x16x8xf32>
    %93 = arith.mulf %91, %92 : vector<2x16x8xf32>
    %94 = vector.extract_strided_slice %55 {offsets = [0, 40], sizes = [32, 8], strides = [1, 1]} : vector<32x96xf32> to vector<32x8xf32>
    %95 = vector.shape_cast %94 : vector<32x8xf32> to vector<2x16x8xf32>
    %96 = vector.extract_strided_slice %55 {offsets = [0, 72], sizes = [32, 8], strides = [1, 1]} : vector<32x96xf32> to vector<32x8xf32>
    %97 = vector.shape_cast %96 : vector<32x8xf32> to vector<2x16x8xf32>
    %98 = arith.truncf %93 : vector<2x16x8xf32> to vector<2x16x8xbf16>
    %99 = arith.truncf %95 : vector<2x16x8xf32> to vector<2x16x8xbf16>
    "tpu.trace_start"() <{level = 10 : i32, message = "bqd,bkd->bqk"}> : () -> ()
    %cst_38 = arith.constant dense<0.000000e+00> : vector<2x16x16xf32>
    %100 = tpu.matmul %98, %99, %cst_38 {dimension_numbers = #tpu.dot_dimension_numbers<[2], [2], [1], [1], [0, 0, 0, 1, 1, 1], [0], [0]>} : vector<2x16x8xbf16>, vector<2x16x8xbf16>, vector<2x16x16xf32> -> vector<2x16x16xf32>
    "tpu.trace_stop"() : () -> ()
    %101 = arith.addf %100, %21 : vector<2x16x16xf32>
    %cst_39 = arith.constant dense<0xFF800000> : vector<2x16xf32>
    %102 = vector.multi_reduction <maximumf>, %101, %cst_39 [2] : vector<2x16x16xf32> to vector<2x16xf32>
    %103 = vector.shape_cast %102 : vector<2x16xf32> to vector<2x16x1xf32>
    %104 = vector.broadcast %103 : vector<2x16x1xf32> to vector<2x16x16xf32>
    %105 = arith.subf %101, %104 : vector<2x16x16xf32>
    %106 = math.exp %105 : vector<2x16x16xf32>
    %cst_40 = arith.constant dense<0.000000e+00> : vector<2x16xf32>
    %107 = vector.multi_reduction <add>, %106, %cst_40 [2] : vector<2x16x16xf32> to vector<2x16xf32>
    %108 = vector.shape_cast %107 : vector<2x16xf32> to vector<2x16x1xf32>
    %109 = tpu.reciprocal %108 {approx = true} : vector<2x16x1xf32> -> vector<2x16x1xf32>
    %110 = vector.broadcast %109 : vector<2x16x1xf32> to vector<2x16x16xf32>
    %111 = arith.mulf %106, %110 : vector<2x16x16xf32>
    %112 = arith.truncf %111 : vector<2x16x16xf32> to vector<2x16x16xbf16>
    %113 = arith.truncf %97 : vector<2x16x8xf32> to vector<2x16x8xbf16>
    "tpu.trace_start"() <{level = 10 : i32, message = "bqk,bkd->bqd"}> : () -> ()
    %cst_41 = arith.constant dense<0.000000e+00> : vector<2x16x8xf32>
    %114 = tpu.matmul %112, %113, %cst_41 {dimension_numbers = #tpu.dot_dimension_numbers<[2], [1], [1], [2], [0, 0, 0, 1, 1, 2], [0], [0]>} : vector<2x16x16xbf16>, vector<2x16x8xbf16>, vector<2x16x8xf32> -> vector<2x16x8xf32>
    "tpu.trace_stop"() : () -> ()
    %115 = vector.shape_cast %114 : vector<2x16x8xf32> to vector<32x8xf32>
    %116 = vector.extract_strided_slice %57 {offsets = [8, 0], sizes = [8, 32], strides = [1, 1]} : vector<32x32xf32> to vector<8x32xf32>
    %117 = arith.truncf %115 : vector<32x8xf32> to vector<32x8xbf16>
    %118 = arith.truncf %116 : vector<8x32xf32> to vector<8x32xbf16>
    %cst_42 = arith.constant dense<0.000000e+00> : vector<32x32xf32>
    %119 = tpu.matmul %117, %118, %cst_42 {dimension_numbers = #tpu.dot_dimension_numbers<[1], [0], [0], [1], [0, 0, 1, 1], [], []>} : vector<32x8xbf16>, vector<8x32xbf16>, vector<32x32xf32> -> vector<32x32xf32>
    %120 = arith.addf %89, %119 : vector<32x32xf32>
    %121 = vector.extract_strided_slice %55 {offsets = [0, 16], sizes = [32, 8], strides = [1, 1]} : vector<32x96xf32> to vector<32x8xf32>
    %122 = vector.shape_cast %121 : vector<32x8xf32> to vector<2x16x8xf32>
    %cst_43 = arith.constant 0.353553385 : f32
    %123 = vector.broadcast %cst_43 : f32 to vector<2x16x8xf32>
    %124 = arith.mulf %122, %123 : vector<2x16x8xf32>
    %125 = vector.extract_strided_slice %55 {offsets = [0, 48], sizes = [32, 8], strides = [1, 1]} : vector<32x96xf32> to vector<32x8xf32>
    %126 = vector.shape_cast %125 : vector<32x8xf32> to vector<2x16x8xf32>
    %127 = vector.extract_strided_slice %55 {offsets = [0, 80], sizes = [32, 8], strides = [1, 1]} : vector<32x96xf32> to vector<32x8xf32>
    %128 = vector.shape_cast %127 : vector<32x8xf32> to vector<2x16x8xf32>
    %129 = arith.truncf %124 : vector<2x16x8xf32> to vector<2x16x8xbf16>
    %130 = arith.truncf %126 : vector<2x16x8xf32> to vector<2x16x8xbf16>
    "tpu.trace_start"() <{level = 10 : i32, message = "bqd,bkd->bqk"}> : () -> ()
    %cst_44 = arith.constant dense<0.000000e+00> : vector<2x16x16xf32>
    %131 = tpu.matmul %129, %130, %cst_44 {dimension_numbers = #tpu.dot_dimension_numbers<[2], [2], [1], [1], [0, 0, 0, 1, 1, 1], [0], [0]>} : vector<2x16x8xbf16>, vector<2x16x8xbf16>, vector<2x16x16xf32> -> vector<2x16x16xf32>
    "tpu.trace_stop"() : () -> ()
    %132 = arith.addf %131, %21 : vector<2x16x16xf32>
    %cst_45 = arith.constant dense<0xFF800000> : vector<2x16xf32>
    %133 = vector.multi_reduction <maximumf>, %132, %cst_45 [2] : vector<2x16x16xf32> to vector<2x16xf32>
    %134 = vector.shape_cast %133 : vector<2x16xf32> to vector<2x16x1xf32>
    %135 = vector.broadcast %134 : vector<2x16x1xf32> to vector<2x16x16xf32>
    %136 = arith.subf %132, %135 : vector<2x16x16xf32>
    %137 = math.exp %136 : vector<2x16x16xf32>
    %cst_46 = arith.constant dense<0.000000e+00> : vector<2x16xf32>
    %138 = vector.multi_reduction <add>, %137, %cst_46 [2] : vector<2x16x16xf32> to vector<2x16xf32>
    %139 = vector.shape_cast %138 : vector<2x16xf32> to vector<2x16x1xf32>
    %140 = tpu.reciprocal %139 {approx = true} : vector<2x16x1xf32> -> vector<2x16x1xf32>
    %141 = vector.broadcast %140 : vector<2x16x1xf32> to vector<2x16x16xf32>
    %142 = arith.mulf %137, %141 : vector<2x16x16xf32>
    %143 = arith.truncf %142 : vector<2x16x16xf32> to vector<2x16x16xbf16>
    %144 = arith.truncf %128 : vector<2x16x8xf32> to vector<2x16x8xbf16>
    "tpu.trace_start"() <{level = 10 : i32, message = "bqk,bkd->bqd"}> : () -> ()
    %cst_47 = arith.constant dense<0.000000e+00> : vector<2x16x8xf32>
    %145 = tpu.matmul %143, %144, %cst_47 {dimension_numbers = #tpu.dot_dimension_numbers<[2], [1], [1], [2], [0, 0, 0, 1, 1, 2], [0], [0]>} : vector<2x16x16xbf16>, vector<2x16x8xbf16>, vector<2x16x8xf32> -> vector<2x16x8xf32>
    "tpu.trace_stop"() : () -> ()
    %146 = vector.shape_cast %145 : vector<2x16x8xf32> to vector<32x8xf32>
    %147 = vector.extract_strided_slice %57 {offsets = [16, 0], sizes = [8, 32], strides = [1, 1]} : vector<32x32xf32> to vector<8x32xf32>
    %148 = arith.truncf %146 : vector<32x8xf32> to vector<32x8xbf16>
    %149 = arith.truncf %147 : vector<8x32xf32> to vector<8x32xbf16>
    %cst_48 = arith.constant dense<0.000000e+00> : vector<32x32xf32>
    %150 = tpu.matmul %148, %149, %cst_48 {dimension_numbers = #tpu.dot_dimension_numbers<[1], [0], [0], [1], [0, 0, 1, 1], [], []>} : vector<32x8xbf16>, vector<8x32xbf16>, vector<32x32xf32> -> vector<32x32xf32>
    %151 = arith.addf %120, %150 : vector<32x32xf32>
    %152 = vector.extract_strided_slice %55 {offsets = [0, 24], sizes = [32, 8], strides = [1, 1]} : vector<32x96xf32> to vector<32x8xf32>
    %153 = vector.shape_cast %152 : vector<32x8xf32> to vector<2x16x8xf32>
    %cst_49 = arith.constant 0.353553385 : f32
    %154 = vector.broadcast %cst_49 : f32 to vector<2x16x8xf32>
    %155 = arith.mulf %153, %154 : vector<2x16x8xf32>
    %156 = vector.extract_strided_slice %55 {offsets = [0, 56], sizes = [32, 8], strides = [1, 1]} : vector<32x96xf32> to vector<32x8xf32>
    %157 = vector.shape_cast %156 : vector<32x8xf32> to vector<2x16x8xf32>
    %158 = vector.extract_strided_slice %55 {offsets = [0, 88], sizes = [32, 8], strides = [1, 1]} : vector<32x96xf32> to vector<32x8xf32>
    %159 = vector.shape_cast %158 : vector<32x8xf32> to vector<2x16x8xf32>
    %160 = arith.truncf %155 : vector<2x16x8xf32> to vector<2x16x8xbf16>
    %161 = arith.truncf %157 : vector<2x16x8xf32> to vector<2x16x8xbf16>
    "tpu.trace_start"() <{level = 10 : i32, message = "bqd,bkd->bqk"}> : () -> ()
    %cst_50 = arith.constant dense<0.000000e+00> : vector<2x16x16xf32>
    %162 = tpu.matmul %160, %161, %cst_50 {dimension_numbers = #tpu.dot_dimension_numbers<[2], [2], [1], [1], [0, 0, 0, 1, 1, 1], [0], [0]>} : vector<2x16x8xbf16>, vector<2x16x8xbf16>, vector<2x16x16xf32> -> vector<2x16x16xf32>
    "tpu.trace_stop"() : () -> ()
    %163 = arith.addf %162, %21 : vector<2x16x16xf32>
    %cst_51 = arith.constant dense<0xFF800000> : vector<2x16xf32>
    %164 = vector.multi_reduction <maximumf>, %163, %cst_51 [2] : vector<2x16x16xf32> to vector<2x16xf32>
    %165 = vector.shape_cast %164 : vector<2x16xf32> to vector<2x16x1xf32>
    %166 = vector.broadcast %165 : vector<2x16x1xf32> to vector<2x16x16xf32>
    %167 = arith.subf %163, %166 : vector<2x16x16xf32>
    %168 = math.exp %167 : vector<2x16x16xf32>
    %cst_52 = arith.constant dense<0.000000e+00> : vector<2x16xf32>
    %169 = vector.multi_reduction <add>, %168, %cst_52 [2] : vector<2x16x16xf32> to vector<2x16xf32>
    %170 = vector.shape_cast %169 : vector<2x16xf32> to vector<2x16x1xf32>
    %171 = tpu.reciprocal %170 {approx = true} : vector<2x16x1xf32> -> vector<2x16x1xf32>
    %172 = vector.broadcast %171 : vector<2x16x1xf32> to vector<2x16x16xf32>
    %173 = arith.mulf %168, %172 : vector<2x16x16xf32>
    %174 = arith.truncf %173 : vector<2x16x16xf32> to vector<2x16x16xbf16>
    %175 = arith.truncf %159 : vector<2x16x8xf32> to vector<2x16x8xbf16>
    "tpu.trace_start"() <{level = 10 : i32, message = "bqk,bkd->bqd"}> : () -> ()
    %cst_53 = arith.constant dense<0.000000e+00> : vector<2x16x8xf32>
    %176 = tpu.matmul %174, %175, %cst_53 {dimension_numbers = #tpu.dot_dimension_numbers<[2], [1], [1], [2], [0, 0, 0, 1, 1, 2], [0], [0]>} : vector<2x16x16xbf16>, vector<2x16x8xbf16>, vector<2x16x8xf32> -> vector<2x16x8xf32>
    "tpu.trace_stop"() : () -> ()
    %177 = vector.shape_cast %176 : vector<2x16x8xf32> to vector<32x8xf32>
    %178 = vector.extract_strided_slice %57 {offsets = [24, 0], sizes = [8, 32], strides = [1, 1]} : vector<32x32xf32> to vector<8x32xf32>
    %179 = arith.truncf %177 : vector<32x8xf32> to vector<32x8xbf16>
    %180 = arith.truncf %178 : vector<8x32xf32> to vector<8x32xbf16>
    %cst_54 = arith.constant dense<0.000000e+00> : vector<32x32xf32>
    %181 = tpu.matmul %179, %180, %cst_54 {dimension_numbers = #tpu.dot_dimension_numbers<[1], [0], [0], [1], [0, 0, 1, 1], [], []>} : vector<32x8xbf16>, vector<8x32xbf16>, vector<32x32xf32> -> vector<32x32xf32>
    %182 = arith.addf %151, %181 : vector<32x32xf32>
    %c0_55 = arith.constant 0 : index
    %c0_56 = arith.constant 0 : index
    %c0_57 = arith.constant 0 : index
    %183 = vector.load %arg9[%c0_55, %c0_56, %c0_57] : memref<2x1x32xf32, #tpu.memory_space<vmem>>, vector<1x1x32xf32>
    %184 = vector.shape_cast %183 : vector<1x1x32xf32> to vector<1x32xf32>
    %185 = vector.broadcast %184 : vector<1x32xf32> to vector<32x32xf32>
    %186 = arith.addf %182, %185 : vector<32x32xf32>
    %187 = arith.addf %46, %186 : vector<32x32xf32>
    %c0_58 = arith.constant 0 : index
    %c0_59 = arith.constant 0 : index
    %c0_60 = arith.constant 0 : index
    %188 = vector.load %arg10[%c0_58, %c0_59, %c0_60] : memref<2x1x32xf32, #tpu.memory_space<vmem>>, vector<1x1x32xf32>
    %189 = vector.shape_cast %188 : vector<1x1x32xf32> to vector<1x32xf32>
    %c0_61 = arith.constant 0 : index
    %c0_62 = arith.constant 0 : index
    %c0_63 = arith.constant 0 : index
    %190 = vector.load %arg11[%c0_61, %c0_62, %c0_63] : memref<2x1x32xf32, #tpu.memory_space<vmem>>, vector<1x1x32xf32>
    %191 = vector.shape_cast %190 : vector<1x1x32xf32> to vector<1x32xf32>
    %cst_64 = arith.constant dense<0.000000e+00> : vector<32xf32>
    %192 = vector.multi_reduction <add>, %187, %cst_64 [1] : vector<32x32xf32> to vector<32xf32>
    %193 = vector.shape_cast %192 : vector<32xf32> to vector<32x1xf32>
    %cst_65 = arith.constant 3.200000e+01 : f32
    %194 = vector.broadcast %cst_65 : f32 to vector<32x1xf32>
    %195 = arith.divf %193, %194 : vector<32x1xf32>
    %196 = vector.broadcast %195 : vector<32x1xf32> to vector<32x32xf32>
    %197 = arith.subf %187, %196 : vector<32x32xf32>
    %198 = arith.mulf %197, %197 : vector<32x32xf32>
    %cst_66 = arith.constant dense<0.000000e+00> : vector<32xf32>
    %199 = vector.multi_reduction <add>, %198, %cst_66 [1] : vector<32x32xf32> to vector<32xf32>
    %200 = vector.shape_cast %199 : vector<32xf32> to vector<32x1xf32>
    %cst_67 = arith.constant 3.200000e+01 : f32
    %201 = vector.broadcast %cst_67 : f32 to vector<32x1xf32>
    %202 = arith.divf %200, %201 : vector<32x1xf32>
    %203 = vector.broadcast %195 : vector<32x1xf32> to vector<32x32xf32>
    %204 = arith.subf %187, %203 : vector<32x32xf32>
    %cst_68 = arith.constant 9.99999974E-6 : f32
    %205 = vector.broadcast %cst_68 : f32 to vector<32x1xf32>
    %206 = arith.addf %202, %205 : vector<32x1xf32>
    %207 = math.rsqrt %206 : vector<32x1xf32>
    %208 = vector.broadcast %207 : vector<32x1xf32> to vector<32x32xf32>
    %209 = arith.mulf %204, %208 : vector<32x32xf32>
    %210 = vector.broadcast %189 : vector<1x32xf32> to vector<32x32xf32>
    %211 = arith.mulf %209, %210 : vector<32x32xf32>
    %212 = vector.broadcast %191 : vector<1x32xf32> to vector<32x32xf32>
    %213 = arith.addf %211, %212 : vector<32x32xf32>
    %c0_69 = arith.constant 0 : index
    %c0_70 = arith.constant 0 : index
    %c0_71 = arith.constant 0 : index
    %214 = vector.load %arg12[%c0_69, %c0_70, %c0_71] : memref<2x32x64xf32, #tpu.memory_space<vmem>>, vector<1x32x64xf32>
    %215 = vector.shape_cast %214 : vector<1x32x64xf32> to vector<32x64xf32>
    %216 = arith.truncf %213 : vector<32x32xf32> to vector<32x32xbf16>
    %217 = arith.truncf %215 : vector<32x64xf32> to vector<32x64xbf16>
    %cst_72 = arith.constant dense<0.000000e+00> : vector<32x64xf32>
    %218 = tpu.matmul %216, %217, %cst_72 {dimension_numbers = #tpu.dot_dimension_numbers<[1], [0], [0], [1], [0, 0, 1, 1], [], []>} : vector<32x32xbf16>, vector<32x64xbf16>, vector<32x64xf32> -> vector<32x64xf32>
    %c0_73 = arith.constant 0 : index
    %c0_74 = arith.constant 0 : index
    %c0_75 = arith.constant 0 : index
    %219 = vector.load %arg13[%c0_73, %c0_74, %c0_75] : memref<2x1x64xf32, #tpu.memory_space<vmem>>, vector<1x1x64xf32>
    %220 = vector.shape_cast %219 : vector<1x1x64xf32> to vector<1x64xf32>
    %221 = vector.broadcast %220 : vector<1x64xf32> to vector<32x64xf32>
    %222 = arith.addf %218, %221 : vector<32x64xf32>
    %cst_76 = arith.constant 5.000000e-01 : f32
    %223 = vector.broadcast %cst_76 : f32 to vector<32x64xf32>
    %224 = arith.mulf %223, %222 : vector<32x64xf32>
    %cst_77 = arith.constant 4.471500e-02 : f32
    %225 = vector.broadcast %cst_77 : f32 to vector<32x64xf32>
    %226 = arith.mulf %225, %222 : vector<32x64xf32>
    %227 = arith.mulf %226, %222 : vector<32x64xf32>
    %228 = arith.mulf %227, %222 : vector<32x64xf32>
    %229 = arith.addf %222, %228 : vector<32x64xf32>
    %cst_78 = arith.constant 0.797884583 : f32
    %230 = vector.broadcast %cst_78 : f32 to vector<32x64xf32>
    %231 = arith.mulf %230, %229 : vector<32x64xf32>
    %232 = math.tanh %231 : vector<32x64xf32>
    %cst_79 = arith.constant 1.000000e+00 : f32
    %233 = vector.broadcast %cst_79 : f32 to vector<32x64xf32>
    %234 = arith.addf %233, %232 : vector<32x64xf32>
    %235 = arith.mulf %224, %234 : vector<32x64xf32>
    %c0_80 = arith.constant 0 : index
    %c0_81 = arith.constant 0 : index
    %c0_82 = arith.constant 0 : index
    %236 = vector.load %arg14[%c0_80, %c0_81, %c0_82] : memref<2x64x32xf32, #tpu.memory_space<vmem>>, vector<1x64x32xf32>
    %237 = vector.shape_cast %236 : vector<1x64x32xf32> to vector<64x32xf32>
    %238 = arith.truncf %235 : vector<32x64xf32> to vector<32x64xbf16>
    %239 = arith.truncf %237 : vector<64x32xf32> to vector<64x32xbf16>
    %cst_83 = arith.constant dense<0.000000e+00> : vector<32x32xf32>
    %240 = tpu.matmul %238, %239, %cst_83 {dimension_numbers = #tpu.dot_dimension_numbers<[1], [0], [0], [1], [0, 0, 1, 1], [], []>} : vector<32x64xbf16>, vector<64x32xbf16>, vector<32x32xf32> -> vector<32x32xf32>
    %c0_84 = arith.constant 0 : index
    %c0_85 = arith.constant 0 : index
    %c0_86 = arith.constant 0 : index
    %241 = vector.load %arg15[%c0_84, %c0_85, %c0_86] : memref<2x1x32xf32, #tpu.memory_space<vmem>>, vector<1x1x32xf32>
    %242 = vector.shape_cast %241 : vector<1x1x32xf32> to vector<1x32xf32>
    %243 = vector.broadcast %242 : vector<1x32xf32> to vector<32x32xf32>
    %244 = arith.addf %240, %243 : vector<32x32xf32>
    %245 = arith.addf %213, %244 : vector<32x32xf32>
    %c0_87 = arith.constant 0 : index
    %c0_88 = arith.constant 0 : index
    %c0_89 = arith.constant 0 : index
    %246 = vector.load %arg16[%c0_87, %c0_88, %c0_89] : memref<2x1x32xf32, #tpu.memory_space<vmem>>, vector<1x1x32xf32>
    %247 = vector.shape_cast %246 : vector<1x1x32xf32> to vector<1x32xf32>
    %c0_90 = arith.constant 0 : index
    %c0_91 = arith.constant 0 : index
    %c0_92 = arith.constant 0 : index
    %248 = vector.load %arg17[%c0_90, %c0_91, %c0_92] : memref<2x1x32xf32, #tpu.memory_space<vmem>>, vector<1x1x32xf32>
    %249 = vector.shape_cast %248 : vector<1x1x32xf32> to vector<1x32xf32>
    %cst_93 = arith.constant dense<0.000000e+00> : vector<32xf32>
    %250 = vector.multi_reduction <add>, %245, %cst_93 [1] : vector<32x32xf32> to vector<32xf32>
    %251 = vector.shape_cast %250 : vector<32xf32> to vector<32x1xf32>
    %cst_94 = arith.constant 3.200000e+01 : f32
    %252 = vector.broadcast %cst_94 : f32 to vector<32x1xf32>
    %253 = arith.divf %251, %252 : vector<32x1xf32>
    %254 = vector.broadcast %253 : vector<32x1xf32> to vector<32x32xf32>
    %255 = arith.subf %245, %254 : vector<32x32xf32>
    %256 = arith.mulf %255, %255 : vector<32x32xf32>
    %cst_95 = arith.constant dense<0.000000e+00> : vector<32xf32>
    %257 = vector.multi_reduction <add>, %256, %cst_95 [1] : vector<32x32xf32> to vector<32xf32>
    %258 = vector.shape_cast %257 : vector<32xf32> to vector<32x1xf32>
    %cst_96 = arith.constant 3.200000e+01 : f32
    %259 = vector.broadcast %cst_96 : f32 to vector<32x1xf32>
    %260 = arith.divf %258, %259 : vector<32x1xf32>
    %261 = vector.broadcast %253 : vector<32x1xf32> to vector<32x32xf32>
    %262 = arith.subf %245, %261 : vector<32x32xf32>
    %cst_97 = arith.constant 9.99999974E-6 : f32
    %263 = vector.broadcast %cst_97 : f32 to vector<32x1xf32>
    %264 = arith.addf %260, %263 : vector<32x1xf32>
    %265 = math.rsqrt %264 : vector<32x1xf32>
    %266 = vector.broadcast %265 : vector<32x1xf32> to vector<32x32xf32>
    %267 = arith.mulf %262, %266 : vector<32x32xf32>
    %268 = vector.broadcast %247 : vector<1x32xf32> to vector<32x32xf32>
    %269 = arith.mulf %267, %268 : vector<32x32xf32>
    %270 = vector.broadcast %249 : vector<1x32xf32> to vector<32x32xf32>
    %271 = arith.addf %269, %270 : vector<32x32xf32>
    %c1 = arith.constant 1 : index
    %c0_98 = arith.constant 0 : index
    %c0_99 = arith.constant 0 : index
    %272 = vector.load %arg6[%c1, %c0_98, %c0_99] : memref<2x32x96xf32, #tpu.memory_space<vmem>>, vector<1x32x96xf32>
    %273 = vector.shape_cast %272 : vector<1x32x96xf32> to vector<32x96xf32>
    %274 = arith.truncf %271 : vector<32x32xf32> to vector<32x32xbf16>
    %275 = arith.truncf %273 : vector<32x96xf32> to vector<32x96xbf16>
    %cst_100 = arith.constant dense<0.000000e+00> : vector<32x96xf32>
    %276 = tpu.matmul %274, %275, %cst_100 {dimension_numbers = #tpu.dot_dimension_numbers<[1], [0], [0], [1], [0, 0, 1, 1], [], []>} : vector<32x32xbf16>, vector<32x96xbf16>, vector<32x96xf32> -> vector<32x96xf32>
    %c1_101 = arith.constant 1 : index
    %c0_102 = arith.constant 0 : index
    %c0_103 = arith.constant 0 : index
    %277 = vector.load %arg7[%c1_101, %c0_102, %c0_103] : memref<2x1x96xf32, #tpu.memory_space<vmem>>, vector<1x1x96xf32>
    %278 = vector.shape_cast %277 : vector<1x1x96xf32> to vector<1x96xf32>
    %279 = vector.broadcast %278 : vector<1x96xf32> to vector<32x96xf32>
    %280 = arith.addf %276, %279 : vector<32x96xf32>
    %c1_104 = arith.constant 1 : index
    %c0_105 = arith.constant 0 : index
    %c0_106 = arith.constant 0 : index
    %281 = vector.load %arg8[%c1_104, %c0_105, %c0_106] : memref<2x32x32xf32, #tpu.memory_space<vmem>>, vector<1x32x32xf32>
    %282 = vector.shape_cast %281 : vector<1x32x32xf32> to vector<32x32xf32>
    %cst_107 = arith.constant 0.000000e+00 : f32
    %283 = vector.broadcast %cst_107 : f32 to vector<32x32xf32>
    %284 = vector.extract_strided_slice %280 {offsets = [0, 0], sizes = [32, 8], strides = [1, 1]} : vector<32x96xf32> to vector<32x8xf32>
    %285 = vector.shape_cast %284 : vector<32x8xf32> to vector<2x16x8xf32>
    %cst_108 = arith.constant 0.353553385 : f32
    %286 = vector.broadcast %cst_108 : f32 to vector<2x16x8xf32>
    %287 = arith.mulf %285, %286 : vector<2x16x8xf32>
    %288 = vector.extract_strided_slice %280 {offsets = [0, 32], sizes = [32, 8], strides = [1, 1]} : vector<32x96xf32> to vector<32x8xf32>
    %289 = vector.shape_cast %288 : vector<32x8xf32> to vector<2x16x8xf32>
    %290 = vector.extract_strided_slice %280 {offsets = [0, 64], sizes = [32, 8], strides = [1, 1]} : vector<32x96xf32> to vector<32x8xf32>
    %291 = vector.shape_cast %290 : vector<32x8xf32> to vector<2x16x8xf32>
    %292 = arith.truncf %287 : vector<2x16x8xf32> to vector<2x16x8xbf16>
    %293 = arith.truncf %289 : vector<2x16x8xf32> to vector<2x16x8xbf16>
    "tpu.trace_start"() <{level = 10 : i32, message = "bqd,bkd->bqk"}> : () -> ()
    %cst_109 = arith.constant dense<0.000000e+00> : vector<2x16x16xf32>
    %294 = tpu.matmul %292, %293, %cst_109 {dimension_numbers = #tpu.dot_dimension_numbers<[2], [2], [1], [1], [0, 0, 0, 1, 1, 1], [0], [0]>} : vector<2x16x8xbf16>, vector<2x16x8xbf16>, vector<2x16x16xf32> -> vector<2x16x16xf32>
    "tpu.trace_stop"() : () -> ()
    %295 = arith.addf %294, %21 : vector<2x16x16xf32>
    %cst_110 = arith.constant dense<0xFF800000> : vector<2x16xf32>
    %296 = vector.multi_reduction <maximumf>, %295, %cst_110 [2] : vector<2x16x16xf32> to vector<2x16xf32>
    %297 = vector.shape_cast %296 : vector<2x16xf32> to vector<2x16x1xf32>
    %298 = vector.broadcast %297 : vector<2x16x1xf32> to vector<2x16x16xf32>
    %299 = arith.subf %295, %298 : vector<2x16x16xf32>
    %300 = math.exp %299 : vector<2x16x16xf32>
    %cst_111 = arith.constant dense<0.000000e+00> : vector<2x16xf32>
    %301 = vector.multi_reduction <add>, %300, %cst_111 [2] : vector<2x16x16xf32> to vector<2x16xf32>
    %302 = vector.shape_cast %301 : vector<2x16xf32> to vector<2x16x1xf32>
    %303 = tpu.reciprocal %302 {approx = true} : vector<2x16x1xf32> -> vector<2x16x1xf32>
    %304 = vector.broadcast %303 : vector<2x16x1xf32> to vector<2x16x16xf32>
    %305 = arith.mulf %300, %304 : vector<2x16x16xf32>
    %306 = arith.truncf %305 : vector<2x16x16xf32> to vector<2x16x16xbf16>
    %307 = arith.truncf %291 : vector<2x16x8xf32> to vector<2x16x8xbf16>
    "tpu.trace_start"() <{level = 10 : i32, message = "bqk,bkd->bqd"}> : () -> ()
    %cst_112 = arith.constant dense<0.000000e+00> : vector<2x16x8xf32>
    %308 = tpu.matmul %306, %307, %cst_112 {dimension_numbers = #tpu.dot_dimension_numbers<[2], [1], [1], [2], [0, 0, 0, 1, 1, 2], [0], [0]>} : vector<2x16x16xbf16>, vector<2x16x8xbf16>, vector<2x16x8xf32> -> vector<2x16x8xf32>
    "tpu.trace_stop"() : () -> ()
    %309 = vector.shape_cast %308 : vector<2x16x8xf32> to vector<32x8xf32>
    %310 = vector.extract_strided_slice %282 {offsets = [0, 0], sizes = [8, 32], strides = [1, 1]} : vector<32x32xf32> to vector<8x32xf32>
    %311 = arith.truncf %309 : vector<32x8xf32> to vector<32x8xbf16>
    %312 = arith.truncf %310 : vector<8x32xf32> to vector<8x32xbf16>
    %cst_113 = arith.constant dense<0.000000e+00> : vector<32x32xf32>
    %313 = tpu.matmul %311, %312, %cst_113 {dimension_numbers = #tpu.dot_dimension_numbers<[1], [0], [0], [1], [0, 0, 1, 1], [], []>} : vector<32x8xbf16>, vector<8x32xbf16>, vector<32x32xf32> -> vector<32x32xf32>
    %314 = arith.addf %283, %313 : vector<32x32xf32>
    %315 = vector.extract_strided_slice %280 {offsets = [0, 8], sizes = [32, 8], strides = [1, 1]} : vector<32x96xf32> to vector<32x8xf32>
    %316 = vector.shape_cast %315 : vector<32x8xf32> to vector<2x16x8xf32>
    %cst_114 = arith.constant 0.353553385 : f32
    %317 = vector.broadcast %cst_114 : f32 to vector<2x16x8xf32>
    %318 = arith.mulf %316, %317 : vector<2x16x8xf32>
    %319 = vector.extract_strided_slice %280 {offsets = [0, 40], sizes = [32, 8], strides = [1, 1]} : vector<32x96xf32> to vector<32x8xf32>
    %320 = vector.shape_cast %319 : vector<32x8xf32> to vector<2x16x8xf32>
    %321 = vector.extract_strided_slice %280 {offsets = [0, 72], sizes = [32, 8], strides = [1, 1]} : vector<32x96xf32> to vector<32x8xf32>
    %322 = vector.shape_cast %321 : vector<32x8xf32> to vector<2x16x8xf32>
    %323 = arith.truncf %318 : vector<2x16x8xf32> to vector<2x16x8xbf16>
    %324 = arith.truncf %320 : vector<2x16x8xf32> to vector<2x16x8xbf16>
    "tpu.trace_start"() <{level = 10 : i32, message = "bqd,bkd->bqk"}> : () -> ()
    %cst_115 = arith.constant dense<0.000000e+00> : vector<2x16x16xf32>
    %325 = tpu.matmul %323, %324, %cst_115 {dimension_numbers = #tpu.dot_dimension_numbers<[2], [2], [1], [1], [0, 0, 0, 1, 1, 1], [0], [0]>} : vector<2x16x8xbf16>, vector<2x16x8xbf16>, vector<2x16x16xf32> -> vector<2x16x16xf32>
    "tpu.trace_stop"() : () -> ()
    %326 = arith.addf %325, %21 : vector<2x16x16xf32>
    %cst_116 = arith.constant dense<0xFF800000> : vector<2x16xf32>
    %327 = vector.multi_reduction <maximumf>, %326, %cst_116 [2] : vector<2x16x16xf32> to vector<2x16xf32>
    %328 = vector.shape_cast %327 : vector<2x16xf32> to vector<2x16x1xf32>
    %329 = vector.broadcast %328 : vector<2x16x1xf32> to vector<2x16x16xf32>
    %330 = arith.subf %326, %329 : vector<2x16x16xf32>
    %331 = math.exp %330 : vector<2x16x16xf32>
    %cst_117 = arith.constant dense<0.000000e+00> : vector<2x16xf32>
    %332 = vector.multi_reduction <add>, %331, %cst_117 [2] : vector<2x16x16xf32> to vector<2x16xf32>
    %333 = vector.shape_cast %332 : vector<2x16xf32> to vector<2x16x1xf32>
    %334 = tpu.reciprocal %333 {approx = true} : vector<2x16x1xf32> -> vector<2x16x1xf32>
    %335 = vector.broadcast %334 : vector<2x16x1xf32> to vector<2x16x16xf32>
    %336 = arith.mulf %331, %335 : vector<2x16x16xf32>
    %337 = arith.truncf %336 : vector<2x16x16xf32> to vector<2x16x16xbf16>
    %338 = arith.truncf %322 : vector<2x16x8xf32> to vector<2x16x8xbf16>
    "tpu.trace_start"() <{level = 10 : i32, message = "bqk,bkd->bqd"}> : () -> ()
    %cst_118 = arith.constant dense<0.000000e+00> : vector<2x16x8xf32>
    %339 = tpu.matmul %337, %338, %cst_118 {dimension_numbers = #tpu.dot_dimension_numbers<[2], [1], [1], [2], [0, 0, 0, 1, 1, 2], [0], [0]>} : vector<2x16x16xbf16>, vector<2x16x8xbf16>, vector<2x16x8xf32> -> vector<2x16x8xf32>
    "tpu.trace_stop"() : () -> ()
    %340 = vector.shape_cast %339 : vector<2x16x8xf32> to vector<32x8xf32>
    %341 = vector.extract_strided_slice %282 {offsets = [8, 0], sizes = [8, 32], strides = [1, 1]} : vector<32x32xf32> to vector<8x32xf32>
    %342 = arith.truncf %340 : vector<32x8xf32> to vector<32x8xbf16>
    %343 = arith.truncf %341 : vector<8x32xf32> to vector<8x32xbf16>
    %cst_119 = arith.constant dense<0.000000e+00> : vector<32x32xf32>
    %344 = tpu.matmul %342, %343, %cst_119 {dimension_numbers = #tpu.dot_dimension_numbers<[1], [0], [0], [1], [0, 0, 1, 1], [], []>} : vector<32x8xbf16>, vector<8x32xbf16>, vector<32x32xf32> -> vector<32x32xf32>
    %345 = arith.addf %314, %344 : vector<32x32xf32>
    %346 = vector.extract_strided_slice %280 {offsets = [0, 16], sizes = [32, 8], strides = [1, 1]} : vector<32x96xf32> to vector<32x8xf32>
    %347 = vector.shape_cast %346 : vector<32x8xf32> to vector<2x16x8xf32>
    %cst_120 = arith.constant 0.353553385 : f32
    %348 = vector.broadcast %cst_120 : f32 to vector<2x16x8xf32>
    %349 = arith.mulf %347, %348 : vector<2x16x8xf32>
    %350 = vector.extract_strided_slice %280 {offsets = [0, 48], sizes = [32, 8], strides = [1, 1]} : vector<32x96xf32> to vector<32x8xf32>
    %351 = vector.shape_cast %350 : vector<32x8xf32> to vector<2x16x8xf32>
    %352 = vector.extract_strided_slice %280 {offsets = [0, 80], sizes = [32, 8], strides = [1, 1]} : vector<32x96xf32> to vector<32x8xf32>
    %353 = vector.shape_cast %352 : vector<32x8xf32> to vector<2x16x8xf32>
    %354 = arith.truncf %349 : vector<2x16x8xf32> to vector<2x16x8xbf16>
    %355 = arith.truncf %351 : vector<2x16x8xf32> to vector<2x16x8xbf16>
    "tpu.trace_start"() <{level = 10 : i32, message = "bqd,bkd->bqk"}> : () -> ()
    %cst_121 = arith.constant dense<0.000000e+00> : vector<2x16x16xf32>
    %356 = tpu.matmul %354, %355, %cst_121 {dimension_numbers = #tpu.dot_dimension_numbers<[2], [2], [1], [1], [0, 0, 0, 1, 1, 1], [0], [0]>} : vector<2x16x8xbf16>, vector<2x16x8xbf16>, vector<2x16x16xf32> -> vector<2x16x16xf32>
    "tpu.trace_stop"() : () -> ()
    %357 = arith.addf %356, %21 : vector<2x16x16xf32>
    %cst_122 = arith.constant dense<0xFF800000> : vector<2x16xf32>
    %358 = vector.multi_reduction <maximumf>, %357, %cst_122 [2] : vector<2x16x16xf32> to vector<2x16xf32>
    %359 = vector.shape_cast %358 : vector<2x16xf32> to vector<2x16x1xf32>
    %360 = vector.broadcast %359 : vector<2x16x1xf32> to vector<2x16x16xf32>
    %361 = arith.subf %357, %360 : vector<2x16x16xf32>
    %362 = math.exp %361 : vector<2x16x16xf32>
    %cst_123 = arith.constant dense<0.000000e+00> : vector<2x16xf32>
    %363 = vector.multi_reduction <add>, %362, %cst_123 [2] : vector<2x16x16xf32> to vector<2x16xf32>
    %364 = vector.shape_cast %363 : vector<2x16xf32> to vector<2x16x1xf32>
    %365 = tpu.reciprocal %364 {approx = true} : vector<2x16x1xf32> -> vector<2x16x1xf32>
    %366 = vector.broadcast %365 : vector<2x16x1xf32> to vector<2x16x16xf32>
    %367 = arith.mulf %362, %366 : vector<2x16x16xf32>
    %368 = arith.truncf %367 : vector<2x16x16xf32> to vector<2x16x16xbf16>
    %369 = arith.truncf %353 : vector<2x16x8xf32> to vector<2x16x8xbf16>
    "tpu.trace_start"() <{level = 10 : i32, message = "bqk,bkd->bqd"}> : () -> ()
    %cst_124 = arith.constant dense<0.000000e+00> : vector<2x16x8xf32>
    %370 = tpu.matmul %368, %369, %cst_124 {dimension_numbers = #tpu.dot_dimension_numbers<[2], [1], [1], [2], [0, 0, 0, 1, 1, 2], [0], [0]>} : vector<2x16x16xbf16>, vector<2x16x8xbf16>, vector<2x16x8xf32> -> vector<2x16x8xf32>
    "tpu.trace_stop"() : () -> ()
    %371 = vector.shape_cast %370 : vector<2x16x8xf32> to vector<32x8xf32>
    %372 = vector.extract_strided_slice %282 {offsets = [16, 0], sizes = [8, 32], strides = [1, 1]} : vector<32x32xf32> to vector<8x32xf32>
    %373 = arith.truncf %371 : vector<32x8xf32> to vector<32x8xbf16>
    %374 = arith.truncf %372 : vector<8x32xf32> to vector<8x32xbf16>
    %cst_125 = arith.constant dense<0.000000e+00> : vector<32x32xf32>
    %375 = tpu.matmul %373, %374, %cst_125 {dimension_numbers = #tpu.dot_dimension_numbers<[1], [0], [0], [1], [0, 0, 1, 1], [], []>} : vector<32x8xbf16>, vector<8x32xbf16>, vector<32x32xf32> -> vector<32x32xf32>
    %376 = arith.addf %345, %375 : vector<32x32xf32>
    %377 = vector.extract_strided_slice %280 {offsets = [0, 24], sizes = [32, 8], strides = [1, 1]} : vector<32x96xf32> to vector<32x8xf32>
    %378 = vector.shape_cast %377 : vector<32x8xf32> to vector<2x16x8xf32>
    %cst_126 = arith.constant 0.353553385 : f32
    %379 = vector.broadcast %cst_126 : f32 to vector<2x16x8xf32>
    %380 = arith.mulf %378, %379 : vector<2x16x8xf32>
    %381 = vector.extract_strided_slice %280 {offsets = [0, 56], sizes = [32, 8], strides = [1, 1]} : vector<32x96xf32> to vector<32x8xf32>
    %382 = vector.shape_cast %381 : vector<32x8xf32> to vector<2x16x8xf32>
    %383 = vector.extract_strided_slice %280 {offsets = [0, 88], sizes = [32, 8], strides = [1, 1]} : vector<32x96xf32> to vector<32x8xf32>
    %384 = vector.shape_cast %383 : vector<32x8xf32> to vector<2x16x8xf32>
    %385 = arith.truncf %380 : vector<2x16x8xf32> to vector<2x16x8xbf16>
    %386 = arith.truncf %382 : vector<2x16x8xf32> to vector<2x16x8xbf16>
    "tpu.trace_start"() <{level = 10 : i32, message = "bqd,bkd->bqk"}> : () -> ()
    %cst_127 = arith.constant dense<0.000000e+00> : vector<2x16x16xf32>
    %387 = tpu.matmul %385, %386, %cst_127 {dimension_numbers = #tpu.dot_dimension_numbers<[2], [2], [1], [1], [0, 0, 0, 1, 1, 1], [0], [0]>} : vector<2x16x8xbf16>, vector<2x16x8xbf16>, vector<2x16x16xf32> -> vector<2x16x16xf32>
    "tpu.trace_stop"() : () -> ()
    %388 = arith.addf %387, %21 : vector<2x16x16xf32>
    %cst_128 = arith.constant dense<0xFF800000> : vector<2x16xf32>
    %389 = vector.multi_reduction <maximumf>, %388, %cst_128 [2] : vector<2x16x16xf32> to vector<2x16xf32>
    %390 = vector.shape_cast %389 : vector<2x16xf32> to vector<2x16x1xf32>
    %391 = vector.broadcast %390 : vector<2x16x1xf32> to vector<2x16x16xf32>
    %392 = arith.subf %388, %391 : vector<2x16x16xf32>
    %393 = math.exp %392 : vector<2x16x16xf32>
    %cst_129 = arith.constant dense<0.000000e+00> : vector<2x16xf32>
    %394 = vector.multi_reduction <add>, %393, %cst_129 [2] : vector<2x16x16xf32> to vector<2x16xf32>
    %395 = vector.shape_cast %394 : vector<2x16xf32> to vector<2x16x1xf32>
    %396 = tpu.reciprocal %395 {approx = true} : vector<2x16x1xf32> -> vector<2x16x1xf32>
    %397 = vector.broadcast %396 : vector<2x16x1xf32> to vector<2x16x16xf32>
    %398 = arith.mulf %393, %397 : vector<2x16x16xf32>
    %399 = arith.truncf %398 : vector<2x16x16xf32> to vector<2x16x16xbf16>
    %400 = arith.truncf %384 : vector<2x16x8xf32> to vector<2x16x8xbf16>
    "tpu.trace_start"() <{level = 10 : i32, message = "bqk,bkd->bqd"}> : () -> ()
    %cst_130 = arith.constant dense<0.000000e+00> : vector<2x16x8xf32>
    %401 = tpu.matmul %399, %400, %cst_130 {dimension_numbers = #tpu.dot_dimension_numbers<[2], [1], [1], [2], [0, 0, 0, 1, 1, 2], [0], [0]>} : vector<2x16x16xbf16>, vector<2x16x8xbf16>, vector<2x16x8xf32> -> vector<2x16x8xf32>
    "tpu.trace_stop"() : () -> ()
    %402 = vector.shape_cast %401 : vector<2x16x8xf32> to vector<32x8xf32>
    %403 = vector.extract_strided_slice %282 {offsets = [24, 0], sizes = [8, 32], strides = [1, 1]} : vector<32x32xf32> to vector<8x32xf32>
    %404 = arith.truncf %402 : vector<32x8xf32> to vector<32x8xbf16>
    %405 = arith.truncf %403 : vector<8x32xf32> to vector<8x32xbf16>
    %cst_131 = arith.constant dense<0.000000e+00> : vector<32x32xf32>
    %406 = tpu.matmul %404, %405, %cst_131 {dimension_numbers = #tpu.dot_dimension_numbers<[1], [0], [0], [1], [0, 0, 1, 1], [], []>} : vector<32x8xbf16>, vector<8x32xbf16>, vector<32x32xf32> -> vector<32x32xf32>
    %407 = arith.addf %376, %406 : vector<32x32xf32>
    %c1_132 = arith.constant 1 : index
    %c0_133 = arith.constant 0 : index
    %c0_134 = arith.constant 0 : index
    %408 = vector.load %arg9[%c1_132, %c0_133, %c0_134] : memref<2x1x32xf32, #tpu.memory_space<vmem>>, vector<1x1x32xf32>
    %409 = vector.shape_cast %408 : vector<1x1x32xf32> to vector<1x32xf32>
    %410 = vector.broadcast %409 : vector<1x32xf32> to vector<32x32xf32>
    %411 = arith.addf %407, %410 : vector<32x32xf32>
    %412 = arith.addf %271, %411 : vector<32x32xf32>
    %c1_135 = arith.constant 1 : index
    %c0_136 = arith.constant 0 : index
    %c0_137 = arith.constant 0 : index
    %413 = vector.load %arg10[%c1_135, %c0_136, %c0_137] : memref<2x1x32xf32, #tpu.memory_space<vmem>>, vector<1x1x32xf32>
    %414 = vector.shape_cast %413 : vector<1x1x32xf32> to vector<1x32xf32>
    %c1_138 = arith.constant 1 : index
    %c0_139 = arith.constant 0 : index
    %c0_140 = arith.constant 0 : index
    %415 = vector.load %arg11[%c1_138, %c0_139, %c0_140] : memref<2x1x32xf32, #tpu.memory_space<vmem>>, vector<1x1x32xf32>
    %416 = vector.shape_cast %415 : vector<1x1x32xf32> to vector<1x32xf32>
    %cst_141 = arith.constant dense<0.000000e+00> : vector<32xf32>
    %417 = vector.multi_reduction <add>, %412, %cst_141 [1] : vector<32x32xf32> to vector<32xf32>
    %418 = vector.shape_cast %417 : vector<32xf32> to vector<32x1xf32>
    %cst_142 = arith.constant 3.200000e+01 : f32
    %419 = vector.broadcast %cst_142 : f32 to vector<32x1xf32>
    %420 = arith.divf %418, %419 : vector<32x1xf32>
    %421 = vector.broadcast %420 : vector<32x1xf32> to vector<32x32xf32>
    %422 = arith.subf %412, %421 : vector<32x32xf32>
    %423 = arith.mulf %422, %422 : vector<32x32xf32>
    %cst_143 = arith.constant dense<0.000000e+00> : vector<32xf32>
    %424 = vector.multi_reduction <add>, %423, %cst_143 [1] : vector<32x32xf32> to vector<32xf32>
    %425 = vector.shape_cast %424 : vector<32xf32> to vector<32x1xf32>
    %cst_144 = arith.constant 3.200000e+01 : f32
    %426 = vector.broadcast %cst_144 : f32 to vector<32x1xf32>
    %427 = arith.divf %425, %426 : vector<32x1xf32>
    %428 = vector.broadcast %420 : vector<32x1xf32> to vector<32x32xf32>
    %429 = arith.subf %412, %428 : vector<32x32xf32>
    %cst_145 = arith.constant 9.99999974E-6 : f32
    %430 = vector.broadcast %cst_145 : f32 to vector<32x1xf32>
    %431 = arith.addf %427, %430 : vector<32x1xf32>
    %432 = math.rsqrt %431 : vector<32x1xf32>
    %433 = vector.broadcast %432 : vector<32x1xf32> to vector<32x32xf32>
    %434 = arith.mulf %429, %433 : vector<32x32xf32>
    %435 = vector.broadcast %414 : vector<1x32xf32> to vector<32x32xf32>
    %436 = arith.mulf %434, %435 : vector<32x32xf32>
    %437 = vector.broadcast %416 : vector<1x32xf32> to vector<32x32xf32>
    %438 = arith.addf %436, %437 : vector<32x32xf32>
    %c1_146 = arith.constant 1 : index
    %c0_147 = arith.constant 0 : index
    %c0_148 = arith.constant 0 : index
    %439 = vector.load %arg12[%c1_146, %c0_147, %c0_148] : memref<2x32x64xf32, #tpu.memory_space<vmem>>, vector<1x32x64xf32>
    %440 = vector.shape_cast %439 : vector<1x32x64xf32> to vector<32x64xf32>
    %441 = arith.truncf %438 : vector<32x32xf32> to vector<32x32xbf16>
    %442 = arith.truncf %440 : vector<32x64xf32> to vector<32x64xbf16>
    %cst_149 = arith.constant dense<0.000000e+00> : vector<32x64xf32>
    %443 = tpu.matmul %441, %442, %cst_149 {dimension_numbers = #tpu.dot_dimension_numbers<[1], [0], [0], [1], [0, 0, 1, 1], [], []>} : vector<32x32xbf16>, vector<32x64xbf16>, vector<32x64xf32> -> vector<32x64xf32>
    %c1_150 = arith.constant 1 : index
    %c0_151 = arith.constant 0 : index
    %c0_152 = arith.constant 0 : index
    %444 = vector.load %arg13[%c1_150, %c0_151, %c0_152] : memref<2x1x64xf32, #tpu.memory_space<vmem>>, vector<1x1x64xf32>
    %445 = vector.shape_cast %444 : vector<1x1x64xf32> to vector<1x64xf32>
    %446 = vector.broadcast %445 : vector<1x64xf32> to vector<32x64xf32>
    %447 = arith.addf %443, %446 : vector<32x64xf32>
    %cst_153 = arith.constant 5.000000e-01 : f32
    %448 = vector.broadcast %cst_153 : f32 to vector<32x64xf32>
    %449 = arith.mulf %448, %447 : vector<32x64xf32>
    %cst_154 = arith.constant 4.471500e-02 : f32
    %450 = vector.broadcast %cst_154 : f32 to vector<32x64xf32>
    %451 = arith.mulf %450, %447 : vector<32x64xf32>
    %452 = arith.mulf %451, %447 : vector<32x64xf32>
    %453 = arith.mulf %452, %447 : vector<32x64xf32>
    %454 = arith.addf %447, %453 : vector<32x64xf32>
    %cst_155 = arith.constant 0.797884583 : f32
    %455 = vector.broadcast %cst_155 : f32 to vector<32x64xf32>
    %456 = arith.mulf %455, %454 : vector<32x64xf32>
    %457 = math.tanh %456 : vector<32x64xf32>
    %cst_156 = arith.constant 1.000000e+00 : f32
    %458 = vector.broadcast %cst_156 : f32 to vector<32x64xf32>
    %459 = arith.addf %458, %457 : vector<32x64xf32>
    %460 = arith.mulf %449, %459 : vector<32x64xf32>
    %c1_157 = arith.constant 1 : index
    %c0_158 = arith.constant 0 : index
    %c0_159 = arith.constant 0 : index
    %461 = vector.load %arg14[%c1_157, %c0_158, %c0_159] : memref<2x64x32xf32, #tpu.memory_space<vmem>>, vector<1x64x32xf32>
    %462 = vector.shape_cast %461 : vector<1x64x32xf32> to vector<64x32xf32>
    %463 = arith.truncf %460 : vector<32x64xf32> to vector<32x64xbf16>
    %464 = arith.truncf %462 : vector<64x32xf32> to vector<64x32xbf16>
    %cst_160 = arith.constant dense<0.000000e+00> : vector<32x32xf32>
    %465 = tpu.matmul %463, %464, %cst_160 {dimension_numbers = #tpu.dot_dimension_numbers<[1], [0], [0], [1], [0, 0, 1, 1], [], []>} : vector<32x64xbf16>, vector<64x32xbf16>, vector<32x32xf32> -> vector<32x32xf32>
    %c1_161 = arith.constant 1 : index
    %c0_162 = arith.constant 0 : index
    %c0_163 = arith.constant 0 : index
    %466 = vector.load %arg15[%c1_161, %c0_162, %c0_163] : memref<2x1x32xf32, #tpu.memory_space<vmem>>, vector<1x1x32xf32>
    %467 = vector.shape_cast %466 : vector<1x1x32xf32> to vector<1x32xf32>
    %468 = vector.broadcast %467 : vector<1x32xf32> to vector<32x32xf32>
    %469 = arith.addf %465, %468 : vector<32x32xf32>
    %470 = arith.addf %438, %469 : vector<32x32xf32>
    %c1_164 = arith.constant 1 : index
    %c0_165 = arith.constant 0 : index
    %c0_166 = arith.constant 0 : index
    %471 = vector.load %arg16[%c1_164, %c0_165, %c0_166] : memref<2x1x32xf32, #tpu.memory_space<vmem>>, vector<1x1x32xf32>
    %472 = vector.shape_cast %471 : vector<1x1x32xf32> to vector<1x32xf32>
    %c1_167 = arith.constant 1 : index
    %c0_168 = arith.constant 0 : index
    %c0_169 = arith.constant 0 : index
    %473 = vector.load %arg17[%c1_167, %c0_168, %c0_169] : memref<2x1x32xf32, #tpu.memory_space<vmem>>, vector<1x1x32xf32>
    %474 = vector.shape_cast %473 : vector<1x1x32xf32> to vector<1x32xf32>
    %cst_170 = arith.constant dense<0.000000e+00> : vector<32xf32>
    %475 = vector.multi_reduction <add>, %470, %cst_170 [1] : vector<32x32xf32> to vector<32xf32>
    %476 = vector.shape_cast %475 : vector<32xf32> to vector<32x1xf32>
    %cst_171 = arith.constant 3.200000e+01 : f32
    %477 = vector.broadcast %cst_171 : f32 to vector<32x1xf32>
    %478 = arith.divf %476, %477 : vector<32x1xf32>
    %479 = vector.broadcast %478 : vector<32x1xf32> to vector<32x32xf32>
    %480 = arith.subf %470, %479 : vector<32x32xf32>
    %481 = arith.mulf %480, %480 : vector<32x32xf32>
    %cst_172 = arith.constant dense<0.000000e+00> : vector<32xf32>
    %482 = vector.multi_reduction <add>, %481, %cst_172 [1] : vector<32x32xf32> to vector<32xf32>
    %483 = vector.shape_cast %482 : vector<32xf32> to vector<32x1xf32>
    %cst_173 = arith.constant 3.200000e+01 : f32
    %484 = vector.broadcast %cst_173 : f32 to vector<32x1xf32>
    %485 = arith.divf %483, %484 : vector<32x1xf32>
    %486 = vector.broadcast %478 : vector<32x1xf32> to vector<32x32xf32>
    %487 = arith.subf %470, %486 : vector<32x32xf32>
    %cst_174 = arith.constant 9.99999974E-6 : f32
    %488 = vector.broadcast %cst_174 : f32 to vector<32x1xf32>
    %489 = arith.addf %485, %488 : vector<32x1xf32>
    %490 = math.rsqrt %489 : vector<32x1xf32>
    %491 = vector.broadcast %490 : vector<32x1xf32> to vector<32x32xf32>
    %492 = arith.mulf %487, %491 : vector<32x32xf32>
    %493 = vector.broadcast %472 : vector<1x32xf32> to vector<32x32xf32>
    %494 = arith.mulf %492, %493 : vector<32x32xf32>
    %495 = vector.broadcast %474 : vector<1x32xf32> to vector<32x32xf32>
    %496 = arith.addf %494, %495 : vector<32x32xf32>
    %497 = vector.extract_strided_slice %496 {offsets = [0, 0], sizes = [1, 32], strides = [1, 1]} : vector<32x32xf32> to vector<1x32xf32>
    %498 = vector.extract_strided_slice %496 {offsets = [16, 0], sizes = [1, 32], strides = [1, 1]} : vector<32x32xf32> to vector<1x32xf32>
    %499 = tpu.concatenate %497, %498 in 0 : vector<1x32xf32>, vector<1x32xf32> -> vector<2x32xf32>
    %c0_175 = arith.constant 0 : index
    %c0_176 = arith.constant 0 : index
    %500 = vector.load %arg18[%c0_175, %c0_176] : memref<32x32xf32, #tpu.memory_space<vmem>>, vector<32x32xf32>
    %501 = arith.truncf %499 : vector<2x32xf32> to vector<2x32xbf16>
    %502 = arith.truncf %500 : vector<32x32xf32> to vector<32x32xbf16>
    %cst_177 = arith.constant dense<0.000000e+00> : vector<2x32xf32>
    %503 = tpu.matmul %501, %502, %cst_177 {dimension_numbers = #tpu.dot_dimension_numbers<[1], [0], [0], [1], [0, 0, 1, 1], [], []>} : vector<2x32xbf16>, vector<32x32xbf16>, vector<2x32xf32> -> vector<2x32xf32>
    %c0_178 = arith.constant 0 : index
    %c0_179 = arith.constant 0 : index
    %504 = vector.load %arg19[%c0_178, %c0_179] : memref<1x32xf32, #tpu.memory_space<vmem>>, vector<1x32xf32>
    %505 = vector.broadcast %504 : vector<1x32xf32> to vector<2x32xf32>
    %506 = arith.addf %503, %505 : vector<2x32xf32>
    %507 = math.tanh %506 : vector<2x32xf32>
    %c0_180 = arith.constant 0 : index
    %c0_181 = arith.constant 0 : index
    %508 = vector.load %arg20[%c0_180, %c0_181] : memref<32x5xf32, #tpu.memory_space<vmem>>, vector<32x5xf32>
    %509 = arith.truncf %507 : vector<2x32xf32> to vector<2x32xbf16>
    %510 = arith.truncf %508 : vector<32x5xf32> to vector<32x5xbf16>
    %cst_182 = arith.constant dense<0.000000e+00> : vector<2x5xf32>
    %511 = tpu.matmul %509, %510, %cst_182 {dimension_numbers = #tpu.dot_dimension_numbers<[1], [0], [0], [1], [0, 0, 1, 1], [], []>} : vector<2x32xbf16>, vector<32x5xbf16>, vector<2x5xf32> -> vector<2x5xf32>
    %c0_183 = arith.constant 0 : index
    %c0_184 = arith.constant 0 : index
    %512 = vector.load %arg21[%c0_183, %c0_184] : memref<1x5xf32, #tpu.memory_space<vmem>>, vector<1x5xf32>
    %513 = vector.broadcast %512 : vector<1x5xf32> to vector<2x5xf32>
    %514 = arith.addf %511, %513 : vector<2x5xf32>
    %c0_185 = arith.constant 0 : index
    %c0_186 = arith.constant 0 : index
    %515 = vector.load %arg22[%c0_185, %c0_186] : memref<2x5xf32, #tpu.memory_space<vmem>>, vector<2x5xf32>
    tpu.vector_store %arg22[%c0_185, %c0_186], %514 {strides = array<i32>} : memref<2x5xf32, #tpu.memory_space<vmem>>, vector<2x5xf32>,
    return
  }
}

</mosaic_0001>

<llo_original>
// kernel: longformer_articles_labeling_forward.1
$region0: #{longformer_articles_labeling_forward.1}
  #allocation0 [shape = 'u32[]', space=smem, size = 0x4, offset = 0x4, fixed_abs, tag = 'smem constant byte address 0x4 - core index']
  #allocation1 [shape = 'u32[144,128]{1,0:T(1,128)}', space=vmem, size = 0x12000, scoped, tag = 'internal scratch']
  %s0 = inlined_call_operand.vmem [shape: f32[32,32], index: 0, kind: input, shape index: {}]
  %s1 = inlined_call_operand.vmem [shape: f32[2,1,16], index: 1, kind: input, shape index: {}]
  %s2 = inlined_call_operand.vmem [shape: f32[2,16,1], index: 2, kind: input, shape index: {}]
  %s3 = inlined_call_operand.vmem [shape: f32[2,1,16], index: 3, kind: input, shape index: {}]
  %s4 = inlined_call_operand.vmem [shape: f32[1,32], index: 4, kind: input, shape index: {}]
  %s5 = inlined_call_operand.vmem [shape: f32[1,32], index: 5, kind: input, shape index: {}]
  %s6 = inlined_call_operand.vmem [shape: f32[2,32,96], index: 6, kind: input, shape index: {}]
  %s7 = inlined_call_operand.vmem [shape: f32[2,1,96], index: 7, kind: input, shape index: {}]
  %s8 = inlined_call_operand.vmem [shape: f32[2,32,32], index: 8, kind: input, shape index: {}]
  %s9 = inlined_call_operand.vmem [shape: f32[2,1,32], index: 9, kind: input, shape index: {}]
  %s10 = inlined_call_operand.vmem [shape: f32[2,1,32], index: 10, kind: input, shape index: {}]
  %s11 = inlined_call_operand.vmem [shape: f32[2,1,32], index: 11, kind: input, shape index: {}]
  %s12 = inlined_call_operand.vmem [shape: f32[2,32,64], index: 12, kind: input, shape index: {}]
  %s13 = inlined_call_operand.vmem [shape: f32[2,1,64], index: 13, kind: input, shape index: {}]
  %s14 = inlined_call_operand.vmem [shape: f32[2,64,32], index: 14, kind: input, shape index: {}]
  %s15 = inlined_call_operand.vmem [shape: f32[2,1,32], index: 15, kind: input, shape index: {}]
  %s16 = inlined_call_operand.vmem [shape: f32[2,1,32], index: 16, kind: input, shape index: {}]
  %s17 = inlined_call_operand.vmem [shape: f32[2,1,32], index: 17, kind: input, shape index: {}]
  %s18 = inlined_call_operand.vmem [shape: f32[32,32], index: 18, kind: input, shape index: {}]
  %s19 = inlined_call_operand.vmem [shape: f32[1,32], index: 19, kind: input, shape index: {}]
  %s20 = inlined_call_operand.vmem [shape: f32[32,5], index: 20, kind: input, shape index: {}]
  %s21 = inlined_call_operand.vmem [shape: f32[1,5], index: 21, kind: input, shape index: {}]
  %s22 = inlined_call_operand.hbm [shape: f32[2,5], index: 22, kind: output, shape index: {}]
  %s23 = sld [smem:[#allocation0]]
  $region98: #{longformer_articles_labeling_forward.1} parent=0
    _
  %s25 = ssub.s32 1, %s23
  %s26 = scalar_select 0, %s25, %s23
  $region1: #{longformer_articles_labeling_forward.1} parent=0
    #allocation2 [shape = 'u8[1024]{0}', space=vmem, size = 0x400, scoped, tag = 'output window, operand 0, single buffered']
    #allocation3 [shape = 's32[1]{0}', space=sflag, size = 0x4, scoped, tag = 'scoped memory for longformer_articles_labeling_forward.1']
    %27 = vsyncpa [#allocation3], 0
    // Predicated region
    $region2: #{longformer_articles_labeling_forward.1} parent=1 // pred_check
      _
    $region3: #{longformer_articles_labeling_forward.1} parent=1 // pred_check_branch
      %29 = sbr.rel (0) target = $region5
    $region4: #{longformer_articles_labeling_forward.1} parent=1 // pred_region
      _
    $region5: #{longformer_articles_labeling_forward.1} parent=1 // pred_fallthru
      _
    // Predicated region
    $region6: #{longformer_articles_labeling_forward.1} parent=1 // pred_check
      _
    $region7: #{longformer_articles_labeling_forward.1} parent=1 // pred_check_branch
      %31 = sbr.rel (0) target = $region9
    $region8: #{longformer_articles_labeling_forward.1} parent=1 // pred_region
      _
    $region9: #{longformer_articles_labeling_forward.1} parent=1 // pred_fallthru
      _
    // Predicated region
    $region10: #{longformer_articles_labeling_forward.1} parent=1 // pred_check
      _
    $region11: #{longformer_articles_labeling_forward.1} parent=1 // pred_check_branch
      %33 = sbr.rel (0) target = $region13
    $region12: #{longformer_articles_labeling_forward.1} parent=1 // pred_region
      _
    $region13: #{longformer_articles_labeling_forward.1} parent=1 // pred_fallthru
      _
    // Predicated region
    $region14: #{longformer_articles_labeling_forward.1} parent=1 // pred_check
      _
    $region15: #{longformer_articles_labeling_forward.1} parent=1 // pred_check_branch
      %35 = sbr.rel (0) target = $region17
    $region16: #{longformer_articles_labeling_forward.1} parent=1 // pred_region
      _
    $region17: #{longformer_articles_labeling_forward.1} parent=1 // pred_fallthru
      _
    // Predicated region
    $region18: #{longformer_articles_labeling_forward.1} parent=1 // pred_check
      _
    $region19: #{longformer_articles_labeling_forward.1} parent=1 // pred_check_branch
      %37 = sbr.rel (0) target = $region21
    $region20: #{longformer_articles_labeling_forward.1} parent=1 // pred_region
      _
    $region21: #{longformer_articles_labeling_forward.1} parent=1 // pred_fallthru
      _
    // Predicated region
    $region22: #{longformer_articles_labeling_forward.1} parent=1 // pred_check
      _
    $region23: #{longformer_articles_labeling_forward.1} parent=1 // pred_check_branch
      %39 = sbr.rel (0) target = $region25
    $region24: #{longformer_articles_labeling_forward.1} parent=1 // pred_region
      _
    $region25: #{longformer_articles_labeling_forward.1} parent=1 // pred_fallthru
      _
    // Predicated region
    $region26: #{longformer_articles_labeling_forward.1} parent=1 // pred_check
      _
    $region27: #{longformer_articles_labeling_forward.1} parent=1 // pred_check_branch
      %41 = sbr.rel (0) target = $region29
    $region28: #{longformer_articles_labeling_forward.1} parent=1 // pred_region
      _
    $region29: #{longformer_articles_labeling_forward.1} parent=1 // pred_fallthru
      _
    // Predicated region
    $region30: #{longformer_articles_labeling_forward.1} parent=1 // pred_check
      _
    $region31: #{longformer_articles_labeling_forward.1} parent=1 // pred_check_branch
      %43 = sbr.rel (0) target = $region33
    $region32: #{longformer_articles_labeling_forward.1} parent=1 // pred_region
      _
    $region33: #{longformer_articles_labeling_forward.1} parent=1 // pred_fallthru
      _
    // Predicated region
    $region34: #{longformer_articles_labeling_forward.1} parent=1 // pred_check
      _
    $region35: #{longformer_articles_labeling_forward.1} parent=1 // pred_check_branch
      %45 = sbr.rel (0) target = $region37
    $region36: #{longformer_articles_labeling_forward.1} parent=1 // pred_region
      _
    $region37: #{longformer_articles_labeling_forward.1} parent=1 // pred_fallthru
      _
    // Predicated region
    $region38: #{longformer_articles_labeling_forward.1} parent=1 // pred_check
      _
    $region39: #{longformer_articles_labeling_forward.1} parent=1 // pred_check_branch
      %47 = sbr.rel (0) target = $region41
    $region40: #{longformer_articles_labeling_forward.1} parent=1 // pred_region
      _
    $region41: #{longformer_articles_labeling_forward.1} parent=1 // pred_fallthru
      _
    // Predicated region
    $region42: #{longformer_articles_labeling_forward.1} parent=1 // pred_check
      _
    $region43: #{longformer_articles_labeling_forward.1} parent=1 // pred_check_branch
      %49 = sbr.rel (0) target = $region45
    $region44: #{longformer_articles_labeling_forward.1} parent=1 // pred_region
      _
    $region45: #{longformer_articles_labeling_forward.1} parent=1 // pred_fallthru
      _
    // Predicated region
    $region46: #{longformer_articles_labeling_forward.1} parent=1 // pred_check
      _
    $region47: #{longformer_articles_labeling_forward.1} parent=1 // pred_check_branch
      %51 = sbr.rel (0) target = $region49
    $region48: #{longformer_articles_labeling_forward.1} parent=1 // pred_region
      _
    $region49: #{longformer_articles_labeling_forward.1} parent=1 // pred_fallthru
      _
    // Predicated region
    $region50: #{longformer_articles_labeling_forward.1} parent=1 // pred_check
      _
    $region51: #{longformer_articles_labeling_forward.1} parent=1 // pred_check_branch
      %53 = sbr.rel (0) target = $region53
    $region52: #{longformer_articles_labeling_forward.1} parent=1 // pred_region
      _
    $region53: #{longformer_articles_labeling_forward.1} parent=1 // pred_fallthru
      _
    // Predicated region
    $region54: #{longformer_articles_labeling_forward.1} parent=1 // pred_check
      _
    $region55: #{longformer_articles_labeling_forward.1} parent=1 // pred_check_branch
      %55 = sbr.rel (0) target = $region57
    $region56: #{longformer_articles_labeling_forward.1} parent=1 // pred_region
      _
    $region57: #{longformer_articles_labeling_forward.1} parent=1 // pred_fallthru
      _
    // Predicated region
    $region58: #{longformer_articles_labeling_forward.1} parent=1 // pred_check
      _
    $region59: #{longformer_articles_labeling_forward.1} parent=1 // pred_check_branch
      %57 = sbr.rel (0) target = $region61
    $region60: #{longformer_articles_labeling_forward.1} parent=1 // pred_region
      _
    $region61: #{longformer_articles_labeling_forward.1} parent=1 // pred_fallthru
      _
    // Predicated region
    $region62: #{longformer_articles_labeling_forward.1} parent=1 // pred_check
      _
    $region63: #{longformer_articles_labeling_forward.1} parent=1 // pred_check_branch
      %59 = sbr.rel (0) target = $region65
    $region64: #{longformer_articles_labeling_forward.1} parent=1 // pred_region
      _
    $region65: #{longformer_articles_labeling_forward.1} parent=1 // pred_fallthru
      _
    // Predicated region
    $region66: #{longformer_articles_labeling_forward.1} parent=1 // pred_check
      _
    $region67: #{longformer_articles_labeling_forward.1} parent=1 // pred_check_branch
      %61 = sbr.rel (0) target = $region69
    $region68: #{longformer_articles_labeling_forward.1} parent=1 // pred_region
      _
    $region69: #{longformer_articles_labeling_forward.1} parent=1 // pred_fallthru
      _
    // Predicated region
    $region70: #{longformer_articles_labeling_forward.1} parent=1 // pred_check
      _
    $region71: #{longformer_articles_labeling_forward.1} parent=1 // pred_check_branch
      %63 = sbr.rel (0) target = $region73
    $region72: #{longformer_articles_labeling_forward.1} parent=1 // pred_region
      _
    $region73: #{longformer_articles_labeling_forward.1} parent=1 // pred_fallthru
      _
    // Predicated region
    $region74: #{longformer_articles_labeling_forward.1} parent=1 // pred_check
      _
    $region75: #{longformer_articles_labeling_forward.1} parent=1 // pred_check_branch
      %65 = sbr.rel (0) target = $region77
    $region76: #{longformer_articles_labeling_forward.1} parent=1 // pred_region
      _
    $region77: #{longformer_articles_labeling_forward.1} parent=1 // pred_fallthru
      _
    // Predicated region
    $region78: #{longformer_articles_labeling_forward.1} parent=1 // pred_check
      _
    $region79: #{longformer_articles_labeling_forward.1} parent=1 // pred_check_branch
      %67 = sbr.rel (0) target = $region81
    $region80: #{longformer_articles_labeling_forward.1} parent=1 // pred_region
      _
    $region81: #{longformer_articles_labeling_forward.1} parent=1 // pred_fallthru
      _
    // Predicated region
    $region82: #{longformer_articles_labeling_forward.1} parent=1 // pred_check
      _
    $region83: #{longformer_articles_labeling_forward.1} parent=1 // pred_check_branch
      %69 = sbr.rel (0) target = $region85
    $region84: #{longformer_articles_labeling_forward.1} parent=1 // pred_region
      _
    $region85: #{longformer_articles_labeling_forward.1} parent=1 // pred_fallthru
      _
    // Predicated region
    $region86: #{longformer_articles_labeling_forward.1} parent=1 // pred_check
      _
    $region87: #{longformer_articles_labeling_forward.1} parent=1 // pred_check_branch
      %71 = sbr.rel (0) target = $region89
    $region88: #{longformer_articles_labeling_forward.1} parent=1 // pred_region
      _
    $region89: #{longformer_articles_labeling_forward.1} parent=1 // pred_fallthru
      _
    %v73 = vlaneseq
    %v74 = vshrl.u32 %v73, 7
    %v75 = vadd.s32 %v74, 8
    %v76 = vlaneseq
    %v77 = vand.u32 %v76, 127
    %v78 = vsub.s32 %v74, %v77
    %v79 = vsub.s32 %v75, %v77
    %vm80 = vcmp.lt.s32.totalorder %v78, 0
    %v81 = vsub.s32 0, %v78
    %v82 = vsel %vm80, %v81, %v78
    %vm83 = vcmp.lt.s32.totalorder %v79, 0
    %v84 = vsub.s32 0, %v79
    %v85 = vsel %vm83, %v84, %v79
    %vm86 = vcmp.le.s32.totalorder %v82, 2
    %vm87 = vcmp.le.s32.totalorder %v85, 2
    %v88 = vsel %vm86, 1, 0
    %v89 = vsel %vm87, 1, 0
    %v90 = vcvt.s32.f32 %v88
    %v91 = vcvt.s32.f32 %v89
    %v92 = vld [vmem:[%s2] sm:$0xff]
    %v93 = vld [vmem:[%s2 + $0x8] sm:$0xff]
    %v94 = vld [vmem:[%s2 + $0x10] sm:$0xff]
    %v95 = vld [vmem:[%s2 + $0x18] sm:$0xff]
    %97 = vset.pattern.permute.xlu0 0
    %98 = vperm.xlu0 %97, %v92
    %v99 = vpop.permute.xlu0 %98
    %102 = vset.pattern.permute.xlu0 0
    %103 = vperm.xlu0 %102, %v93
    %v104 = vpop.permute.xlu0 %103
    %107 = vset.pattern.permute.xlu0 0
    %108 = vperm.xlu0 %107, %v94
    %v109 = vpop.permute.xlu0 %108
    %112 = vset.pattern.permute.xlu0 0
    %113 = vperm.xlu0 %112, %v95
    %v114 = vpop.permute.xlu0 %113
    %v116 = vmax.f32 %v90, %v99
    %v117 = vmax.f32 %v91, %v104
    %v118 = vmax.f32 %v90, %v109
    %v119 = vmax.f32 %v91, %v114
    %v120 = vld [vmem:[%s3] sm:$0x1]
    %v121 = vld [vmem:[%s3 + $0x1] sm:$0x1]
    %v124 = vlaneseq
    %v125 = vshrl.u32 %v124, 7
    %v126 = vsub.s32 0, %v125
    %v127 = vrot.slane %v120, %v126
    %v128 = vlaneseq
    %v129 = vshrl.u32 %v128, 7
    %v130 = vsub.s32 0, %v129
    %v131 = vrot.slane %v121, %v130
    %v134 = vmax.f32 %v116, %v127
    %v135 = vmax.f32 %v117, %v127
    %v136 = vmax.f32 %v118, %v131
    %v137 = vmax.f32 %v119, %v131
    %v138 = vld [vmem:[%s1] sm:$0x1]
    %v139 = vld [vmem:[%s1 + $0x1] sm:$0x1]
    %v142 = vlaneseq
    %v143 = vshrl.u32 %v142, 7
    %v144 = vsub.s32 0, %v143
    %v145 = vrot.slane %v138, %v144
    %v146 = vlaneseq
    %v147 = vshrl.u32 %v146, 7
    %v148 = vsub.s32 0, %v147
    %v149 = vrot.slane %v139, %v148
    %v152 = vmul.f32 %v134, %v145
    %v153 = vmul.f32 %v135, %v145
    %v154 = vmul.f32 %v136, %v149
    %v155 = vmul.f32 %v137, %v149
    %v156 = vsub.f32 %v152, 1.0
    %v157 = vsub.f32 %v153, 1.0
    %v158 = vsub.f32 %v154, 1.0
    %v159 = vsub.f32 %v155, 1.0
    %v160 = vmul.f32 %v156, 1e+09
    %v161 = vmul.f32 %v157, 1e+09
    %v162 = vmul.f32 %v158, 1e+09
    %v163 = vmul.f32 %v159, 1e+09
    %v164 = vld [vmem:[%s0] sm:$0xff]
    %v165 = vld [vmem:[%s0 + $0x8] sm:$0xff]
    %v166 = vld [vmem:[%s0 + $0x10] sm:$0xff]
    %v167 = vld [vmem:[%s0 + $0x18] sm:$0xff]
    %v168 = vld [vmem:[%s4] sm:$0x1]
    %v169 = vld [vmem:[%s5] sm:$0x1]
    %vm170 = vcmask 261120
    %v171 = vsel %vm170, %v164, 0.0
    %172 = vadd.xlane.f32.xlu0 %v171
    %v173 = vpop.xlane.xlu0 %172
    %v174 = vsel %vm170, %v165, 0.0
    %175 = vadd.xlane.f32.xlu0 %v174
    %v176 = vpop.xlane.xlu0 %175
    %v177 = vsel %vm170, %v166, 0.0
    %178 = vadd.xlane.f32.xlu0 %v177
    %v179 = vpop.xlane.xlu0 %178
    %v180 = vsel %vm170, %v167, 0.0
    %181 = vadd.xlane.f32.xlu0 %v180
    %v182 = vpop.xlane.xlu0 %181
    %v183 = vrcp.pop 32.0
    %v184 = vmul.f32 %v173, %v183
    %v185 = vmul.f32 %v176, %v183
    %v186 = vmul.f32 %v179, %v183
    %v187 = vmul.f32 %v182, %v183
    %v188 = vsub.f32 %v164, %v184
    %v189 = vsub.f32 %v165, %v185
    %v190 = vsub.f32 %v166, %v186
    %v191 = vsub.f32 %v167, %v187
    %v192 = vmul.f32 %v188, %v188
    %v193 = vmul.f32 %v189, %v189
    %v194 = vmul.f32 %v190, %v190
    %v195 = vmul.f32 %v191, %v191
    %v196 = vsel %vm170, %v192, 0.0
    %197 = vadd.xlane.f32.xlu0 %v196
    %v198 = vpop.xlane.xlu0 %197
    %v199 = vsel %vm170, %v193, 0.0
    %200 = vadd.xlane.f32.xlu0 %v199
    %v201 = vpop.xlane.xlu0 %200
    %v202 = vsel %vm170, %v194, 0.0
    %203 = vadd.xlane.f32.xlu0 %v202
    %v204 = vpop.xlane.xlu0 %203
    %v205 = vsel %vm170, %v195, 0.0
    %206 = vadd.xlane.f32.xlu0 %v205
    %v207 = vpop.xlane.xlu0 %206
    %v208 = vmul.f32 %v198, %v183
    %v209 = vmul.f32 %v201, %v183
    %v210 = vmul.f32 %v204, %v183
    %v211 = vmul.f32 %v207, %v183
    %v212 = vadd.f32 %v208, 1e-05
    %v213 = vadd.f32 %v209, 1e-05
    %v214 = vadd.f32 %v210, 1e-05
    %v215 = vadd.f32 %v211, 1e-05
    %v216 = vrsqrt.pop %v212
    %v217 = vrsqrt.pop %v213
    %v218 = vrsqrt.pop %v214
    %v219 = vrsqrt.pop %v215
    %v220 = vmul.f32 %v188, %v216
    %v221 = vmul.f32 %v189, %v217
    %v222 = vmul.f32 %v190, %v218
    %v223 = vmul.f32 %v191, %v219
    %v225 = vlaneseq
    %v226 = vshrl.u32 %v225, 7
    %v227 = vsub.s32 0, %v226
    %v228 = vrot.slane %v168, %v227
    %v230 = vmul.f32 %v220, %v228
    %v231 = vmul.f32 %v221, %v228
    %v232 = vmul.f32 %v222, %v228
    %v233 = vmul.f32 %v223, %v228
    %v235 = vlaneseq
    %v236 = vshrl.u32 %v235, 7
    %v237 = vsub.s32 0, %v236
    %v238 = vrot.slane %v169, %v237
    %v240 = vadd.f32 %v230, %v238
    %v241 = vadd.f32 %v231, %v238
    %v242 = vadd.f32 %v232, %v238
    %v243 = vadd.f32 %v233, %v238
    %v244 = vld [vmem:[%s6] sm:$0xff]
    %v245 = vld [vmem:[%s6 + $0x8] sm:$0xff]
    %v246 = vld [vmem:[%s6 + $0x10] sm:$0xff]
    %v247 = vld [vmem:[%s6 + $0x18] sm:$0xff]
    %v248 = vpack.c.bf16 %v241, %v240
    %v249 = vpack.c.bf16 %v243, %v242
    %v250 = vpack.c.bf16 %v245, %v244
    %v251 = vpack.c.bf16 %v247, %v246
    %v252 = vld [vmem:[%s7] sm:$0x1]
    %v254 = vlaneseq
    %v255 = vshrl.u32 %v254, 7
    %v256 = vsub.s32 0, %v255
    %v257 = vrot.slane %v252, %v256
    %v260 = vsel %vm170, %v248, 0
    %v263 = vsel %vm170, %v249, 0
    %265 = vmatprep.subr.bf16.mxu0 0
    %266 = vmatpush1.bf16.msra.mxu0 0
    %267 = vmatprep.subr.bf16.mxu0 0
    %268 = vmatpush1.bf16.msra.mxu0 0
    %269 = vmatprep.subr.bf16.mxu0 0
    %270 = vmatpush1.bf16.msra.mxu0 0
    %271 = vmatprep.subr.bf16.mxu0 0
    %272 = vmatpush1.bf16.msra.mxu0 0
    %273 = vmatprep.subr.bf16.mxu0 0
    %274 = vmatpush1.bf16.msra.mxu0 0
    %275 = vmatprep.subr.bf16.mxu0 0
    %276 = vmatpush1.bf16.msra.mxu0 0
    %277 = vmatprep.subr.bf16.mxu0 0
    %278 = vmatpush1.bf16.msra.mxu0 %v251
    %279 = vmatprep.subr.bf16.mxu0 0
    %280 = vmatpush1.bf16.msra.mxu0 %v250
    %281 = vmatprep.subr.bf16.mxu0 0
    %282 = vmatpush2.bf16.msra.mxu0 0
    %283 = vmatprep.subr.bf16.mxu0 0
    %284 = vmatpush2.bf16.msra.mxu0 0
    %285 = vmatprep.subr.bf16.mxu0 0
    %286 = vmatpush2.bf16.msra.mxu0 0
    %287 = vmatprep.subr.bf16.mxu0 0
    %288 = vmatpush2.bf16.msra.mxu0 0
    %289 = vmatprep.subr.bf16.mxu0 0
    %290 = vmatpush2.bf16.msra.mxu0 0
    %291 = vmatprep.subr.bf16.mxu0 0
    %292 = vmatpush2.bf16.msra.mxu0 0
    %293 = vmatprep.subr.bf16.mxu0 0
    %294 = vmatpush2.bf16.msra.mxu0 0
    %295 = vmatprep.subr.bf16.mxu0 0
    %296 = vmatpush2.bf16.msra.mxu0 0
    %297 = vmatprep.mubr.bf16.mxu0 0
    %298 = vmatmul.mubr.bf16.gmra.mxu0 %v260
    %v299 = vpop.f32.mrf.mxu0
    %v300 = vadd.f32 %v257, %v299
    %v301 = vpop.f32.mrf.mxu0
    %v302 = vpop.f32.mrf.mxu0
    %v303 = vadd.f32 %v257, %v302
    %v304 = vpop.f32.mrf.mxu0
    %305 = vmatprep.mubr.bf16.mxu0 0
    %306 = vmatmul.mubr.bf16.gmra.mxu0 %v263
    %v307 = vpop.f32.mrf.mxu0
    %v308 = vadd.f32 %v257, %v307
    %v309 = vpop.f32.mrf.mxu0
    %v310 = vpop.f32.mrf.mxu0
    %v311 = vadd.f32 %v257, %v310
    %v312 = vpop.f32.mrf.mxu0
    %313 = vdwg.mxu0
    %v314 = vld [vmem:[%s8] sm:$0xff]
    %v315 = vld [vmem:[%s8 + $0x8] sm:$0xff]
    %v316 = vld [vmem:[%s8 + $0x10] sm:$0xff]
    %v317 = vld [vmem:[%s8 + $0x18] sm:$0xff]
    %v318 = vmul.f32 %v300, 0.35355338
    %v319 = vmul.f32 %v303, 0.35355338
    %v320 = vmul.f32 %v308, 0.35355338
    %v321 = vmul.f32 %v311, 0.35355338
    %v322 = vpack.c.bf16 %v319, %v318
    %v323 = vpack.c.bf16 %v321, %v320
    %v324 = vpack.c.bf16 %v303, %v300
    %v325 = vpack.c.bf16 %v311, %v308
    %327 = vrot.lane.b32.xlu0 %v324, 96
    %v328 = vpop.permute.xlu0 %327
    %vm329 = vcmask 64512
    %v331 = vsel %vm329, %v322, 0
    %v334 = vsel %vm329, %v328, 0
    %336 = vmatprep.subr.bf16.mxu0 0
    %337 = vmatpush1.bf16.xpose.msra.mxu0 0
    %338 = vmatprep.subr.bf16.mxu0 0
    %339 = vmatpush1.bf16.xpose.msra.mxu0 0
    %340 = vmatprep.subr.bf16.mxu0 0
    %341 = vmatpush1.bf16.xpose.msra.mxu0 0
    %342 = vmatprep.subr.bf16.mxu0 0
    %343 = vmatpush1.bf16.xpose.msra.mxu0 0
    %344 = vmatprep.subr.bf16.mxu0 0
    %345 = vmatpush1.bf16.xpose.msra.mxu0 0
    %346 = vmatprep.subr.bf16.mxu0 0
    %347 = vmatpush1.bf16.xpose.msra.mxu0 0
    %348 = vmatprep.subr.bf16.mxu0 0
    %349 = vmatpush1.bf16.xpose.msra.mxu0 0
    %350 = vmatprep.subr.bf16.mxu0 0
    %351 = vmatpush1.bf16.xpose.msra.mxu0 %v334
    %352 = vmatprep.subr.bf16.mxu0 0
    %353 = vmatpush2.bf16.xpose.msra.mxu0 0
    %354 = vmatprep.subr.bf16.mxu0 0
    %355 = vmatpush2.bf16.xpose.msra.mxu0 0
    %356 = vmatprep.subr.bf16.mxu0 0
    %357 = vmatpush2.bf16.xpose.msra.mxu0 0
    %358 = vmatprep.subr.bf16.mxu0 0
    %359 = vmatpush2.bf16.xpose.msra.mxu0 0
    %360 = vmatprep.subr.bf16.mxu0 0
    %361 = vmatpush2.bf16.xpose.msra.mxu0 0
    %362 = vmatprep.subr.bf16.mxu0 0
    %363 = vmatpush2.bf16.xpose.msra.mxu0 0
    %364 = vmatprep.subr.bf16.mxu0 0
    %365 = vmatpush2.bf16.xpose.msra.mxu0 0
    %366 = vmatprep.subr.bf16.mxu0 0
    %367 = vmatpush2.bf16.xpose.msra.mxu0 0
    %368 = vmatprep.mubr.bf16.mxu0 0
    %369 = vmatmul.mubr.bf16.gmra.mxu0 %v331
    %v370 = vpop.f32.mrf.mxu0
    %v371 = vadd.f32 %v160, %v370
    %v372 = vpop.f32.mrf.mxu0
    %v373 = vpop.f32.mrf.mxu0
    %v374 = vadd.f32 %v161, %v373
    %v375 = vpop.f32.mrf.mxu0
    %376 = vdwg.mxu0
    %378 = vrot.lane.b32.xlu0 %v325, 96
    %v379 = vpop.permute.xlu0 %378
    %v381 = vsel %vm329, %v323, 0
    %v384 = vsel %vm329, %v379, 0
    %386 = vmatprep.subr.bf16.mxu0 0
    %387 = vmatpush1.bf16.xpose.msra.mxu0 0
    %388 = vmatprep.subr.bf16.mxu0 0
    %389 = vmatpush1.bf16.xpose.msra.mxu0 0
    %390 = vmatprep.subr.bf16.mxu0 0
    %391 = vmatpush1.bf16.xpose.msra.mxu0 0
    %392 = vmatprep.subr.bf16.mxu0 0
    %393 = vmatpush1.bf16.xpose.msra.mxu0 0
    %394 = vmatprep.subr.bf16.mxu0 0
    %395 = vmatpush1.bf16.xpose.msra.mxu0 0
    %396 = vmatprep.subr.bf16.mxu0 0
    %397 = vmatpush1.bf16.xpose.msra.mxu0 0
    %398 = vmatprep.subr.bf16.mxu0 0
    %399 = vmatpush1.bf16.xpose.msra.mxu0 0
    %400 = vmatprep.subr.bf16.mxu0 0
    %401 = vmatpush1.bf16.xpose.msra.mxu0 %v384
    %402 = vmatprep.subr.bf16.mxu0 0
    %403 = vmatpush2.bf16.xpose.msra.mxu0 0
    %404 = vmatprep.subr.bf16.mxu0 0
    %405 = vmatpush2.bf16.xpose.msra.mxu0 0
    %406 = vmatprep.subr.bf16.mxu0 0
    %407 = vmatpush2.bf16.xpose.msra.mxu0 0
    %408 = vmatprep.subr.bf16.mxu0 0
    %409 = vmatpush2.bf16.xpose.msra.mxu0 0
    %410 = vmatprep.subr.bf16.mxu0 0
    %411 = vmatpush2.bf16.xpose.msra.mxu0 0
    %412 = vmatprep.subr.bf16.mxu0 0
    %413 = vmatpush2.bf16.xpose.msra.mxu0 0
    %414 = vmatprep.subr.bf16.mxu0 0
    %415 = vmatpush2.bf16.xpose.msra.mxu0 0
    %416 = vmatprep.subr.bf16.mxu0 0
    %417 = vmatpush2.bf16.xpose.msra.mxu0 0
    %418 = vmatprep.mubr.bf16.mxu0 0
    %419 = vmatmul.mubr.bf16.gmra.mxu0 %v381
    %v420 = vpop.f32.mrf.mxu0
    %v421 = vadd.f32 %v162, %v420
    %v422 = vpop.f32.mrf.mxu0
    %v423 = vpop.f32.mrf.mxu0
    %v424 = vadd.f32 %v163, %v423
    %v425 = vpop.f32.mrf.mxu0
    %426 = vdwg.mxu0
    %vm427 = vcmask 130048
    %v428 = vsel %vm427, %v371, -inf
    %429 = vmax.xlane.f32.xlu0 %v428
    %v430 = vpop.xlane.xlu0 %429
    %v431 = vsel %vm427, %v374, -inf
    %432 = vmax.xlane.f32.xlu0 %v431
    %v433 = vpop.xlane.xlu0 %432
    %v434 = vsel %vm427, %v421, -inf
    %435 = vmax.xlane.f32.xlu0 %v434
    %v436 = vpop.xlane.xlu0 %435
    %v437 = vsel %vm427, %v424, -inf
    %438 = vmax.xlane.f32.xlu0 %v437
    %v439 = vpop.xlane.xlu0 %438
    %v440 = vsub.f32 %v371, %v430
    %v441 = vsub.f32 %v374, %v433
    %v442 = vsub.f32 %v421, %v436
    %v443 = vsub.f32 %v424, %v439
    %v444 = vmul.f32 %v440, 1.442695
    %v445 = vpow.pop %v444
    %v446 = vmul.f32 %v441, 1.442695
    %v447 = vpow.pop %v446
    %v448 = vmul.f32 %v442, 1.442695
    %v449 = vpow.pop %v448
    %v450 = vmul.f32 %v443, 1.442695
    %v451 = vpow.pop %v450
    %v452 = vsel %vm427, %v445, 0.0
    %453 = vadd.xlane.f32.xlu0 %v452
    %v454 = vpop.xlane.xlu0 %453
    %v455 = vsel %vm427, %v447, 0.0
    %456 = vadd.xlane.f32.xlu0 %v455
    %v457 = vpop.xlane.xlu0 %456
    %v458 = vsel %vm427, %v449, 0.0
    %459 = vadd.xlane.f32.xlu0 %v458
    %v460 = vpop.xlane.xlu0 %459
    %v461 = vsel %vm427, %v451, 0.0
    %462 = vadd.xlane.f32.xlu0 %v461
    %v463 = vpop.xlane.xlu0 %462
    %v464 = vrcp.pop %v454
    %v465 = vrcp.pop %v457
    %v466 = vrcp.pop %v460
    %v467 = vrcp.pop %v463
    %v468 = vmul.f32 %v445, %v464
    %v469 = vmul.f32 %v447, %v465
    %v470 = vmul.f32 %v449, %v466
    %v471 = vmul.f32 %v451, %v467
    %v472 = vpack.c.bf16 %v469, %v468
    %v473 = vpack.c.bf16 %v471, %v470
    %474 = vrot.lane.b32.xlu0 %v324, 64
    %v475 = vpop.permute.xlu0 %474
    %v478 = vsel %vm427, %v472, 0
    %480 = vmatprep.subr.bf16.mxu0 0
    %481 = vmatpush1.bf16.msra.mxu0 0
    %482 = vmatprep.subr.bf16.mxu0 0
    %483 = vmatpush1.bf16.msra.mxu0 0
    %484 = vmatprep.subr.bf16.mxu0 0
    %485 = vmatpush1.bf16.msra.mxu0 0
    %486 = vmatprep.subr.bf16.mxu0 0
    %487 = vmatpush1.bf16.msra.mxu0 0
    %488 = vmatprep.subr.bf16.mxu0 0
    %489 = vmatpush1.bf16.msra.mxu0 0
    %490 = vmatprep.subr.bf16.mxu0 0
    %491 = vmatpush1.bf16.msra.mxu0 0
    %492 = vmatprep.subr.bf16.mxu0 0
    %493 = vmatpush1.bf16.msra.mxu0 0
    %494 = vmatprep.subr.bf16.mxu0 0
    %495 = vmatpush1.bf16.msra.mxu0 %v475
    %496 = vmatprep.subr.bf16.mxu0 0
    %497 = vmatpush2.bf16.msra.mxu0 0
    %498 = vmatprep.subr.bf16.mxu0 0
    %499 = vmatpush2.bf16.msra.mxu0 0
    %500 = vmatprep.subr.bf16.mxu0 0
    %501 = vmatpush2.bf16.msra.mxu0 0
    %502 = vmatprep.subr.bf16.mxu0 0
    %503 = vmatpush2.bf16.msra.mxu0 0
    %504 = vmatprep.subr.bf16.mxu0 0
    %505 = vmatpush2.bf16.msra.mxu0 0
    %506 = vmatprep.subr.bf16.mxu0 0
    %507 = vmatpush2.bf16.msra.mxu0 0
    %508 = vmatprep.subr.bf16.mxu0 0
    %509 = vmatpush2.bf16.msra.mxu0 0
    %510 = vmatprep.subr.bf16.mxu0 0
    %511 = vmatpush2.bf16.msra.mxu0 0
    %512 = vmatprep.mubr.bf16.mxu0 0
    %513 = vmatmul.mubr.bf16.gmra.mxu0 %v478
    %v514 = vpop.f32.mrf.mxu0
    %v515 = vadd.f32 0.0, %v514
    %v516 = vpop.f32.mrf.mxu0
    %v517 = vpop.f32.mrf.mxu0
    %v518 = vadd.f32 0.0, %v517
    %v519 = vpop.f32.mrf.mxu0
    %520 = vdwg.mxu0
    %521 = vrot.lane.b32.xlu0 %v325, 64
    %v522 = vpop.permute.xlu0 %521
    %v525 = vsel %vm427, %v473, 0
    %527 = vmatprep.subr.bf16.mxu0 0
    %528 = vmatpush1.bf16.msra.mxu0 0
    %529 = vmatprep.subr.bf16.mxu0 0
    %530 = vmatpush1.bf16.msra.mxu0 0
    %531 = vmatprep.subr.bf16.mxu0 0
    %532 = vmatpush1.bf16.msra.mxu0 0
    %533 = vmatprep.subr.bf16.mxu0 0
    %534 = vmatpush1.bf16.msra.mxu0 0
    %535 = vmatprep.subr.bf16.mxu0 0
    %536 = vmatpush1.bf16.msra.mxu0 0
    %537 = vmatprep.subr.bf16.mxu0 0
    %538 = vmatpush1.bf16.msra.mxu0 0
    %539 = vmatprep.subr.bf16.mxu0 0
    %540 = vmatpush1.bf16.msra.mxu0 0
    %541 = vmatprep.subr.bf16.mxu0 0
    %542 = vmatpush1.bf16.msra.mxu0 %v522
    %543 = vmatprep.subr.bf16.mxu0 0
    %544 = vmatpush2.bf16.msra.mxu0 0
    %545 = vmatprep.subr.bf16.mxu0 0
    %546 = vmatpush2.bf16.msra.mxu0 0
    %547 = vmatprep.subr.bf16.mxu0 0
    %548 = vmatpush2.bf16.msra.mxu0 0
    %549 = vmatprep.subr.bf16.mxu0 0
    %550 = vmatpush2.bf16.msra.mxu0 0
    %551 = vmatprep.subr.bf16.mxu0 0
    %552 = vmatpush2.bf16.msra.mxu0 0
    %553 = vmatprep.subr.bf16.mxu0 0
    %554 = vmatpush2.bf16.msra.mxu0 0
    %555 = vmatprep.subr.bf16.mxu0 0
    %556 = vmatpush2.bf16.msra.mxu0 0
    %557 = vmatprep.subr.bf16.mxu0 0
    %558 = vmatpush2.bf16.msra.mxu0 0
    %559 = vmatprep.mubr.bf16.mxu0 0
    %560 = vmatmul.mubr.bf16.gmra.mxu0 %v525
    %v561 = vpop.f32.mrf.mxu0
    %v562 = vadd.f32 0.0, %v561
    %v563 = vpop.f32.mrf.mxu0
    %v564 = vpop.f32.mrf.mxu0
    %v565 = vadd.f32 0.0, %v564
    %v566 = vpop.f32.mrf.mxu0
    %567 = vdwg.mxu0
    %v568 = vpack.c.bf16 %v518, %v515
    %v569 = vpack.c.bf16 %v565, %v562
    %v570 = vpack.c.bf16 %v314, %v314
    %572 = vrot.lane.b32.xlu0 %v322, 120
    %v573 = vpop.permute.xlu0 %572
    %574 = vrot.lane.b32.xlu0 %v324, 88
    %v575 = vpop.permute.xlu0 %574
    %v577 = vsel %vm329, %v573, 0
    %v580 = vsel %vm329, %v575, 0
    %582 = vmatprep.subr.bf16.mxu0 0
    %583 = vmatpush1.bf16.xpose.msra.mxu0 0
    %584 = vmatprep.subr.bf16.mxu0 0
    %585 = vmatpush1.bf16.xpose.msra.mxu0 0
    %586 = vmatprep.subr.bf16.mxu0 0
    %587 = vmatpush1.bf16.xpose.msra.mxu0 0
    %588 = vmatprep.subr.bf16.mxu0 0
    %589 = vmatpush1.bf16.xpose.msra.mxu0 0
    %590 = vmatprep.subr.bf16.mxu0 0
    %591 = vmatpush1.bf16.xpose.msra.mxu0 0
    %592 = vmatprep.subr.bf16.mxu0 0
    %593 = vmatpush1.bf16.xpose.msra.mxu0 0
    %594 = vmatprep.subr.bf16.mxu0 0
    %595 = vmatpush1.bf16.xpose.msra.mxu0 0
    %596 = vmatprep.subr.bf16.mxu0 0
    %597 = vmatpush1.bf16.xpose.msra.mxu0 %v580
    %598 = vmatprep.subr.bf16.mxu0 0
    %599 = vmatpush2.bf16.xpose.msra.mxu0 0
    %600 = vmatprep.subr.bf16.mxu0 0
    %601 = vmatpush2.bf16.xpose.msra.mxu0 0
    %602 = vmatprep.subr.bf16.mxu0 0
    %603 = vmatpush2.bf16.xpose.msra.mxu0 0
    %604 = vmatprep.subr.bf16.mxu0 0
    %605 = vmatpush2.bf16.xpose.msra.mxu0 0
    %606 = vmatprep.subr.bf16.mxu0 0
    %607 = vmatpush2.bf16.xpose.msra.mxu0 0
    %608 = vmatprep.subr.bf16.mxu0 0
    %609 = vmatpush2.bf16.xpose.msra.mxu0 0
    %610 = vmatprep.subr.bf16.mxu0 0
    %611 = vmatpush2.bf16.xpose.msra.mxu0 0
    %612 = vmatprep.subr.bf16.mxu0 0
    %613 = vmatpush2.bf16.xpose.msra.mxu0 0
    %614 = vmatprep.mubr.bf16.mxu0 0
    %615 = vmatmul.mubr.bf16.gmra.mxu0 %v577
    %v616 = vpop.f32.mrf.mxu0
    %v617 = vadd.f32 %v160, %v616
    %v618 = vpop.f32.mrf.mxu0
    %v619 = vpop.f32.mrf.mxu0
    %v620 = vadd.f32 %v161, %v619
    %v621 = vpop.f32.mrf.mxu0
    %622 = vdwg.mxu0
    %624 = vrot.lane.b32.xlu0 %v323, 120
    %v625 = vpop.permute.xlu0 %624
    %626 = vrot.lane.b32.xlu0 %v325, 88
    %v627 = vpop.permute.xlu0 %626
    %v629 = vsel %vm329, %v625, 0
    %v632 = vsel %vm329, %v627, 0
    %634 = vmatprep.subr.bf16.mxu0 0
    %635 = vmatpush1.bf16.xpose.msra.mxu0 0
    %636 = vmatprep.subr.bf16.mxu0 0
    %637 = vmatpush1.bf16.xpose.msra.mxu0 0
    %638 = vmatprep.subr.bf16.mxu0 0
    %639 = vmatpush1.bf16.xpose.msra.mxu0 0
    %640 = vmatprep.subr.bf16.mxu0 0
    %641 = vmatpush1.bf16.xpose.msra.mxu0 0
    %642 = vmatprep.subr.bf16.mxu0 0
    %643 = vmatpush1.bf16.xpose.msra.mxu0 0
    %644 = vmatprep.subr.bf16.mxu0 0
    %645 = vmatpush1.bf16.xpose.msra.mxu0 0
    %646 = vmatprep.subr.bf16.mxu0 0
    %647 = vmatpush1.bf16.xpose.msra.mxu0 0
    %648 = vmatprep.subr.bf16.mxu0 0
    %649 = vmatpush1.bf16.xpose.msra.mxu0 %v632
    %650 = vmatprep.subr.bf16.mxu0 0
    %651 = vmatpush2.bf16.xpose.msra.mxu0 0
    %652 = vmatprep.subr.bf16.mxu0 0
    %653 = vmatpush2.bf16.xpose.msra.mxu0 0
    %654 = vmatprep.subr.bf16.mxu0 0
    %655 = vmatpush2.bf16.xpose.msra.mxu0 0
    %656 = vmatprep.subr.bf16.mxu0 0
    %657 = vmatpush2.bf16.xpose.msra.mxu0 0
    %658 = vmatprep.subr.bf16.mxu0 0
    %659 = vmatpush2.bf16.xpose.msra.mxu0 0
    %660 = vmatprep.subr.bf16.mxu0 0
    %661 = vmatpush2.bf16.xpose.msra.mxu0 0
    %662 = vmatprep.subr.bf16.mxu0 0
    %663 = vmatpush2.bf16.xpose.msra.mxu0 0
    %664 = vmatprep.subr.bf16.mxu0 0
    %665 = vmatpush2.bf16.xpose.msra.mxu0 0
    %666 = vmatprep.mubr.bf16.mxu0 0
    %667 = vmatmul.mubr.bf16.gmra.mxu0 %v629
    %v668 = vpop.f32.mrf.mxu0
    %v669 = vadd.f32 %v162, %v668
    %v670 = vpop.f32.mrf.mxu0
    %v671 = vpop.f32.mrf.mxu0
    %v672 = vadd.f32 %v163, %v671
    %v673 = vpop.f32.mrf.mxu0
    %674 = vdwg.mxu0
    %v675 = vsel %vm427, %v617, -inf
    %676 = vmax.xlane.f32.xlu0 %v675
    %v677 = vpop.xlane.xlu0 %676
    %v678 = vsel %vm427, %v620, -inf
    %679 = vmax.xlane.f32.xlu0 %v678
    %v680 = vpop.xlane.xlu0 %679
    %v681 = vsel %vm427, %v669, -inf
    %682 = vmax.xlane.f32.xlu0 %v681
    %v683 = vpop.xlane.xlu0 %682
    %v684 = vsel %vm427, %v672, -inf
    %685 = vmax.xlane.f32.xlu0 %v684
    %v686 = vpop.xlane.xlu0 %685
    %v687 = vsub.f32 %v617, %v677
    %v688 = vsub.f32 %v620, %v680
    %v689 = vsub.f32 %v669, %v683
    %v690 = vsub.f32 %v672, %v686
    %v691 = vmul.f32 %v687, 1.442695
    %v692 = vpow.pop %v691
    %v693 = vmul.f32 %v688, 1.442695
    %v694 = vpow.pop %v693
    %v695 = vmul.f32 %v689, 1.442695
    %v696 = vpow.pop %v695
    %v697 = vmul.f32 %v690, 1.442695
    %v698 = vpow.pop %v697
    %v699 = vsel %vm427, %v692, 0.0
    %700 = vadd.xlane.f32.xlu0 %v699
    %v701 = vpop.xlane.xlu0 %700
    %v702 = vsel %vm427, %v694, 0.0
    %703 = vadd.xlane.f32.xlu0 %v702
    %v704 = vpop.xlane.xlu0 %703
    %v705 = vsel %vm427, %v696, 0.0
    %706 = vadd.xlane.f32.xlu0 %v705
    %v707 = vpop.xlane.xlu0 %706
    %v708 = vsel %vm427, %v698, 0.0
    %709 = vadd.xlane.f32.xlu0 %v708
    %v710 = vpop.xlane.xlu0 %709
    %v711 = vrcp.pop %v701
    %v712 = vrcp.pop %v704
    %v713 = vrcp.pop %v707
    %v714 = vrcp.pop %v710
    %v715 = vmul.f32 %v692, %v711
    %v716 = vmul.f32 %v694, %v712
    %v717 = vmul.f32 %v696, %v713
    %v718 = vmul.f32 %v698, %v714
    %v719 = vpack.c.bf16 %v716, %v715
    %v720 = vpack.c.bf16 %v718, %v717
    %721 = vrot.lane.b32.xlu0 %v324, 56
    %v722 = vpop.permute.xlu0 %721
    %v725 = vsel %vm427, %v719, 0
    %727 = vmatprep.subr.bf16.mxu0 0
    %728 = vmatpush1.bf16.msra.mxu0 0
    %729 = vmatprep.subr.bf16.mxu0 0
    %730 = vmatpush1.bf16.msra.mxu0 0
    %731 = vmatprep.subr.bf16.mxu0 0
    %732 = vmatpush1.bf16.msra.mxu0 0
    %733 = vmatprep.subr.bf16.mxu0 0
    %734 = vmatpush1.bf16.msra.mxu0 0
    %735 = vmatprep.subr.bf16.mxu0 0
    %736 = vmatpush1.bf16.msra.mxu0 0
    %737 = vmatprep.subr.bf16.mxu0 0
    %738 = vmatpush1.bf16.msra.mxu0 0
    %739 = vmatprep.subr.bf16.mxu0 0
    %740 = vmatpush1.bf16.msra.mxu0 0
    %741 = vmatprep.subr.bf16.mxu0 0
    %742 = vmatpush1.bf16.msra.mxu0 %v722
    %743 = vmatprep.subr.bf16.mxu0 0
    %744 = vmatpush2.bf16.msra.mxu0 0
    %745 = vmatprep.subr.bf16.mxu0 0
    %746 = vmatpush2.bf16.msra.mxu0 0
    %747 = vmatprep.subr.bf16.mxu0 0
    %748 = vmatpush2.bf16.msra.mxu0 0
    %749 = vmatprep.subr.bf16.mxu0 0
    %750 = vmatpush2.bf16.msra.mxu0 0
    %751 = vmatprep.subr.bf16.mxu0 0
    %752 = vmatpush2.bf16.msra.mxu0 0
    %753 = vmatprep.subr.bf16.mxu0 0
    %754 = vmatpush2.bf16.msra.mxu0 0
    %755 = vmatprep.subr.bf16.mxu0 0
    %756 = vmatpush2.bf16.msra.mxu0 0
    %757 = vmatprep.subr.bf16.mxu0 0
    %758 = vmatpush2.bf16.msra.mxu0 0
    %759 = vmatprep.mubr.bf16.mxu0 0
    %760 = vmatmul.mubr.bf16.gmra.mxu0 %v725
    %v761 = vpop.f32.mrf.mxu0
    %v762 = vadd.f32 0.0, %v761
    %v763 = vpop.f32.mrf.mxu0
    %v764 = vpop.f32.mrf.mxu0
    %v765 = vadd.f32 0.0, %v764
    %v766 = vpop.f32.mrf.mxu0
    %767 = vdwg.mxu0
    %768 = vrot.lane.b32.xlu0 %v325, 56
    %v769 = vpop.permute.xlu0 %768
    %v772 = vsel %vm427, %v720, 0
    %774 = vmatprep.subr.bf16.mxu0 0
    %775 = vmatpush1.bf16.msra.mxu0 0
    %776 = vmatprep.subr.bf16.mxu0 0
    %777 = vmatpush1.bf16.msra.mxu0 0
    %778 = vmatprep.subr.bf16.mxu0 0
    %779 = vmatpush1.bf16.msra.mxu0 0
    %780 = vmatprep.subr.bf16.mxu0 0
    %781 = vmatpush1.bf16.msra.mxu0 0
    %782 = vmatprep.subr.bf16.mxu0 0
    %783 = vmatpush1.bf16.msra.mxu0 0
    %784 = vmatprep.subr.bf16.mxu0 0
    %785 = vmatpush1.bf16.msra.mxu0 0
    %786 = vmatprep.subr.bf16.mxu0 0
    %787 = vmatpush1.bf16.msra.mxu0 0
    %788 = vmatprep.subr.bf16.mxu0 0
    %789 = vmatpush1.bf16.msra.mxu0 %v769
    %790 = vmatprep.subr.bf16.mxu0 0
    %791 = vmatpush2.bf16.msra.mxu0 0
    %792 = vmatprep.subr.bf16.mxu0 0
    %793 = vmatpush2.bf16.msra.mxu0 0
    %794 = vmatprep.subr.bf16.mxu0 0
    %795 = vmatpush2.bf16.msra.mxu0 0
    %796 = vmatprep.subr.bf16.mxu0 0
    %797 = vmatpush2.bf16.msra.mxu0 0
    %798 = vmatprep.subr.bf16.mxu0 0
    %799 = vmatpush2.bf16.msra.mxu0 0
    %800 = vmatprep.subr.bf16.mxu0 0
    %801 = vmatpush2.bf16.msra.mxu0 0
    %802 = vmatprep.subr.bf16.mxu0 0
    %803 = vmatpush2.bf16.msra.mxu0 0
    %804 = vmatprep.subr.bf16.mxu0 0
    %805 = vmatpush2.bf16.msra.mxu0 0
    %806 = vmatprep.mubr.bf16.mxu0 0
    %807 = vmatmul.mubr.bf16.gmra.mxu0 %v772
    %v808 = vpop.f32.mrf.mxu0
    %v809 = vadd.f32 0.0, %v808
    %v810 = vpop.f32.mrf.mxu0
    %v811 = vpop.f32.mrf.mxu0
    %v812 = vadd.f32 0.0, %v811
    %v813 = vpop.f32.mrf.mxu0
    %814 = vdwg.mxu0
    %v815 = vpack.c.bf16 %v765, %v762
    %v816 = vpack.c.bf16 %v812, %v809
    %v817 = vpack.c.bf16 %v315, %v315
    %v819 = vsel %vm329, %v815, 0
    %v822 = vsel %vm329, %v816, 0
    %vm824 = vcmask 1043456
    %v826 = vsel %vm824, %v817, 0
    %828 = vmatprep.subr.bf16.mxu0 0
    %829 = vmatpush1.bf16.msra.mxu0 0
    %830 = vmatprep.subr.bf16.mxu0 0
    %831 = vmatpush1.bf16.msra.mxu0 0
    %832 = vmatprep.subr.bf16.mxu0 0
    %833 = vmatpush1.bf16.msra.mxu0 0
    %834 = vmatprep.subr.bf16.mxu0 0
    %835 = vmatpush1.bf16.msra.mxu0 0
    %836 = vmatprep.subr.bf16.mxu0 0
    %837 = vmatpush1.bf16.msra.mxu0 0
    %838 = vmatprep.subr.bf16.mxu0 0
    %839 = vmatpush1.bf16.msra.mxu0 0
    %840 = vmatprep.subr.bf16.mxu0 0
    %841 = vmatpush1.bf16.msra.mxu0 0
    %842 = vmatprep.subr.bf16.mxu0 0
    %843 = vmatpush1.bf16.msra.mxu0 %v826
    %844 = vmatprep.subr.bf16.mxu0 0
    %845 = vmatpush2.bf16.msra.mxu0 0
    %846 = vmatprep.subr.bf16.mxu0 0
    %847 = vmatpush2.bf16.msra.mxu0 0
    %848 = vmatprep.subr.bf16.mxu0 0
    %849 = vmatpush2.bf16.msra.mxu0 0
    %850 = vmatprep.subr.bf16.mxu0 0
    %851 = vmatpush2.bf16.msra.mxu0 0
    %852 = vmatprep.subr.bf16.mxu0 0
    %853 = vmatpush2.bf16.msra.mxu0 0
    %854 = vmatprep.subr.bf16.mxu0 0
    %855 = vmatpush2.bf16.msra.mxu0 0
    %856 = vmatprep.subr.bf16.mxu0 0
    %857 = vmatpush2.bf16.msra.mxu0 0
    %858 = vmatprep.subr.bf16.mxu0 0
    %859 = vmatpush2.bf16.msra.mxu0 0
    %860 = vmatprep.mubr.bf16.mxu0 0
    %861 = vmatmul.mubr.bf16.gmra.mxu0 %v819
    %v862 = vpop.f32.mrf.mxu0
    %v863 = vadd.f32 0.0, %v862
    %v864 = vpop.f32.mrf.mxu0
    %v865 = vpop.f32.mrf.mxu0
    %v866 = vadd.f32 0.0, %v865
    %v867 = vpop.f32.mrf.mxu0
    %868 = vmatprep.mubr.bf16.mxu0 0
    %869 = vmatmul.mubr.bf16.gmra.mxu0 %v822
    %v870 = vpop.f32.mrf.mxu0
    %v871 = vadd.f32 0.0, %v870
    %v872 = vpop.f32.mrf.mxu0
    %v873 = vpop.f32.mrf.mxu0
    %v874 = vadd.f32 0.0, %v873
    %v875 = vpop.f32.mrf.mxu0
    %876 = vdwg.mxu0
    %v878 = vsel %vm329, %v568, 0
    %v881 = vsel %vm329, %v569, 0
    %v884 = vsel %vm824, %v570, 0
    %886 = vmatprep.subr.bf16.mxu0 0
    %887 = vmatpush1.bf16.msra.mxu0 0
    %888 = vmatprep.subr.bf16.mxu0 0
    %889 = vmatpush1.bf16.msra.mxu0 0
    %890 = vmatprep.subr.bf16.mxu0 0
    %891 = vmatpush1.bf16.msra.mxu0 0
    %892 = vmatprep.subr.bf16.mxu0 0
    %893 = vmatpush1.bf16.msra.mxu0 0
    %894 = vmatprep.subr.bf16.mxu0 0
    %895 = vmatpush1.bf16.msra.mxu0 0
    %896 = vmatprep.subr.bf16.mxu0 0
    %897 = vmatpush1.bf16.msra.mxu0 0
    %898 = vmatprep.subr.bf16.mxu0 0
    %899 = vmatpush1.bf16.msra.mxu0 0
    %900 = vmatprep.subr.bf16.mxu0 0
    %901 = vmatpush1.bf16.msra.mxu0 %v884
    %902 = vmatprep.subr.bf16.mxu0 0
    %903 = vmatpush2.bf16.msra.mxu0 0
    %904 = vmatprep.subr.bf16.mxu0 0
    %905 = vmatpush2.bf16.msra.mxu0 0
    %906 = vmatprep.subr.bf16.mxu0 0
    %907 = vmatpush2.bf16.msra.mxu0 0
    %908 = vmatprep.subr.bf16.mxu0 0
    %909 = vmatpush2.bf16.msra.mxu0 0
    %910 = vmatprep.subr.bf16.mxu0 0
    %911 = vmatpush2.bf16.msra.mxu0 0
    %912 = vmatprep.subr.bf16.mxu0 0
    %913 = vmatpush2.bf16.msra.mxu0 0
    %914 = vmatprep.subr.bf16.mxu0 0
    %915 = vmatpush2.bf16.msra.mxu0 0
    %916 = vmatprep.subr.bf16.mxu0 0
    %917 = vmatpush2.bf16.msra.mxu0 0
    %918 = vmatprep.mubr.bf16.mxu0 0
    %919 = vmatmul.mubr.bf16.gmra.mxu0 %v878
    %v920 = vpop.f32.mrf.mxu0
    %v921 = vadd.f32 %v863, %v920
    %v922 = vpop.f32.mrf.mxu0
    %v923 = vpop.f32.mrf.mxu0
    %v924 = vadd.f32 %v866, %v923
    %v925 = vpop.f32.mrf.mxu0
    %926 = vmatprep.mubr.bf16.mxu0 0
    %927 = vmatmul.mubr.bf16.gmra.mxu0 %v881
    %v928 = vpop.f32.mrf.mxu0
    %v929 = vadd.f32 %v871, %v928
    %v930 = vpop.f32.mrf.mxu0
    %v931 = vpop.f32.mrf.mxu0
    %v932 = vadd.f32 %v874, %v931
    %v933 = vpop.f32.mrf.mxu0
    %934 = vdwg.mxu0
    %935 = vrot.lane.b32.xlu0 %v322, 112
    %v936 = vpop.permute.xlu0 %935
    %937 = vrot.lane.b32.xlu0 %v324, 80
    %v938 = vpop.permute.xlu0 %937
    %v940 = vsel %vm329, %v936, 0
    %v943 = vsel %vm329, %v938, 0
    %945 = vmatprep.subr.bf16.mxu0 0
    %946 = vmatpush1.bf16.xpose.msra.mxu0 0
    %947 = vmatprep.subr.bf16.mxu0 0
    %948 = vmatpush1.bf16.xpose.msra.mxu0 0
    %949 = vmatprep.subr.bf16.mxu0 0
    %950 = vmatpush1.bf16.xpose.msra.mxu0 0
    %951 = vmatprep.subr.bf16.mxu0 0
    %952 = vmatpush1.bf16.xpose.msra.mxu0 0
    %953 = vmatprep.subr.bf16.mxu0 0
    %954 = vmatpush1.bf16.xpose.msra.mxu0 0
    %955 = vmatprep.subr.bf16.mxu0 0
    %956 = vmatpush1.bf16.xpose.msra.mxu0 0
    %957 = vmatprep.subr.bf16.mxu0 0
    %958 = vmatpush1.bf16.xpose.msra.mxu0 0
    %959 = vmatprep.subr.bf16.mxu0 0
    %960 = vmatpush1.bf16.xpose.msra.mxu0 %v943
    %961 = vmatprep.subr.bf16.mxu0 0
    %962 = vmatpush2.bf16.xpose.msra.mxu0 0
    %963 = vmatprep.subr.bf16.mxu0 0
    %964 = vmatpush2.bf16.xpose.msra.mxu0 0
    %965 = vmatprep.subr.bf16.mxu0 0
    %966 = vmatpush2.bf16.xpose.msra.mxu0 0
    %967 = vmatprep.subr.bf16.mxu0 0
    %968 = vmatpush2.bf16.xpose.msra.mxu0 0
    %969 = vmatprep.subr.bf16.mxu0 0
    %970 = vmatpush2.bf16.xpose.msra.mxu0 0
    %971 = vmatprep.subr.bf16.mxu0 0
    %972 = vmatpush2.bf16.xpose.msra.mxu0 0
    %973 = vmatprep.subr.bf16.mxu0 0
    %974 = vmatpush2.bf16.xpose.msra.mxu0 0
    %975 = vmatprep.subr.bf16.mxu0 0
    %976 = vmatpush2.bf16.xpose.msra.mxu0 0
    %977 = vmatprep.mubr.bf16.mxu0 0
    %978 = vmatmul.mubr.bf16.gmra.mxu0 %v940
    %v979 = vpop.f32.mrf.mxu0
    %v980 = vadd.f32 %v160, %v979
    %v981 = vpop.f32.mrf.mxu0
    %v982 = vpop.f32.mrf.mxu0
    %v983 = vadd.f32 %v161, %v982
    %v984 = vpop.f32.mrf.mxu0
    %985 = vdwg.mxu0
    %986 = vrot.lane.b32.xlu0 %v323, 112
    %v987 = vpop.permute.xlu0 %986
    %988 = vrot.lane.b32.xlu0 %v325, 80
    %v989 = vpop.permute.xlu0 %988
    %v991 = vsel %vm329, %v987, 0
    %v994 = vsel %vm329, %v989, 0
    %996 = vmatprep.subr.bf16.mxu0 0
    %997 = vmatpush1.bf16.xpose.msra.mxu0 0
    %998 = vmatprep.subr.bf16.mxu0 0
    %999 = vmatpush1.bf16.xpose.msra.mxu0 0
    %1000 = vmatprep.subr.bf16.mxu0 0
    %1001 = vmatpush1.bf16.xpose.msra.mxu0 0
    %1002 = vmatprep.subr.bf16.mxu0 0
    %1003 = vmatpush1.bf16.xpose.msra.mxu0 0
    %1004 = vmatprep.subr.bf16.mxu0 0
    %1005 = vmatpush1.bf16.xpose.msra.mxu0 0
    %1006 = vmatprep.subr.bf16.mxu0 0
    %1007 = vmatpush1.bf16.xpose.msra.mxu0 0
    %1008 = vmatprep.subr.bf16.mxu0 0
    %1009 = vmatpush1.bf16.xpose.msra.mxu0 0
    %1010 = vmatprep.subr.bf16.mxu0 0
    %1011 = vmatpush1.bf16.xpose.msra.mxu0 %v994
    %1012 = vmatprep.subr.bf16.mxu0 0
    %1013 = vmatpush2.bf16.xpose.msra.mxu0 0
    %1014 = vmatprep.subr.bf16.mxu0 0
    %1015 = vmatpush2.bf16.xpose.msra.mxu0 0
    %1016 = vmatprep.subr.bf16.mxu0 0
    %1017 = vmatpush2.bf16.xpose.msra.mxu0 0
    %1018 = vmatprep.subr.bf16.mxu0 0
    %1019 = vmatpush2.bf16.xpose.msra.mxu0 0
    %1020 = vmatprep.subr.bf16.mxu0 0
    %1021 = vmatpush2.bf16.xpose.msra.mxu0 0
    %1022 = vmatprep.subr.bf16.mxu0 0
    %1023 = vmatpush2.bf16.xpose.msra.mxu0 0
    %1024 = vmatprep.subr.bf16.mxu0 0
    %1025 = vmatpush2.bf16.xpose.msra.mxu0 0
    %1026 = vmatprep.subr.bf16.mxu0 0
    %1027 = vmatpush2.bf16.xpose.msra.mxu0 0
    %1028 = vmatprep.mubr.bf16.mxu0 0
    %1029 = vmatmul.mubr.bf16.gmra.mxu0 %v991
    %v1030 = vpop.f32.mrf.mxu0
    %v1031 = vadd.f32 %v162, %v1030
    %v1032 = vpop.f32.mrf.mxu0
    %v1033 = vpop.f32.mrf.mxu0
    %v1034 = vadd.f32 %v163, %v1033
    %v1035 = vpop.f32.mrf.mxu0
    %1036 = vdwg.mxu0
    %v1037 = vsel %vm427, %v980, -inf
    %1038 = vmax.xlane.f32.xlu0 %v1037
    %v1039 = vpop.xlane.xlu0 %1038
    %v1040 = vsel %vm427, %v983, -inf
    %1041 = vmax.xlane.f32.xlu0 %v1040
    %v1042 = vpop.xlane.xlu0 %1041
    %v1043 = vsel %vm427, %v1031, -inf
    %1044 = vmax.xlane.f32.xlu0 %v1043
    %v1045 = vpop.xlane.xlu0 %1044
    %v1046 = vsel %vm427, %v1034, -inf
    %1047 = vmax.xlane.f32.xlu0 %v1046
    %v1048 = vpop.xlane.xlu0 %1047
    %v1049 = vsub.f32 %v980, %v1039
    %v1050 = vsub.f32 %v983, %v1042
    %v1051 = vsub.f32 %v1031, %v1045
    %v1052 = vsub.f32 %v1034, %v1048
    %v1053 = vmul.f32 %v1049, 1.442695
    %v1054 = vpow.pop %v1053
    %v1055 = vmul.f32 %v1050, 1.442695
    %v1056 = vpow.pop %v1055
    %v1057 = vmul.f32 %v1051, 1.442695
    %v1058 = vpow.pop %v1057
    %v1059 = vmul.f32 %v1052, 1.442695
    %v1060 = vpow.pop %v1059
    %v1061 = vsel %vm427, %v1054, 0.0
    %1062 = vadd.xlane.f32.xlu0 %v1061
    %v1063 = vpop.xlane.xlu0 %1062
    %v1064 = vsel %vm427, %v1056, 0.0
    %1065 = vadd.xlane.f32.xlu0 %v1064
    %v1066 = vpop.xlane.xlu0 %1065
    %v1067 = vsel %vm427, %v1058, 0.0
    %1068 = vadd.xlane.f32.xlu0 %v1067
    %v1069 = vpop.xlane.xlu0 %1068
    %v1070 = vsel %vm427, %v1060, 0.0
    %1071 = vadd.xlane.f32.xlu0 %v1070
    %v1072 = vpop.xlane.xlu0 %1071
    %v1073 = vrcp.pop %v1063
    %v1074 = vrcp.pop %v1066
    %v1075 = vrcp.pop %v1069
    %v1076 = vrcp.pop %v1072
    %v1077 = vmul.f32 %v1054, %v1073
    %v1078 = vmul.f32 %v1056, %v1074
    %v1079 = vmul.f32 %v1058, %v1075
    %v1080 = vmul.f32 %v1060, %v1076
    %v1081 = vpack.c.bf16 %v1078, %v1077
    %v1082 = vpack.c.bf16 %v1080, %v1079
    %1083 = vrot.lane.b32.xlu0 %v324, 48
    %v1084 = vpop.permute.xlu0 %1083
    %v1087 = vsel %vm427, %v1081, 0
    %1089 = vmatprep.subr.bf16.mxu0 0
    %1090 = vmatpush1.bf16.msra.mxu0 0
    %1091 = vmatprep.subr.bf16.mxu0 0
    %1092 = vmatpush1.bf16.msra.mxu0 0
    %1093 = vmatprep.subr.bf16.mxu0 0
    %1094 = vmatpush1.bf16.msra.mxu0 0
    %1095 = vmatprep.subr.bf16.mxu0 0
    %1096 = vmatpush1.bf16.msra.mxu0 0
    %1097 = vmatprep.subr.bf16.mxu0 0
    %1098 = vmatpush1.bf16.msra.mxu0 0
    %1099 = vmatprep.subr.bf16.mxu0 0
    %1100 = vmatpush1.bf16.msra.mxu0 0
    %1101 = vmatprep.subr.bf16.mxu0 0
    %1102 = vmatpush1.bf16.msra.mxu0 0
    %1103 = vmatprep.subr.bf16.mxu0 0
    %1104 = vmatpush1.bf16.msra.mxu0 %v1084
    %1105 = vmatprep.subr.bf16.mxu0 0
    %1106 = vmatpush2.bf16.msra.mxu0 0
    %1107 = vmatprep.subr.bf16.mxu0 0
    %1108 = vmatpush2.bf16.msra.mxu0 0
    %1109 = vmatprep.subr.bf16.mxu0 0
    %1110 = vmatpush2.bf16.msra.mxu0 0
    %1111 = vmatprep.subr.bf16.mxu0 0
    %1112 = vmatpush2.bf16.msra.mxu0 0
    %1113 = vmatprep.subr.bf16.mxu0 0
    %1114 = vmatpush2.bf16.msra.mxu0 0
    %1115 = vmatprep.subr.bf16.mxu0 0
    %1116 = vmatpush2.bf16.msra.mxu0 0
    %1117 = vmatprep.subr.bf16.mxu0 0
    %1118 = vmatpush2.bf16.msra.mxu0 0
    %1119 = vmatprep.subr.bf16.mxu0 0
    %1120 = vmatpush2.bf16.msra.mxu0 0
    %1121 = vmatprep.mubr.bf16.mxu0 0
    %1122 = vmatmul.mubr.bf16.gmra.mxu0 %v1087
    %v1123 = vpop.f32.mrf.mxu0
    %v1124 = vadd.f32 0.0, %v1123
    %v1125 = vpop.f32.mrf.mxu0
    %v1126 = vpop.f32.mrf.mxu0
    %v1127 = vadd.f32 0.0, %v1126
    %v1128 = vpop.f32.mrf.mxu0
    %1129 = vdwg.mxu0
    %1130 = vrot.lane.b32.xlu0 %v325, 48
    %v1131 = vpop.permute.xlu0 %1130
    %v1134 = vsel %vm427, %v1082, 0
    %1136 = vmatprep.subr.bf16.mxu0 0
    %1137 = vmatpush1.bf16.msra.mxu0 0
    %1138 = vmatprep.subr.bf16.mxu0 0
    %1139 = vmatpush1.bf16.msra.mxu0 0
    %1140 = vmatprep.subr.bf16.mxu0 0
    %1141 = vmatpush1.bf16.msra.mxu0 0
    %1142 = vmatprep.subr.bf16.mxu0 0
    %1143 = vmatpush1.bf16.msra.mxu0 0
    %1144 = vmatprep.subr.bf16.mxu0 0
    %1145 = vmatpush1.bf16.msra.mxu0 0
    %1146 = vmatprep.subr.bf16.mxu0 0
    %1147 = vmatpush1.bf16.msra.mxu0 0
    %1148 = vmatprep.subr.bf16.mxu0 0
    %1149 = vmatpush1.bf16.msra.mxu0 0
    %1150 = vmatprep.subr.bf16.mxu0 0
    %1151 = vmatpush1.bf16.msra.mxu0 %v1131
    %1152 = vmatprep.subr.bf16.mxu0 0
    %1153 = vmatpush2.bf16.msra.mxu0 0
    %1154 = vmatprep.subr.bf16.mxu0 0
    %1155 = vmatpush2.bf16.msra.mxu0 0
    %1156 = vmatprep.subr.bf16.mxu0 0
    %1157 = vmatpush2.bf16.msra.mxu0 0
    %1158 = vmatprep.subr.bf16.mxu0 0
    %1159 = vmatpush2.bf16.msra.mxu0 0
    %1160 = vmatprep.subr.bf16.mxu0 0
    %1161 = vmatpush2.bf16.msra.mxu0 0
    %1162 = vmatprep.subr.bf16.mxu0 0
    %1163 = vmatpush2.bf16.msra.mxu0 0
    %1164 = vmatprep.subr.bf16.mxu0 0
    %1165 = vmatpush2.bf16.msra.mxu0 0
    %1166 = vmatprep.subr.bf16.mxu0 0
    %1167 = vmatpush2.bf16.msra.mxu0 0
    %1168 = vmatprep.mubr.bf16.mxu0 0
    %1169 = vmatmul.mubr.bf16.gmra.mxu0 %v1134
    %v1170 = vpop.f32.mrf.mxu0
    %v1171 = vadd.f32 0.0, %v1170
    %v1172 = vpop.f32.mrf.mxu0
    %v1173 = vpop.f32.mrf.mxu0
    %v1174 = vadd.f32 0.0, %v1173
    %v1175 = vpop.f32.mrf.mxu0
    %1176 = vdwg.mxu0
    %v1177 = vpack.c.bf16 %v1127, %v1124
    %v1178 = vpack.c.bf16 %v1174, %v1171
    %v1179 = vpack.c.bf16 %v316, %v316
    %v1181 = vsel %vm329, %v1177, 0
    %v1184 = vsel %vm329, %v1178, 0
    %v1187 = vsel %vm824, %v1179, 0
    %1189 = vmatprep.subr.bf16.mxu0 0
    %1190 = vmatpush1.bf16.msra.mxu0 0
    %1191 = vmatprep.subr.bf16.mxu0 0
    %1192 = vmatpush1.bf16.msra.mxu0 0
    %1193 = vmatprep.subr.bf16.mxu0 0
    %1194 = vmatpush1.bf16.msra.mxu0 0
    %1195 = vmatprep.subr.bf16.mxu0 0
    %1196 = vmatpush1.bf16.msra.mxu0 0
    %1197 = vmatprep.subr.bf16.mxu0 0
    %1198 = vmatpush1.bf16.msra.mxu0 0
    %1199 = vmatprep.subr.bf16.mxu0 0
    %1200 = vmatpush1.bf16.msra.mxu0 0
    %1201 = vmatprep.subr.bf16.mxu0 0
    %1202 = vmatpush1.bf16.msra.mxu0 0
    %1203 = vmatprep.subr.bf16.mxu0 0
    %1204 = vmatpush1.bf16.msra.mxu0 %v1187
    %1205 = vmatprep.subr.bf16.mxu0 0
    %1206 = vmatpush2.bf16.msra.mxu0 0
    %1207 = vmatprep.subr.bf16.mxu0 0
    %1208 = vmatpush2.bf16.msra.mxu0 0
    %1209 = vmatprep.subr.bf16.mxu0 0
    %1210 = vmatpush2.bf16.msra.mxu0 0
    %1211 = vmatprep.subr.bf16.mxu0 0
    %1212 = vmatpush2.bf16.msra.mxu0 0
    %1213 = vmatprep.subr.bf16.mxu0 0
    %1214 = vmatpush2.bf16.msra.mxu0 0
    %1215 = vmatprep.subr.bf16.mxu0 0
    %1216 = vmatpush2.bf16.msra.mxu0 0
    %1217 = vmatprep.subr.bf16.mxu0 0
    %1218 = vmatpush2.bf16.msra.mxu0 0
    %1219 = vmatprep.subr.bf16.mxu0 0
    %1220 = vmatpush2.bf16.msra.mxu0 0
    %1221 = vmatprep.mubr.bf16.mxu0 0
    %1222 = vmatmul.mubr.bf16.gmra.mxu0 %v1181
    %v1223 = vpop.f32.mrf.mxu0
    %v1224 = vadd.f32 0.0, %v1223
    %v1225 = vpop.f32.mrf.mxu0
    %v1226 = vpop.f32.mrf.mxu0
    %v1227 = vadd.f32 0.0, %v1226
    %v1228 = vpop.f32.mrf.mxu0
    %1229 = vmatprep.mubr.bf16.mxu0 0
    %1230 = vmatmul.mubr.bf16.gmra.mxu0 %v1184
    %v1231 = vpop.f32.mrf.mxu0
    %v1232 = vadd.f32 0.0, %v1231
    %v1233 = vpop.f32.mrf.mxu0
    %v1234 = vpop.f32.mrf.mxu0
    %v1235 = vadd.f32 0.0, %v1234
    %v1236 = vpop.f32.mrf.mxu0
    %1237 = vdwg.mxu0
    %v1238 = vadd.f32 %v921, %v1224
    %v1239 = vadd.f32 %v924, %v1227
    %v1240 = vadd.f32 %v929, %v1232
    %v1241 = vadd.f32 %v932, %v1235
    %1242 = vrot.lane.b32.xlu0 %v322, 104
    %v1243 = vpop.permute.xlu0 %1242
    %1244 = vrot.lane.b32.xlu0 %v324, 72
    %v1245 = vpop.permute.xlu0 %1244
    %v1247 = vsel %vm329, %v1243, 0
    %v1250 = vsel %vm329, %v1245, 0
    %1252 = vmatprep.subr.bf16.mxu0 0
    %1253 = vmatpush1.bf16.xpose.msra.mxu0 0
    %1254 = vmatprep.subr.bf16.mxu0 0
    %1255 = vmatpush1.bf16.xpose.msra.mxu0 0
    %1256 = vmatprep.subr.bf16.mxu0 0
    %1257 = vmatpush1.bf16.xpose.msra.mxu0 0
    %1258 = vmatprep.subr.bf16.mxu0 0
    %1259 = vmatpush1.bf16.xpose.msra.mxu0 0
    %1260 = vmatprep.subr.bf16.mxu0 0
    %1261 = vmatpush1.bf16.xpose.msra.mxu0 0
    %1262 = vmatprep.subr.bf16.mxu0 0
    %1263 = vmatpush1.bf16.xpose.msra.mxu0 0
    %1264 = vmatprep.subr.bf16.mxu0 0
    %1265 = vmatpush1.bf16.xpose.msra.mxu0 0
    %1266 = vmatprep.subr.bf16.mxu0 0
    %1267 = vmatpush1.bf16.xpose.msra.mxu0 %v1250
    %1268 = vmatprep.subr.bf16.mxu0 0
    %1269 = vmatpush2.bf16.xpose.msra.mxu0 0
    %1270 = vmatprep.subr.bf16.mxu0 0
    %1271 = vmatpush2.bf16.xpose.msra.mxu0 0
    %1272 = vmatprep.subr.bf16.mxu0 0
    %1273 = vmatpush2.bf16.xpose.msra.mxu0 0
    %1274 = vmatprep.subr.bf16.mxu0 0
    %1275 = vmatpush2.bf16.xpose.msra.mxu0 0
    %1276 = vmatprep.subr.bf16.mxu0 0
    %1277 = vmatpush2.bf16.xpose.msra.mxu0 0
    %1278 = vmatprep.subr.bf16.mxu0 0
    %1279 = vmatpush2.bf16.xpose.msra.mxu0 0
    %1280 = vmatprep.subr.bf16.mxu0 0
    %1281 = vmatpush2.bf16.xpose.msra.mxu0 0
    %1282 = vmatprep.subr.bf16.mxu0 0
    %1283 = vmatpush2.bf16.xpose.msra.mxu0 0
    %1284 = vmatprep.mubr.bf16.mxu0 0
    %1285 = vmatmul.mubr.bf16.gmra.mxu0 %v1247
    %v1286 = vpop.f32.mrf.mxu0
    %v1287 = vadd.f32 %v160, %v1286
    %v1288 = vpop.f32.mrf.mxu0
    %v1289 = vpop.f32.mrf.mxu0
    %v1290 = vadd.f32 %v161, %v1289
    %v1291 = vpop.f32.mrf.mxu0
    %1292 = vdwg.mxu0
    %1293 = vrot.lane.b32.xlu0 %v323, 104
    %v1294 = vpop.permute.xlu0 %1293
    %1295 = vrot.lane.b32.xlu0 %v325, 72
    %v1296 = vpop.permute.xlu0 %1295
    %v1298 = vsel %vm329, %v1294, 0
    %v1301 = vsel %vm329, %v1296, 0
    %1303 = vmatprep.subr.bf16.mxu0 0
    %1304 = vmatpush1.bf16.xpose.msra.mxu0 0
    %1305 = vmatprep.subr.bf16.mxu0 0
    %1306 = vmatpush1.bf16.xpose.msra.mxu0 0
    %1307 = vmatprep.subr.bf16.mxu0 0
    %1308 = vmatpush1.bf16.xpose.msra.mxu0 0
    %1309 = vmatprep.subr.bf16.mxu0 0
    %1310 = vmatpush1.bf16.xpose.msra.mxu0 0
    %1311 = vmatprep.subr.bf16.mxu0 0
    %1312 = vmatpush1.bf16.xpose.msra.mxu0 0
    %1313 = vmatprep.subr.bf16.mxu0 0
    %1314 = vmatpush1.bf16.xpose.msra.mxu0 0
    %1315 = vmatprep.subr.bf16.mxu0 0
    %1316 = vmatpush1.bf16.xpose.msra.mxu0 0
    %1317 = vmatprep.subr.bf16.mxu0 0
    %1318 = vmatpush1.bf16.xpose.msra.mxu0 %v1301
    %1319 = vmatprep.subr.bf16.mxu0 0
    %1320 = vmatpush2.bf16.xpose.msra.mxu0 0
    %1321 = vmatprep.subr.bf16.mxu0 0
    %1322 = vmatpush2.bf16.xpose.msra.mxu0 0
    %1323 = vmatprep.subr.bf16.mxu0 0
    %1324 = vmatpush2.bf16.xpose.msra.mxu0 0
    %1325 = vmatprep.subr.bf16.mxu0 0
    %1326 = vmatpush2.bf16.xpose.msra.mxu0 0
    %1327 = vmatprep.subr.bf16.mxu0 0
    %1328 = vmatpush2.bf16.xpose.msra.mxu0 0
    %1329 = vmatprep.subr.bf16.mxu0 0
    %1330 = vmatpush2.bf16.xpose.msra.mxu0 0
    %1331 = vmatprep.subr.bf16.mxu0 0
    %1332 = vmatpush2.bf16.xpose.msra.mxu0 0
    %1333 = vmatprep.subr.bf16.mxu0 0
    %1334 = vmatpush2.bf16.xpose.msra.mxu0 0
    %1335 = vmatprep.mubr.bf16.mxu0 0
    %1336 = vmatmul.mubr.bf16.gmra.mxu0 %v1298
    %v1337 = vpop.f32.mrf.mxu0
    %v1338 = vadd.f32 %v162, %v1337
    %v1339 = vpop.f32.mrf.mxu0
    %v1340 = vpop.f32.mrf.mxu0
    %v1341 = vadd.f32 %v163, %v1340
    %v1342 = vpop.f32.mrf.mxu0
    %1343 = vdwg.mxu0
    %v1344 = vsel %vm427, %v1287, -inf
    %1345 = vmax.xlane.f32.xlu0 %v1344
    %v1346 = vpop.xlane.xlu0 %1345
    %v1347 = vsel %vm427, %v1290, -inf
    %1348 = vmax.xlane.f32.xlu0 %v1347
    %v1349 = vpop.xlane.xlu0 %1348
    %v1350 = vsel %vm427, %v1338, -inf
    %1351 = vmax.xlane.f32.xlu0 %v1350
    %v1352 = vpop.xlane.xlu0 %1351
    %v1353 = vsel %vm427, %v1341, -inf
    %1354 = vmax.xlane.f32.xlu0 %v1353
    %v1355 = vpop.xlane.xlu0 %1354
    %v1356 = vsub.f32 %v1287, %v1346
    %v1357 = vsub.f32 %v1290, %v1349
    %v1358 = vsub.f32 %v1338, %v1352
    %v1359 = vsub.f32 %v1341, %v1355
    %v1360 = vmul.f32 %v1356, 1.442695
    %v1361 = vpow.pop %v1360
    %v1362 = vmul.f32 %v1357, 1.442695
    %v1363 = vpow.pop %v1362
    %v1364 = vmul.f32 %v1358, 1.442695
    %v1365 = vpow.pop %v1364
    %v1366 = vmul.f32 %v1359, 1.442695
    %v1367 = vpow.pop %v1366
    %v1368 = vsel %vm427, %v1361, 0.0
    %1369 = vadd.xlane.f32.xlu0 %v1368
    %v1370 = vpop.xlane.xlu0 %1369
    %v1371 = vsel %vm427, %v1363, 0.0
    %1372 = vadd.xlane.f32.xlu0 %v1371
    %v1373 = vpop.xlane.xlu0 %1372
    %v1374 = vsel %vm427, %v1365, 0.0
    %1375 = vadd.xlane.f32.xlu0 %v1374
    %v1376 = vpop.xlane.xlu0 %1375
    %v1377 = vsel %vm427, %v1367, 0.0
    %1378 = vadd.xlane.f32.xlu0 %v1377
    %v1379 = vpop.xlane.xlu0 %1378
    %v1380 = vrcp.pop %v1370
    %v1381 = vrcp.pop %v1373
    %v1382 = vrcp.pop %v1376
    %v1383 = vrcp.pop %v1379
    %v1384 = vmul.f32 %v1361, %v1380
    %v1385 = vmul.f32 %v1363, %v1381
    %v1386 = vmul.f32 %v1365, %v1382
    %v1387 = vmul.f32 %v1367, %v1383
    %v1388 = vpack.c.bf16 %v1385, %v1384
    %v1389 = vpack.c.bf16 %v1387, %v1386
    %1390 = vrot.lane.b32.xlu0 %v324, 40
    %v1391 = vpop.permute.xlu0 %1390
    %v1394 = vsel %vm427, %v1388, 0
    %1396 = vmatprep.subr.bf16.mxu0 0
    %1397 = vmatpush1.bf16.msra.mxu0 0
    %1398 = vmatprep.subr.bf16.mxu0 0
    %1399 = vmatpush1.bf16.msra.mxu0 0
    %1400 = vmatprep.subr.bf16.mxu0 0
    %1401 = vmatpush1.bf16.msra.mxu0 0
    %1402 = vmatprep.subr.bf16.mxu0 0
    %1403 = vmatpush1.bf16.msra.mxu0 0
    %1404 = vmatprep.subr.bf16.mxu0 0
    %1405 = vmatpush1.bf16.msra.mxu0 0
    %1406 = vmatprep.subr.bf16.mxu0 0
    %1407 = vmatpush1.bf16.msra.mxu0 0
    %1408 = vmatprep.subr.bf16.mxu0 0
    %1409 = vmatpush1.bf16.msra.mxu0 0
    %1410 = vmatprep.subr.bf16.mxu0 0
    %1411 = vmatpush1.bf16.msra.mxu0 %v1391
    %1412 = vmatprep.subr.bf16.mxu0 0
    %1413 = vmatpush2.bf16.msra.mxu0 0
    %1414 = vmatprep.subr.bf16.mxu0 0
    %1415 = vmatpush2.bf16.msra.mxu0 0
    %1416 = vmatprep.subr.bf16.mxu0 0
    %1417 = vmatpush2.bf16.msra.mxu0 0
    %1418 = vmatprep.subr.bf16.mxu0 0
    %1419 = vmatpush2.bf16.msra.mxu0 0
    %1420 = vmatprep.subr.bf16.mxu0 0
    %1421 = vmatpush2.bf16.msra.mxu0 0
    %1422 = vmatprep.subr.bf16.mxu0 0
    %1423 = vmatpush2.bf16.msra.mxu0 0
    %1424 = vmatprep.subr.bf16.mxu0 0
    %1425 = vmatpush2.bf16.msra.mxu0 0
    %1426 = vmatprep.subr.bf16.mxu0 0
    %1427 = vmatpush2.bf16.msra.mxu0 0
    %1428 = vmatprep.mubr.bf16.mxu0 0
    %1429 = vmatmul.mubr.bf16.gmra.mxu0 %v1394
    %v1430 = vpop.f32.mrf.mxu0
    %v1431 = vadd.f32 0.0, %v1430
    %v1432 = vpop.f32.mrf.mxu0
    %v1433 = vpop.f32.mrf.mxu0
    %v1434 = vadd.f32 0.0, %v1433
    %v1435 = vpop.f32.mrf.mxu0
    %1436 = vdwg.mxu0
    %1437 = vrot.lane.b32.xlu0 %v325, 40
    %v1438 = vpop.permute.xlu0 %1437
    %v1441 = vsel %vm427, %v1389, 0
    %1443 = vmatprep.subr.bf16.mxu0 0
    %1444 = vmatpush1.bf16.msra.mxu0 0
    %1445 = vmatprep.subr.bf16.mxu0 0
    %1446 = vmatpush1.bf16.msra.mxu0 0
    %1447 = vmatprep.subr.bf16.mxu0 0
    %1448 = vmatpush1.bf16.msra.mxu0 0
    %1449 = vmatprep.subr.bf16.mxu0 0
    %1450 = vmatpush1.bf16.msra.mxu0 0
    %1451 = vmatprep.subr.bf16.mxu0 0
    %1452 = vmatpush1.bf16.msra.mxu0 0
    %1453 = vmatprep.subr.bf16.mxu0 0
    %1454 = vmatpush1.bf16.msra.mxu0 0
    %1455 = vmatprep.subr.bf16.mxu0 0
    %1456 = vmatpush1.bf16.msra.mxu0 0
    %1457 = vmatprep.subr.bf16.mxu0 0
    %1458 = vmatpush1.bf16.msra.mxu0 %v1438
    %1459 = vmatprep.subr.bf16.mxu0 0
    %1460 = vmatpush2.bf16.msra.mxu0 0
    %1461 = vmatprep.subr.bf16.mxu0 0
    %1462 = vmatpush2.bf16.msra.mxu0 0
    %1463 = vmatprep.subr.bf16.mxu0 0
    %1464 = vmatpush2.bf16.msra.mxu0 0
    %1465 = vmatprep.subr.bf16.mxu0 0
    %1466 = vmatpush2.bf16.msra.mxu0 0
    %1467 = vmatprep.subr.bf16.mxu0 0
    %1468 = vmatpush2.bf16.msra.mxu0 0
    %1469 = vmatprep.subr.bf16.mxu0 0
    %1470 = vmatpush2.bf16.msra.mxu0 0
    %1471 = vmatprep.subr.bf16.mxu0 0
    %1472 = vmatpush2.bf16.msra.mxu0 0
    %1473 = vmatprep.subr.bf16.mxu0 0
    %1474 = vmatpush2.bf16.msra.mxu0 0
    %1475 = vmatprep.mubr.bf16.mxu0 0
    %1476 = vmatmul.mubr.bf16.gmra.mxu0 %v1441
    %v1477 = vpop.f32.mrf.mxu0
    %v1478 = vadd.f32 0.0, %v1477
    %v1479 = vpop.f32.mrf.mxu0
    %v1480 = vpop.f32.mrf.mxu0
    %v1481 = vadd.f32 0.0, %v1480
    %v1482 = vpop.f32.mrf.mxu0
    %1483 = vdwg.mxu0
    %v1484 = vpack.c.bf16 %v1434, %v1431
    %v1485 = vpack.c.bf16 %v1481, %v1478
    %v1486 = vpack.c.bf16 %v317, %v317
    %v1488 = vsel %vm329, %v1484, 0
    %v1491 = vsel %vm329, %v1485, 0
    %v1494 = vsel %vm824, %v1486, 0
    %1496 = vmatprep.subr.bf16.mxu0 0
    %1497 = vmatpush1.bf16.msra.mxu0 0
    %1498 = vmatprep.subr.bf16.mxu0 0
    %1499 = vmatpush1.bf16.msra.mxu0 0
    %1500 = vmatprep.subr.bf16.mxu0 0
    %1501 = vmatpush1.bf16.msra.mxu0 0
    %1502 = vmatprep.subr.bf16.mxu0 0
    %1503 = vmatpush1.bf16.msra.mxu0 0
    %1504 = vmatprep.subr.bf16.mxu0 0
    %1505 = vmatpush1.bf16.msra.mxu0 0
    %1506 = vmatprep.subr.bf16.mxu0 0
    %1507 = vmatpush1.bf16.msra.mxu0 0
    %1508 = vmatprep.subr.bf16.mxu0 0
    %1509 = vmatpush1.bf16.msra.mxu0 0
    %1510 = vmatprep.subr.bf16.mxu0 0
    %1511 = vmatpush1.bf16.msra.mxu0 %v1494
    %1512 = vmatprep.subr.bf16.mxu0 0
    %1513 = vmatpush2.bf16.msra.mxu0 0
    %1514 = vmatprep.subr.bf16.mxu0 0
    %1515 = vmatpush2.bf16.msra.mxu0 0
    %1516 = vmatprep.subr.bf16.mxu0 0
    %1517 = vmatpush2.bf16.msra.mxu0 0
    %1518 = vmatprep.subr.bf16.mxu0 0
    %1519 = vmatpush2.bf16.msra.mxu0 0
    %1520 = vmatprep.subr.bf16.mxu0 0
    %1521 = vmatpush2.bf16.msra.mxu0 0
    %1522 = vmatprep.subr.bf16.mxu0 0
    %1523 = vmatpush2.bf16.msra.mxu0 0
    %1524 = vmatprep.subr.bf16.mxu0 0
    %1525 = vmatpush2.bf16.msra.mxu0 0
    %1526 = vmatprep.subr.bf16.mxu0 0
    %1527 = vmatpush2.bf16.msra.mxu0 0
    %1528 = vmatprep.mubr.bf16.mxu0 0
    %1529 = vmatmul.mubr.bf16.gmra.mxu0 %v1488
    %v1530 = vpop.f32.mrf.mxu0
    %v1531 = vadd.f32 0.0, %v1530
    %v1532 = vpop.f32.mrf.mxu0
    %v1533 = vpop.f32.mrf.mxu0
    %v1534 = vadd.f32 0.0, %v1533
    %v1535 = vpop.f32.mrf.mxu0
    %1536 = vmatprep.mubr.bf16.mxu0 0
    %1537 = vmatmul.mubr.bf16.gmra.mxu0 %v1491
    %v1538 = vpop.f32.mrf.mxu0
    %v1539 = vadd.f32 0.0, %v1538
    %v1540 = vpop.f32.mrf.mxu0
    %v1541 = vpop.f32.mrf.mxu0
    %v1542 = vadd.f32 0.0, %v1541
    %v1543 = vpop.f32.mrf.mxu0
    %1544 = vdwg.mxu0
    %v1545 = vadd.f32 %v1238, %v1531
    %v1546 = vadd.f32 %v1239, %v1534
    %v1547 = vadd.f32 %v1240, %v1539
    %v1548 = vadd.f32 %v1241, %v1542
    %v1549 = vld [vmem:[%s9] sm:$0x1]
    %v1551 = vlaneseq
    %v1552 = vshrl.u32 %v1551, 7
    %v1553 = vsub.s32 0, %v1552
    %v1554 = vrot.slane %v1549, %v1553
    %v1556 = vadd.f32 %v1545, %v1554
    %v1557 = vadd.f32 %v1546, %v1554
    %v1558 = vadd.f32 %v1547, %v1554
    %v1559 = vadd.f32 %v1548, %v1554
    %v1560 = vadd.f32 %v240, %v1556
    %v1561 = vadd.f32 %v241, %v1557
    %v1562 = vadd.f32 %v242, %v1558
    %v1563 = vadd.f32 %v243, %v1559
    %v1564 = vld [vmem:[%s10] sm:$0x1]
    %v1565 = vld [vmem:[%s11] sm:$0x1]
    %v1566 = vsel %vm170, %v1560, 0.0
    %1567 = vadd.xlane.f32.xlu0 %v1566
    %v1568 = vpop.xlane.xlu0 %1567
    %v1569 = vsel %vm170, %v1561, 0.0
    %1570 = vadd.xlane.f32.xlu0 %v1569
    %v1571 = vpop.xlane.xlu0 %1570
    %v1572 = vsel %vm170, %v1562, 0.0
    %1573 = vadd.xlane.f32.xlu0 %v1572
    %v1574 = vpop.xlane.xlu0 %1573
    %v1575 = vsel %vm170, %v1563, 0.0
    %1576 = vadd.xlane.f32.xlu0 %v1575
    %v1577 = vpop.xlane.xlu0 %1576
    %v1578 = vmul.f32 %v1568, %v183
    %v1579 = vmul.f32 %v1571, %v183
    %v1580 = vmul.f32 %v1574, %v183
    %v1581 = vmul.f32 %v1577, %v183
    %v1582 = vsub.f32 %v1560, %v1578
    %v1583 = vsub.f32 %v1561, %v1579
    %v1584 = vsub.f32 %v1562, %v1580
    %v1585 = vsub.f32 %v1563, %v1581
    %v1586 = vmul.f32 %v1582, %v1582
    %v1587 = vmul.f32 %v1583, %v1583
    %v1588 = vmul.f32 %v1584, %v1584
    %v1589 = vmul.f32 %v1585, %v1585
    %v1590 = vsel %vm170, %v1586, 0.0
    %1591 = vadd.xlane.f32.xlu0 %v1590
    %v1592 = vpop.xlane.xlu0 %1591
    %v1593 = vsel %vm170, %v1587, 0.0
    %1594 = vadd.xlane.f32.xlu0 %v1593
    %v1595 = vpop.xlane.xlu0 %1594
    %v1596 = vsel %vm170, %v1588, 0.0
    %1597 = vadd.xlane.f32.xlu0 %v1596
    %v1598 = vpop.xlane.xlu0 %1597
    %v1599 = vsel %vm170, %v1589, 0.0
    %1600 = vadd.xlane.f32.xlu0 %v1599
    %v1601 = vpop.xlane.xlu0 %1600
    %v1602 = vmul.f32 %v1592, %v183
    %v1603 = vmul.f32 %v1595, %v183
    %v1604 = vmul.f32 %v1598, %v183
    %v1605 = vmul.f32 %v1601, %v183
    %v1606 = vadd.f32 %v1602, 1e-05
    %v1607 = vadd.f32 %v1603, 1e-05
    %v1608 = vadd.f32 %v1604, 1e-05
    %v1609 = vadd.f32 %v1605, 1e-05
    %v1610 = vrsqrt.pop %v1606
    %v1611 = vrsqrt.pop %v1607
    %v1612 = vrsqrt.pop %v1608
    %v1613 = vrsqrt.pop %v1609
    %v1614 = vmul.f32 %v1582, %v1610
    %v1615 = vmul.f32 %v1583, %v1611
    %v1616 = vmul.f32 %v1584, %v1612
    %v1617 = vmul.f32 %v1585, %v1613
    %v1619 = vlaneseq
    %v1620 = vshrl.u32 %v1619, 7
    %v1621 = vsub.s32 0, %v1620
    %v1622 = vrot.slane %v1564, %v1621
    %v1624 = vmul.f32 %v1614, %v1622
    %v1625 = vmul.f32 %v1615, %v1622
    %v1626 = vmul.f32 %v1616, %v1622
    %v1627 = vmul.f32 %v1617, %v1622
    %v1629 = vlaneseq
    %v1630 = vshrl.u32 %v1629, 7
    %v1631 = vsub.s32 0, %v1630
    %v1632 = vrot.slane %v1565, %v1631
    %v1634 = vadd.f32 %v1624, %v1632
    %v1635 = vadd.f32 %v1625, %v1632
    %v1636 = vadd.f32 %v1626, %v1632
    %v1637 = vadd.f32 %v1627, %v1632
    %v1638 = vld [vmem:[%s12] sm:$0xff]
    %v1639 = vld [vmem:[%s12 + $0x8] sm:$0xff]
    %v1640 = vld [vmem:[%s12 + $0x10] sm:$0xff]
    %v1641 = vld [vmem:[%s12 + $0x18] sm:$0xff]
    %v1642 = vpack.c.bf16 %v1635, %v1634
    %v1643 = vpack.c.bf16 %v1637, %v1636
    %v1644 = vpack.c.bf16 %v1639, %v1638
    %v1645 = vpack.c.bf16 %v1641, %v1640
    %v1646 = vld [vmem:[%s13] sm:$0x1]
    %v1648 = vlaneseq
    %v1649 = vshrl.u32 %v1648, 7
    %v1650 = vsub.s32 0, %v1649
    %v1651 = vrot.slane %v1646, %v1650
    %v1654 = vsel %vm170, %v1642, 0
    %v1657 = vsel %vm170, %v1643, 0
    %1659 = vmatprep.subr.bf16.mxu0 0
    %1660 = vmatpush1.bf16.msra.mxu0 0
    %1661 = vmatprep.subr.bf16.mxu0 0
    %1662 = vmatpush1.bf16.msra.mxu0 0
    %1663 = vmatprep.subr.bf16.mxu0 0
    %1664 = vmatpush1.bf16.msra.mxu0 0
    %1665 = vmatprep.subr.bf16.mxu0 0
    %1666 = vmatpush1.bf16.msra.mxu0 0
    %1667 = vmatprep.subr.bf16.mxu0 0
    %1668 = vmatpush1.bf16.msra.mxu0 0
    %1669 = vmatprep.subr.bf16.mxu0 0
    %1670 = vmatpush1.bf16.msra.mxu0 0
    %1671 = vmatprep.subr.bf16.mxu0 0
    %1672 = vmatpush1.bf16.msra.mxu0 %v1645
    %1673 = vmatprep.subr.bf16.mxu0 0
    %1674 = vmatpush1.bf16.msra.mxu0 %v1644
    %1675 = vmatprep.subr.bf16.mxu0 0
    %1676 = vmatpush2.bf16.msra.mxu0 0
    %1677 = vmatprep.subr.bf16.mxu0 0
    %1678 = vmatpush2.bf16.msra.mxu0 0
    %1679 = vmatprep.subr.bf16.mxu0 0
    %1680 = vmatpush2.bf16.msra.mxu0 0
    %1681 = vmatprep.subr.bf16.mxu0 0
    %1682 = vmatpush2.bf16.msra.mxu0 0
    %1683 = vmatprep.subr.bf16.mxu0 0
    %1684 = vmatpush2.bf16.msra.mxu0 0
    %1685 = vmatprep.subr.bf16.mxu0 0
    %1686 = vmatpush2.bf16.msra.mxu0 0
    %1687 = vmatprep.subr.bf16.mxu0 0
    %1688 = vmatpush2.bf16.msra.mxu0 0
    %1689 = vmatprep.subr.bf16.mxu0 0
    %1690 = vmatpush2.bf16.msra.mxu0 0
    %1691 = vmatprep.mubr.bf16.mxu0 0
    %1692 = vmatmul.mubr.bf16.gmra.mxu0 %v1654
    %v1693 = vpop.f32.mrf.mxu0
    %v1694 = vadd.f32 %v1651, %v1693
    %v1695 = vpop.f32.mrf.mxu0
    %v1696 = vpop.f32.mrf.mxu0
    %v1697 = vadd.f32 %v1651, %v1696
    %v1698 = vpop.f32.mrf.mxu0
    %1699 = vmatprep.mubr.bf16.mxu0 0
    %1700 = vmatmul.mubr.bf16.gmra.mxu0 %v1657
    %v1701 = vpop.f32.mrf.mxu0
    %v1702 = vadd.f32 %v1651, %v1701
    %v1703 = vpop.f32.mrf.mxu0
    %v1704 = vpop.f32.mrf.mxu0
    %v1705 = vadd.f32 %v1651, %v1704
    %v1706 = vpop.f32.mrf.mxu0
    %1707 = vdwg.mxu0
    %v1708 = vmul.f32 %v1694, 0.5
    %v1709 = vmul.f32 %v1697, 0.5
    %v1710 = vmul.f32 %v1702, 0.5
    %v1711 = vmul.f32 %v1705, 0.5
    %v1712 = vmul.f32 %v1694, 0.044715
    %v1713 = vmul.f32 %v1697, 0.044715
    %v1714 = vmul.f32 %v1702, 0.044715
    %v1715 = vmul.f32 %v1705, 0.044715
    %v1716 = vmul.f32 %v1712, %v1694
    %v1717 = vmul.f32 %v1713, %v1697
    %v1718 = vmul.f32 %v1714, %v1702
    %v1719 = vmul.f32 %v1715, %v1705
    %v1720 = vmul.f32 %v1716, %v1694
    %v1721 = vmul.f32 %v1717, %v1697
    %v1722 = vmul.f32 %v1718, %v1702
    %v1723 = vmul.f32 %v1719, %v1705
    %v1724 = vadd.f32 %v1694, %v1720
    %v1725 = vadd.f32 %v1697, %v1721
    %v1726 = vadd.f32 %v1702, %v1722
    %v1727 = vadd.f32 %v1705, %v1723
    %v1728 = vmul.f32 %v1724, 0.7978846
    %v1729 = vmul.f32 %v1725, 0.7978846
    %v1730 = vmul.f32 %v1726, 0.7978846
    %v1731 = vmul.f32 %v1727, 0.7978846
    %v1732 = vtanh.pop %v1728
    %v1733 = vtanh.pop %v1729
    %v1734 = vtanh.pop %v1730
    %v1735 = vtanh.pop %v1731
    %v1736 = vadd.f32 %v1732, 1.0
    %v1737 = vadd.f32 %v1733, 1.0
    %v1738 = vadd.f32 %v1734, 1.0
    %v1739 = vadd.f32 %v1735, 1.0
    %v1740 = vmul.f32 %v1708, %v1736
    %v1741 = vmul.f32 %v1709, %v1737
    %v1742 = vmul.f32 %v1710, %v1738
    %v1743 = vmul.f32 %v1711, %v1739
    %v1744 = vld [vmem:[%s14] sm:$0xff]
    %v1745 = vld [vmem:[%s14 + $0x8] sm:$0xff]
    %v1746 = vld [vmem:[%s14 + $0x10] sm:$0xff]
    %v1747 = vld [vmem:[%s14 + $0x18] sm:$0xff]
    %v1748 = vld [vmem:[%s14 + $0x20] sm:$0xff]
    %v1749 = vld [vmem:[%s14 + $0x28] sm:$0xff]
    %v1750 = vld [vmem:[%s14 + $0x30] sm:$0xff]
    %v1751 = vld [vmem:[%s14 + $0x38] sm:$0xff]
    %v1752 = vpack.c.bf16 %v1741, %v1740
    %v1753 = vpack.c.bf16 %v1743, %v1742
    %v1754 = vpack.c.bf16 %v1745, %v1744
    %v1755 = vpack.c.bf16 %v1747, %v1746
    %v1756 = vpack.c.bf16 %v1749, %v1748
    %v1757 = vpack.c.bf16 %v1751, %v1750
    %v1758 = vld [vmem:[%s15] sm:$0x1]
    %v1760 = vlaneseq
    %v1761 = vshrl.u32 %v1760, 7
    %v1762 = vsub.s32 0, %v1761
    %v1763 = vrot.slane %v1758, %v1762
    %vm1765 = vcmask 523264
    %v1767 = vsel %vm1765, %v1752, 0
    %v1770 = vsel %vm1765, %v1753, 0
    %1772 = vmatprep.subr.bf16.mxu0 0
    %1773 = vmatpush1.bf16.msra.mxu0 0
    %1774 = vmatprep.subr.bf16.mxu0 0
    %1775 = vmatpush1.bf16.msra.mxu0 0
    %1776 = vmatprep.subr.bf16.mxu0 0
    %1777 = vmatpush1.bf16.msra.mxu0 0
    %1778 = vmatprep.subr.bf16.mxu0 0
    %1779 = vmatpush1.bf16.msra.mxu0 0
    %1780 = vmatprep.subr.bf16.mxu0 0
    %1781 = vmatpush1.bf16.msra.mxu0 %v1757
    %1782 = vmatprep.subr.bf16.mxu0 0
    %1783 = vmatpush1.bf16.msra.mxu0 %v1756
    %1784 = vmatprep.subr.bf16.mxu0 0
    %1785 = vmatpush1.bf16.msra.mxu0 %v1755
    %1786 = vmatprep.subr.bf16.mxu0 0
    %1787 = vmatpush1.bf16.msra.mxu0 %v1754
    %1788 = vmatprep.subr.bf16.mxu0 0
    %1789 = vmatpush2.bf16.msra.mxu0 0
    %1790 = vmatprep.subr.bf16.mxu0 0
    %1791 = vmatpush2.bf16.msra.mxu0 0
    %1792 = vmatprep.subr.bf16.mxu0 0
    %1793 = vmatpush2.bf16.msra.mxu0 0
    %1794 = vmatprep.subr.bf16.mxu0 0
    %1795 = vmatpush2.bf16.msra.mxu0 0
    %1796 = vmatprep.subr.bf16.mxu0 0
    %1797 = vmatpush2.bf16.msra.mxu0 0
    %1798 = vmatprep.subr.bf16.mxu0 0
    %1799 = vmatpush2.bf16.msra.mxu0 0
    %1800 = vmatprep.subr.bf16.mxu0 0
    %1801 = vmatpush2.bf16.msra.mxu0 0
    %1802 = vmatprep.subr.bf16.mxu0 0
    %1803 = vmatpush2.bf16.msra.mxu0 0
    %1804 = vmatprep.mubr.bf16.mxu0 0
    %1805 = vmatmul.mubr.bf16.gmra.mxu0 %v1767
    %v1806 = vpop.f32.mrf.mxu0
    %v1807 = vadd.f32 %v1763, %v1806
    %v1808 = vpop.f32.mrf.mxu0
    %v1809 = vpop.f32.mrf.mxu0
    %v1810 = vadd.f32 %v1763, %v1809
    %v1811 = vpop.f32.mrf.mxu0
    %1812 = vmatprep.mubr.bf16.mxu0 0
    %1813 = vmatmul.mubr.bf16.gmra.mxu0 %v1770
    %v1814 = vpop.f32.mrf.mxu0
    %v1815 = vadd.f32 %v1763, %v1814
    %v1816 = vpop.f32.mrf.mxu0
    %v1817 = vpop.f32.mrf.mxu0
    %v1818 = vadd.f32 %v1763, %v1817
    %v1819 = vpop.f32.mrf.mxu0
    %1820 = vdwg.mxu0
    %v1821 = vadd.f32 %v1634, %v1807
    %v1822 = vadd.f32 %v1635, %v1810
    %v1823 = vadd.f32 %v1636, %v1815
    %v1824 = vadd.f32 %v1637, %v1818
    %v1825 = vld [vmem:[%s16] sm:$0x1]
    %v1826 = vld [vmem:[%s17] sm:$0x1]
    %v1827 = vsel %vm170, %v1821, 0.0
    %1828 = vadd.xlane.f32.xlu0 %v1827
    %v1829 = vpop.xlane.xlu0 %1828
    %v1830 = vsel %vm170, %v1822, 0.0
    %1831 = vadd.xlane.f32.xlu0 %v1830
    %v1832 = vpop.xlane.xlu0 %1831
    %v1833 = vsel %vm170, %v1823, 0.0
    %1834 = vadd.xlane.f32.xlu0 %v1833
    %v1835 = vpop.xlane.xlu0 %1834
    %v1836 = vsel %vm170, %v1824, 0.0
    %1837 = vadd.xlane.f32.xlu0 %v1836
    %v1838 = vpop.xlane.xlu0 %1837
    %v1839 = vmul.f32 %v1829, %v183
    %v1840 = vmul.f32 %v1832, %v183
    %v1841 = vmul.f32 %v1835, %v183
    %v1842 = vmul.f32 %v1838, %v183
    %v1843 = vsub.f32 %v1821, %v1839
    %v1844 = vsub.f32 %v1822, %v1840
    %v1845 = vsub.f32 %v1823, %v1841
    %v1846 = vsub.f32 %v1824, %v1842
    %v1847 = vmul.f32 %v1843, %v1843
    %v1848 = vmul.f32 %v1844, %v1844
    %v1849 = vmul.f32 %v1845, %v1845
    %v1850 = vmul.f32 %v1846, %v1846
    %v1851 = vsel %vm170, %v1847, 0.0
    %1852 = vadd.xlane.f32.xlu0 %v1851
    %v1853 = vpop.xlane.xlu0 %1852
    %v1854 = vsel %vm170, %v1848, 0.0
    %1855 = vadd.xlane.f32.xlu0 %v1854
    %v1856 = vpop.xlane.xlu0 %1855
    %v1857 = vsel %vm170, %v1849, 0.0
    %1858 = vadd.xlane.f32.xlu0 %v1857
    %v1859 = vpop.xlane.xlu0 %1858
    %v1860 = vsel %vm170, %v1850, 0.0
    %1861 = vadd.xlane.f32.xlu0 %v1860
    %v1862 = vpop.xlane.xlu0 %1861
    %v1863 = vmul.f32 %v1853, %v183
    %v1864 = vmul.f32 %v1856, %v183
    %v1865 = vmul.f32 %v1859, %v183
    %v1866 = vmul.f32 %v1862, %v183
    %v1867 = vadd.f32 %v1863, 1e-05
    %v1868 = vadd.f32 %v1864, 1e-05
    %v1869 = vadd.f32 %v1865, 1e-05
    %v1870 = vadd.f32 %v1866, 1e-05
    %v1871 = vrsqrt.pop %v1867
    %v1872 = vrsqrt.pop %v1868
    %v1873 = vrsqrt.pop %v1869
    %v1874 = vrsqrt.pop %v1870
    %v1875 = vmul.f32 %v1843, %v1871
    %v1876 = vmul.f32 %v1844, %v1872
    %v1877 = vmul.f32 %v1845, %v1873
    %v1878 = vmul.f32 %v1846, %v1874
    %v1880 = vlaneseq
    %v1881 = vshrl.u32 %v1880, 7
    %v1882 = vsub.s32 0, %v1881
    %v1883 = vrot.slane %v1825, %v1882
    %v1885 = vmul.f32 %v1875, %v1883
    %v1886 = vmul.f32 %v1876, %v1883
    %v1887 = vmul.f32 %v1877, %v1883
    %v1888 = vmul.f32 %v1878, %v1883
    %v1890 = vlaneseq
    %v1891 = vshrl.u32 %v1890, 7
    %v1892 = vsub.s32 0, %v1891
    %v1893 = vrot.slane %v1826, %v1892
    %v1895 = vadd.f32 %v1885, %v1893
    %v1896 = vadd.f32 %v1886, %v1893
    %v1897 = vadd.f32 %v1887, %v1893
    %v1898 = vadd.f32 %v1888, %v1893
    %s1899 = scalar_lea.vmem %s6, 32
    %v1900 = vld [vmem:[%s1899] sm:$0xff]
    %v1901 = vld [vmem:[%s1899 + $0x8] sm:$0xff]
    %v1902 = vld [vmem:[%s1899 + $0x10] sm:$0xff]
    %v1903 = vld [vmem:[%s1899 + $0x18] sm:$0xff]
    %v1904 = vpack.c.bf16 %v1896, %v1895
    %v1905 = vpack.c.bf16 %v1898, %v1897
    %v1906 = vpack.c.bf16 %v1901, %v1900
    %v1907 = vpack.c.bf16 %v1903, %v1902
    %s1908 = scalar_lea.vmem %s7, 1
    %v1909 = vld [vmem:[%s1908] sm:$0x1]
    %v1911 = vlaneseq
    %v1912 = vshrl.u32 %v1911, 7
    %v1913 = vsub.s32 0, %v1912
    %v1914 = vrot.slane %v1909, %v1913
    %v1917 = vsel %vm170, %v1904, 0
    %v1920 = vsel %vm170, %v1905, 0
    %1922 = vmatprep.subr.bf16.mxu0 0
    %1923 = vmatpush1.bf16.msra.mxu0 0
    %1924 = vmatprep.subr.bf16.mxu0 0
    %1925 = vmatpush1.bf16.msra.mxu0 0
    %1926 = vmatprep.subr.bf16.mxu0 0
    %1927 = vmatpush1.bf16.msra.mxu0 0
    %1928 = vmatprep.subr.bf16.mxu0 0
    %1929 = vmatpush1.bf16.msra.mxu0 0
    %1930 = vmatprep.subr.bf16.mxu0 0
    %1931 = vmatpush1.bf16.msra.mxu0 0
    %1932 = vmatprep.subr.bf16.mxu0 0
    %1933 = vmatpush1.bf16.msra.mxu0 0
    %1934 = vmatprep.subr.bf16.mxu0 0
    %1935 = vmatpush1.bf16.msra.mxu0 %v1907
    %1936 = vmatprep.subr.bf16.mxu0 0
    %1937 = vmatpush1.bf16.msra.mxu0 %v1906
    %1938 = vmatprep.subr.bf16.mxu0 0
    %1939 = vmatpush2.bf16.msra.mxu0 0
    %1940 = vmatprep.subr.bf16.mxu0 0
    %1941 = vmatpush2.bf16.msra.mxu0 0
    %1942 = vmatprep.subr.bf16.mxu0 0
    %1943 = vmatpush2.bf16.msra.mxu0 0
    %1944 = vmatprep.subr.bf16.mxu0 0
    %1945 = vmatpush2.bf16.msra.mxu0 0
    %1946 = vmatprep.subr.bf16.mxu0 0
    %1947 = vmatpush2.bf16.msra.mxu0 0
    %1948 = vmatprep.subr.bf16.mxu0 0
    %1949 = vmatpush2.bf16.msra.mxu0 0
    %1950 = vmatprep.subr.bf16.mxu0 0
    %1951 = vmatpush2.bf16.msra.mxu0 0
    %1952 = vmatprep.subr.bf16.mxu0 0
    %1953 = vmatpush2.bf16.msra.mxu0 0
    %1954 = vmatprep.mubr.bf16.mxu0 0
    %1955 = vmatmul.mubr.bf16.gmra.mxu0 %v1917
    %v1956 = vpop.f32.mrf.mxu0
    %v1957 = vadd.f32 %v1914, %v1956
    %v1958 = vpop.f32.mrf.mxu0
    %v1959 = vpop.f32.mrf.mxu0
    %v1960 = vadd.f32 %v1914, %v1959
    %v1961 = vpop.f32.mrf.mxu0
    %1962 = vmatprep.mubr.bf16.mxu0 0
    %1963 = vmatmul.mubr.bf16.gmra.mxu0 %v1920
    %v1964 = vpop.f32.mrf.mxu0
    %v1965 = vadd.f32 %v1914, %v1964
    %v1966 = vpop.f32.mrf.mxu0
    %v1967 = vpop.f32.mrf.mxu0
    %v1968 = vadd.f32 %v1914, %v1967
    %v1969 = vpop.f32.mrf.mxu0
    %1970 = vdwg.mxu0
    %s1971 = scalar_lea.vmem %s8, 32
    %v1972 = vld [vmem:[%s1971] sm:$0xff]
    %v1973 = vld [vmem:[%s1971 + $0x8] sm:$0xff]
    %v1974 = vld [vmem:[%s1971 + $0x10] sm:$0xff]
    %v1975 = vld [vmem:[%s1971 + $0x18] sm:$0xff]
    %v1976 = vmul.f32 %v1957, 0.35355338
    %v1977 = vmul.f32 %v1960, 0.35355338
    %v1978 = vmul.f32 %v1965, 0.35355338
    %v1979 = vmul.f32 %v1968, 0.35355338
    %v1980 = vpack.c.bf16 %v1977, %v1976
    %v1981 = vpack.c.bf16 %v1979, %v1978
    %v1982 = vpack.c.bf16 %v1960, %v1957
    %v1983 = vpack.c.bf16 %v1968, %v1965
    %1985 = vrot.lane.b32.xlu0 %v1982, 96
    %v1986 = vpop.permute.xlu0 %1985
    %v1988 = vsel %vm329, %v1980, 0
    %v1991 = vsel %vm329, %v1986, 0
    %1993 = vmatprep.subr.bf16.mxu0 0
    %1994 = vmatpush1.bf16.xpose.msra.mxu0 0
    %1995 = vmatprep.subr.bf16.mxu0 0
    %1996 = vmatpush1.bf16.xpose.msra.mxu0 0
    %1997 = vmatprep.subr.bf16.mxu0 0
    %1998 = vmatpush1.bf16.xpose.msra.mxu0 0
    %1999 = vmatprep.subr.bf16.mxu0 0
    %2000 = vmatpush1.bf16.xpose.msra.mxu0 0
    %2001 = vmatprep.subr.bf16.mxu0 0
    %2002 = vmatpush1.bf16.xpose.msra.mxu0 0
    %2003 = vmatprep.subr.bf16.mxu0 0
    %2004 = vmatpush1.bf16.xpose.msra.mxu0 0
    %2005 = vmatprep.subr.bf16.mxu0 0
    %2006 = vmatpush1.bf16.xpose.msra.mxu0 0
    %2007 = vmatprep.subr.bf16.mxu0 0
    %2008 = vmatpush1.bf16.xpose.msra.mxu0 %v1991
    %2009 = vmatprep.subr.bf16.mxu0 0
    %2010 = vmatpush2.bf16.xpose.msra.mxu0 0
    %2011 = vmatprep.subr.bf16.mxu0 0
    %2012 = vmatpush2.bf16.xpose.msra.mxu0 0
    %2013 = vmatprep.subr.bf16.mxu0 0
    %2014 = vmatpush2.bf16.xpose.msra.mxu0 0
    %2015 = vmatprep.subr.bf16.mxu0 0
    %2016 = vmatpush2.bf16.xpose.msra.mxu0 0
    %2017 = vmatprep.subr.bf16.mxu0 0
    %2018 = vmatpush2.bf16.xpose.msra.mxu0 0
    %2019 = vmatprep.subr.bf16.mxu0 0
    %2020 = vmatpush2.bf16.xpose.msra.mxu0 0
    %2021 = vmatprep.subr.bf16.mxu0 0
    %2022 = vmatpush2.bf16.xpose.msra.mxu0 0
    %2023 = vmatprep.subr.bf16.mxu0 0
    %2024 = vmatpush2.bf16.xpose.msra.mxu0 0
    %2025 = vmatprep.mubr.bf16.mxu0 0
    %2026 = vmatmul.mubr.bf16.gmra.mxu0 %v1988
    %v2027 = vpop.f32.mrf.mxu0
    %v2028 = vadd.f32 %v160, %v2027
    %v2029 = vpop.f32.mrf.mxu0
    %v2030 = vpop.f32.mrf.mxu0
    %v2031 = vadd.f32 %v161, %v2030
    %v2032 = vpop.f32.mrf.mxu0
    %2033 = vdwg.mxu0
    %2035 = vrot.lane.b32.xlu0 %v1983, 96
    %v2036 = vpop.permute.xlu0 %2035
    %v2038 = vsel %vm329, %v1981, 0
    %v2041 = vsel %vm329, %v2036, 0
    %2043 = vmatprep.subr.bf16.mxu0 0
    %2044 = vmatpush1.bf16.xpose.msra.mxu0 0
    %2045 = vmatprep.subr.bf16.mxu0 0
    %2046 = vmatpush1.bf16.xpose.msra.mxu0 0
    %2047 = vmatprep.subr.bf16.mxu0 0
    %2048 = vmatpush1.bf16.xpose.msra.mxu0 0
    %2049 = vmatprep.subr.bf16.mxu0 0
    %2050 = vmatpush1.bf16.xpose.msra.mxu0 0
    %2051 = vmatprep.subr.bf16.mxu0 0
    %2052 = vmatpush1.bf16.xpose.msra.mxu0 0
    %2053 = vmatprep.subr.bf16.mxu0 0
    %2054 = vmatpush1.bf16.xpose.msra.mxu0 0
    %2055 = vmatprep.subr.bf16.mxu0 0
    %2056 = vmatpush1.bf16.xpose.msra.mxu0 0
    %2057 = vmatprep.subr.bf16.mxu0 0
    %2058 = vmatpush1.bf16.xpose.msra.mxu0 %v2041
    %2059 = vmatprep.subr.bf16.mxu0 0
    %2060 = vmatpush2.bf16.xpose.msra.mxu0 0
    %2061 = vmatprep.subr.bf16.mxu0 0
    %2062 = vmatpush2.bf16.xpose.msra.mxu0 0
    %2063 = vmatprep.subr.bf16.mxu0 0
    %2064 = vmatpush2.bf16.xpose.msra.mxu0 0
    %2065 = vmatprep.subr.bf16.mxu0 0
    %2066 = vmatpush2.bf16.xpose.msra.mxu0 0
    %2067 = vmatprep.subr.bf16.mxu0 0
    %2068 = vmatpush2.bf16.xpose.msra.mxu0 0
    %2069 = vmatprep.subr.bf16.mxu0 0
    %2070 = vmatpush2.bf16.xpose.msra.mxu0 0
    %2071 = vmatprep.subr.bf16.mxu0 0
    %2072 = vmatpush2.bf16.xpose.msra.mxu0 0
    %2073 = vmatprep.subr.bf16.mxu0 0
    %2074 = vmatpush2.bf16.xpose.msra.mxu0 0
    %2075 = vmatprep.mubr.bf16.mxu0 0
    %2076 = vmatmul.mubr.bf16.gmra.mxu0 %v2038
    %v2077 = vpop.f32.mrf.mxu0
    %v2078 = vadd.f32 %v162, %v2077
    %v2079 = vpop.f32.mrf.mxu0
    %v2080 = vpop.f32.mrf.mxu0
    %v2081 = vadd.f32 %v163, %v2080
    %v2082 = vpop.f32.mrf.mxu0
    %2083 = vdwg.mxu0
    %v2084 = vsel %vm427, %v2028, -inf
    %2085 = vmax.xlane.f32.xlu0 %v2084
    %v2086 = vpop.xlane.xlu0 %2085
    %v2087 = vsel %vm427, %v2031, -inf
    %2088 = vmax.xlane.f32.xlu0 %v2087
    %v2089 = vpop.xlane.xlu0 %2088
    %v2090 = vsel %vm427, %v2078, -inf
    %2091 = vmax.xlane.f32.xlu0 %v2090
    %v2092 = vpop.xlane.xlu0 %2091
    %v2093 = vsel %vm427, %v2081, -inf
    %2094 = vmax.xlane.f32.xlu0 %v2093
    %v2095 = vpop.xlane.xlu0 %2094
    %v2096 = vsub.f32 %v2028, %v2086
    %v2097 = vsub.f32 %v2031, %v2089
    %v2098 = vsub.f32 %v2078, %v2092
    %v2099 = vsub.f32 %v2081, %v2095
    %v2100 = vmul.f32 %v2096, 1.442695
    %v2101 = vpow.pop %v2100
    %v2102 = vmul.f32 %v2097, 1.442695
    %v2103 = vpow.pop %v2102
    %v2104 = vmul.f32 %v2098, 1.442695
    %v2105 = vpow.pop %v2104
    %v2106 = vmul.f32 %v2099, 1.442695
    %v2107 = vpow.pop %v2106
    %v2108 = vsel %vm427, %v2101, 0.0
    %2109 = vadd.xlane.f32.xlu0 %v2108
    %v2110 = vpop.xlane.xlu0 %2109
    %v2111 = vsel %vm427, %v2103, 0.0
    %2112 = vadd.xlane.f32.xlu0 %v2111
    %v2113 = vpop.xlane.xlu0 %2112
    %v2114 = vsel %vm427, %v2105, 0.0
    %2115 = vadd.xlane.f32.xlu0 %v2114
    %v2116 = vpop.xlane.xlu0 %2115
    %v2117 = vsel %vm427, %v2107, 0.0
    %2118 = vadd.xlane.f32.xlu0 %v2117
    %v2119 = vpop.xlane.xlu0 %2118
    %v2120 = vrcp.pop %v2110
    %v2121 = vrcp.pop %v2113
    %v2122 = vrcp.pop %v2116
    %v2123 = vrcp.pop %v2119
    %v2124 = vmul.f32 %v2101, %v2120
    %v2125 = vmul.f32 %v2103, %v2121
    %v2126 = vmul.f32 %v2105, %v2122
    %v2127 = vmul.f32 %v2107, %v2123
    %v2128 = vpack.c.bf16 %v2125, %v2124
    %v2129 = vpack.c.bf16 %v2127, %v2126
    %2130 = vrot.lane.b32.xlu0 %v1982, 64
    %v2131 = vpop.permute.xlu0 %2130
    %v2134 = vsel %vm427, %v2128, 0
    %2136 = vmatprep.subr.bf16.mxu0 0
    %2137 = vmatpush1.bf16.msra.mxu0 0
    %2138 = vmatprep.subr.bf16.mxu0 0
    %2139 = vmatpush1.bf16.msra.mxu0 0
    %2140 = vmatprep.subr.bf16.mxu0 0
    %2141 = vmatpush1.bf16.msra.mxu0 0
    %2142 = vmatprep.subr.bf16.mxu0 0
    %2143 = vmatpush1.bf16.msra.mxu0 0
    %2144 = vmatprep.subr.bf16.mxu0 0
    %2145 = vmatpush1.bf16.msra.mxu0 0
    %2146 = vmatprep.subr.bf16.mxu0 0
    %2147 = vmatpush1.bf16.msra.mxu0 0
    %2148 = vmatprep.subr.bf16.mxu0 0
    %2149 = vmatpush1.bf16.msra.mxu0 0
    %2150 = vmatprep.subr.bf16.mxu0 0
    %2151 = vmatpush1.bf16.msra.mxu0 %v2131
    %2152 = vmatprep.subr.bf16.mxu0 0
    %2153 = vmatpush2.bf16.msra.mxu0 0
    %2154 = vmatprep.subr.bf16.mxu0 0
    %2155 = vmatpush2.bf16.msra.mxu0 0
    %2156 = vmatprep.subr.bf16.mxu0 0
    %2157 = vmatpush2.bf16.msra.mxu0 0
    %2158 = vmatprep.subr.bf16.mxu0 0
    %2159 = vmatpush2.bf16.msra.mxu0 0
    %2160 = vmatprep.subr.bf16.mxu0 0
    %2161 = vmatpush2.bf16.msra.mxu0 0
    %2162 = vmatprep.subr.bf16.mxu0 0
    %2163 = vmatpush2.bf16.msra.mxu0 0
    %2164 = vmatprep.subr.bf16.mxu0 0
    %2165 = vmatpush2.bf16.msra.mxu0 0
    %2166 = vmatprep.subr.bf16.mxu0 0
    %2167 = vmatpush2.bf16.msra.mxu0 0
    %2168 = vmatprep.mubr.bf16.mxu0 0
    %2169 = vmatmul.mubr.bf16.gmra.mxu0 %v2134
    %v2170 = vpop.f32.mrf.mxu0
    %v2171 = vadd.f32 0.0, %v2170
    %v2172 = vpop.f32.mrf.mxu0
    %v2173 = vpop.f32.mrf.mxu0
    %v2174 = vadd.f32 0.0, %v2173
    %v2175 = vpop.f32.mrf.mxu0
    %2176 = vdwg.mxu0
    %2177 = vrot.lane.b32.xlu0 %v1983, 64
    %v2178 = vpop.permute.xlu0 %2177
    %v2181 = vsel %vm427, %v2129, 0
    %2183 = vmatprep.subr.bf16.mxu0 0
    %2184 = vmatpush1.bf16.msra.mxu0 0
    %2185 = vmatprep.subr.bf16.mxu0 0
    %2186 = vmatpush1.bf16.msra.mxu0 0
    %2187 = vmatprep.subr.bf16.mxu0 0
    %2188 = vmatpush1.bf16.msra.mxu0 0
    %2189 = vmatprep.subr.bf16.mxu0 0
    %2190 = vmatpush1.bf16.msra.mxu0 0
    %2191 = vmatprep.subr.bf16.mxu0 0
    %2192 = vmatpush1.bf16.msra.mxu0 0
    %2193 = vmatprep.subr.bf16.mxu0 0
    %2194 = vmatpush1.bf16.msra.mxu0 0
    %2195 = vmatprep.subr.bf16.mxu0 0
    %2196 = vmatpush1.bf16.msra.mxu0 0
    %2197 = vmatprep.subr.bf16.mxu0 0
    %2198 = vmatpush1.bf16.msra.mxu0 %v2178
    %2199 = vmatprep.subr.bf16.mxu0 0
    %2200 = vmatpush2.bf16.msra.mxu0 0
    %2201 = vmatprep.subr.bf16.mxu0 0
    %2202 = vmatpush2.bf16.msra.mxu0 0
    %2203 = vmatprep.subr.bf16.mxu0 0
    %2204 = vmatpush2.bf16.msra.mxu0 0
    %2205 = vmatprep.subr.bf16.mxu0 0
    %2206 = vmatpush2.bf16.msra.mxu0 0
    %2207 = vmatprep.subr.bf16.mxu0 0
    %2208 = vmatpush2.bf16.msra.mxu0 0
    %2209 = vmatprep.subr.bf16.mxu0 0
    %2210 = vmatpush2.bf16.msra.mxu0 0
    %2211 = vmatprep.subr.bf16.mxu0 0
    %2212 = vmatpush2.bf16.msra.mxu0 0
    %2213 = vmatprep.subr.bf16.mxu0 0
    %2214 = vmatpush2.bf16.msra.mxu0 0
    %2215 = vmatprep.mubr.bf16.mxu0 0
    %2216 = vmatmul.mubr.bf16.gmra.mxu0 %v2181
    %v2217 = vpop.f32.mrf.mxu0
    %v2218 = vadd.f32 0.0, %v2217
    %v2219 = vpop.f32.mrf.mxu0
    %v2220 = vpop.f32.mrf.mxu0
    %v2221 = vadd.f32 0.0, %v2220
    %v2222 = vpop.f32.mrf.mxu0
    %2223 = vdwg.mxu0
    %v2224 = vpack.c.bf16 %v2174, %v2171
    %v2225 = vpack.c.bf16 %v2221, %v2218
    %v2226 = vpack.c.bf16 %v1972, %v1972
    %2228 = vrot.lane.b32.xlu0 %v1980, 120
    %v2229 = vpop.permute.xlu0 %2228
    %2230 = vrot.lane.b32.xlu0 %v1982, 88
    %v2231 = vpop.permute.xlu0 %2230
    %v2233 = vsel %vm329, %v2229, 0
    %v2236 = vsel %vm329, %v2231, 0
    %2238 = vmatprep.subr.bf16.mxu0 0
    %2239 = vmatpush1.bf16.xpose.msra.mxu0 0
    %2240 = vmatprep.subr.bf16.mxu0 0
    %2241 = vmatpush1.bf16.xpose.msra.mxu0 0
    %2242 = vmatprep.subr.bf16.mxu0 0
    %2243 = vmatpush1.bf16.xpose.msra.mxu0 0
    %2244 = vmatprep.subr.bf16.mxu0 0
    %2245 = vmatpush1.bf16.xpose.msra.mxu0 0
    %2246 = vmatprep.subr.bf16.mxu0 0
    %2247 = vmatpush1.bf16.xpose.msra.mxu0 0
    %2248 = vmatprep.subr.bf16.mxu0 0
    %2249 = vmatpush1.bf16.xpose.msra.mxu0 0
    %2250 = vmatprep.subr.bf16.mxu0 0
    %2251 = vmatpush1.bf16.xpose.msra.mxu0 0
    %2252 = vmatprep.subr.bf16.mxu0 0
    %2253 = vmatpush1.bf16.xpose.msra.mxu0 %v2236
    %2254 = vmatprep.subr.bf16.mxu0 0
    %2255 = vmatpush2.bf16.xpose.msra.mxu0 0
    %2256 = vmatprep.subr.bf16.mxu0 0
    %2257 = vmatpush2.bf16.xpose.msra.mxu0 0
    %2258 = vmatprep.subr.bf16.mxu0 0
    %2259 = vmatpush2.bf16.xpose.msra.mxu0 0
    %2260 = vmatprep.subr.bf16.mxu0 0
    %2261 = vmatpush2.bf16.xpose.msra.mxu0 0
    %2262 = vmatprep.subr.bf16.mxu0 0
    %2263 = vmatpush2.bf16.xpose.msra.mxu0 0
    %2264 = vmatprep.subr.bf16.mxu0 0
    %2265 = vmatpush2.bf16.xpose.msra.mxu0 0
    %2266 = vmatprep.subr.bf16.mxu0 0
    %2267 = vmatpush2.bf16.xpose.msra.mxu0 0
    %2268 = vmatprep.subr.bf16.mxu0 0
    %2269 = vmatpush2.bf16.xpose.msra.mxu0 0
    %2270 = vmatprep.mubr.bf16.mxu0 0
    %2271 = vmatmul.mubr.bf16.gmra.mxu0 %v2233
    %v2272 = vpop.f32.mrf.mxu0
    %v2273 = vadd.f32 %v160, %v2272
    %v2274 = vpop.f32.mrf.mxu0
    %v2275 = vpop.f32.mrf.mxu0
    %v2276 = vadd.f32 %v161, %v2275
    %v2277 = vpop.f32.mrf.mxu0
    %2278 = vdwg.mxu0
    %2280 = vrot.lane.b32.xlu0 %v1981, 120
    %v2281 = vpop.permute.xlu0 %2280
    %2282 = vrot.lane.b32.xlu0 %v1983, 88
    %v2283 = vpop.permute.xlu0 %2282
    %v2285 = vsel %vm329, %v2281, 0
    %v2288 = vsel %vm329, %v2283, 0
    %2290 = vmatprep.subr.bf16.mxu0 0
    %2291 = vmatpush1.bf16.xpose.msra.mxu0 0
    %2292 = vmatprep.subr.bf16.mxu0 0
    %2293 = vmatpush1.bf16.xpose.msra.mxu0 0
    %2294 = vmatprep.subr.bf16.mxu0 0
    %2295 = vmatpush1.bf16.xpose.msra.mxu0 0
    %2296 = vmatprep.subr.bf16.mxu0 0
    %2297 = vmatpush1.bf16.xpose.msra.mxu0 0
    %2298 = vmatprep.subr.bf16.mxu0 0
    %2299 = vmatpush1.bf16.xpose.msra.mxu0 0
    %2300 = vmatprep.subr.bf16.mxu0 0
    %2301 = vmatpush1.bf16.xpose.msra.mxu0 0
    %2302 = vmatprep.subr.bf16.mxu0 0
    %2303 = vmatpush1.bf16.xpose.msra.mxu0 0
    %2304 = vmatprep.subr.bf16.mxu0 0
    %2305 = vmatpush1.bf16.xpose.msra.mxu0 %v2288
    %2306 = vmatprep.subr.bf16.mxu0 0
    %2307 = vmatpush2.bf16.xpose.msra.mxu0 0
    %2308 = vmatprep.subr.bf16.mxu0 0
    %2309 = vmatpush2.bf16.xpose.msra.mxu0 0
    %2310 = vmatprep.subr.bf16.mxu0 0
    %2311 = vmatpush2.bf16.xpose.msra.mxu0 0
    %2312 = vmatprep.subr.bf16.mxu0 0
    %2313 = vmatpush2.bf16.xpose.msra.mxu0 0
    %2314 = vmatprep.subr.bf16.mxu0 0
    %2315 = vmatpush2.bf16.xpose.msra.mxu0 0
    %2316 = vmatprep.subr.bf16.mxu0 0
    %2317 = vmatpush2.bf16.xpose.msra.mxu0 0
    %2318 = vmatprep.subr.bf16.mxu0 0
    %2319 = vmatpush2.bf16.xpose.msra.mxu0 0
    %2320 = vmatprep.subr.bf16.mxu0 0
    %2321 = vmatpush2.bf16.xpose.msra.mxu0 0
    %2322 = vmatprep.mubr.bf16.mxu0 0
    %2323 = vmatmul.mubr.bf16.gmra.mxu0 %v2285
    %v2324 = vpop.f32.mrf.mxu0
    %v2325 = vadd.f32 %v162, %v2324
    %v2326 = vpop.f32.mrf.mxu0
    %v2327 = vpop.f32.mrf.mxu0
    %v2328 = vadd.f32 %v163, %v2327
    %v2329 = vpop.f32.mrf.mxu0
    %2330 = vdwg.mxu0
    %v2331 = vsel %vm427, %v2273, -inf
    %2332 = vmax.xlane.f32.xlu0 %v2331
    %v2333 = vpop.xlane.xlu0 %2332
    %v2334 = vsel %vm427, %v2276, -inf
    %2335 = vmax.xlane.f32.xlu0 %v2334
    %v2336 = vpop.xlane.xlu0 %2335
    %v2337 = vsel %vm427, %v2325, -inf
    %2338 = vmax.xlane.f32.xlu0 %v2337
    %v2339 = vpop.xlane.xlu0 %2338
    %v2340 = vsel %vm427, %v2328, -inf
    %2341 = vmax.xlane.f32.xlu0 %v2340
    %v2342 = vpop.xlane.xlu0 %2341
    %v2343 = vsub.f32 %v2273, %v2333
    %v2344 = vsub.f32 %v2276, %v2336
    %v2345 = vsub.f32 %v2325, %v2339
    %v2346 = vsub.f32 %v2328, %v2342
    %v2347 = vmul.f32 %v2343, 1.442695
    %v2348 = vpow.pop %v2347
    %v2349 = vmul.f32 %v2344, 1.442695
    %v2350 = vpow.pop %v2349
    %v2351 = vmul.f32 %v2345, 1.442695
    %v2352 = vpow.pop %v2351
    %v2353 = vmul.f32 %v2346, 1.442695
    %v2354 = vpow.pop %v2353
    %v2355 = vsel %vm427, %v2348, 0.0
    %2356 = vadd.xlane.f32.xlu0 %v2355
    %v2357 = vpop.xlane.xlu0 %2356
    %v2358 = vsel %vm427, %v2350, 0.0
    %2359 = vadd.xlane.f32.xlu0 %v2358
    %v2360 = vpop.xlane.xlu0 %2359
    %v2361 = vsel %vm427, %v2352, 0.0
    %2362 = vadd.xlane.f32.xlu0 %v2361
    %v2363 = vpop.xlane.xlu0 %2362
    %v2364 = vsel %vm427, %v2354, 0.0
    %2365 = vadd.xlane.f32.xlu0 %v2364
    %v2366 = vpop.xlane.xlu0 %2365
    %v2367 = vrcp.pop %v2357
    %v2368 = vrcp.pop %v2360
    %v2369 = vrcp.pop %v2363
    %v2370 = vrcp.pop %v2366
    %v2371 = vmul.f32 %v2348, %v2367
    %v2372 = vmul.f32 %v2350, %v2368
    %v2373 = vmul.f32 %v2352, %v2369
    %v2374 = vmul.f32 %v2354, %v2370
    %v2375 = vpack.c.bf16 %v2372, %v2371
    %v2376 = vpack.c.bf16 %v2374, %v2373
    %2377 = vrot.lane.b32.xlu0 %v1982, 56
    %v2378 = vpop.permute.xlu0 %2377
    %v2381 = vsel %vm427, %v2375, 0
    %2383 = vmatprep.subr.bf16.mxu0 0
    %2384 = vmatpush1.bf16.msra.mxu0 0
    %2385 = vmatprep.subr.bf16.mxu0 0
    %2386 = vmatpush1.bf16.msra.mxu0 0
    %2387 = vmatprep.subr.bf16.mxu0 0
    %2388 = vmatpush1.bf16.msra.mxu0 0
    %2389 = vmatprep.subr.bf16.mxu0 0
    %2390 = vmatpush1.bf16.msra.mxu0 0
    %2391 = vmatprep.subr.bf16.mxu0 0
    %2392 = vmatpush1.bf16.msra.mxu0 0
    %2393 = vmatprep.subr.bf16.mxu0 0
    %2394 = vmatpush1.bf16.msra.mxu0 0
    %2395 = vmatprep.subr.bf16.mxu0 0
    %2396 = vmatpush1.bf16.msra.mxu0 0
    %2397 = vmatprep.subr.bf16.mxu0 0
    %2398 = vmatpush1.bf16.msra.mxu0 %v2378
    %2399 = vmatprep.subr.bf16.mxu0 0
    %2400 = vmatpush2.bf16.msra.mxu0 0
    %2401 = vmatprep.subr.bf16.mxu0 0
    %2402 = vmatpush2.bf16.msra.mxu0 0
    %2403 = vmatprep.subr.bf16.mxu0 0
    %2404 = vmatpush2.bf16.msra.mxu0 0
    %2405 = vmatprep.subr.bf16.mxu0 0
    %2406 = vmatpush2.bf16.msra.mxu0 0
    %2407 = vmatprep.subr.bf16.mxu0 0
    %2408 = vmatpush2.bf16.msra.mxu0 0
    %2409 = vmatprep.subr.bf16.mxu0 0
    %2410 = vmatpush2.bf16.msra.mxu0 0
    %2411 = vmatprep.subr.bf16.mxu0 0
    %2412 = vmatpush2.bf16.msra.mxu0 0
    %2413 = vmatprep.subr.bf16.mxu0 0
    %2414 = vmatpush2.bf16.msra.mxu0 0
    %2415 = vmatprep.mubr.bf16.mxu0 0
    %2416 = vmatmul.mubr.bf16.gmra.mxu0 %v2381
    %v2417 = vpop.f32.mrf.mxu0
    %v2418 = vadd.f32 0.0, %v2417
    %v2419 = vpop.f32.mrf.mxu0
    %v2420 = vpop.f32.mrf.mxu0
    %v2421 = vadd.f32 0.0, %v2420
    %v2422 = vpop.f32.mrf.mxu0
    %2423 = vdwg.mxu0
    %2424 = vrot.lane.b32.xlu0 %v1983, 56
    %v2425 = vpop.permute.xlu0 %2424
    %v2428 = vsel %vm427, %v2376, 0
    %2430 = vmatprep.subr.bf16.mxu0 0
    %2431 = vmatpush1.bf16.msra.mxu0 0
    %2432 = vmatprep.subr.bf16.mxu0 0
    %2433 = vmatpush1.bf16.msra.mxu0 0
    %2434 = vmatprep.subr.bf16.mxu0 0
    %2435 = vmatpush1.bf16.msra.mxu0 0
    %2436 = vmatprep.subr.bf16.mxu0 0
    %2437 = vmatpush1.bf16.msra.mxu0 0
    %2438 = vmatprep.subr.bf16.mxu0 0
    %2439 = vmatpush1.bf16.msra.mxu0 0
    %2440 = vmatprep.subr.bf16.mxu0 0
    %2441 = vmatpush1.bf16.msra.mxu0 0
    %2442 = vmatprep.subr.bf16.mxu0 0
    %2443 = vmatpush1.bf16.msra.mxu0 0
    %2444 = vmatprep.subr.bf16.mxu0 0
    %2445 = vmatpush1.bf16.msra.mxu0 %v2425
    %2446 = vmatprep.subr.bf16.mxu0 0
    %2447 = vmatpush2.bf16.msra.mxu0 0
    %2448 = vmatprep.subr.bf16.mxu0 0
    %2449 = vmatpush2.bf16.msra.mxu0 0
    %2450 = vmatprep.subr.bf16.mxu0 0
    %2451 = vmatpush2.bf16.msra.mxu0 0
    %2452 = vmatprep.subr.bf16.mxu0 0
    %2453 = vmatpush2.bf16.msra.mxu0 0
    %2454 = vmatprep.subr.bf16.mxu0 0
    %2455 = vmatpush2.bf16.msra.mxu0 0
    %2456 = vmatprep.subr.bf16.mxu0 0
    %2457 = vmatpush2.bf16.msra.mxu0 0
    %2458 = vmatprep.subr.bf16.mxu0 0
    %2459 = vmatpush2.bf16.msra.mxu0 0
    %2460 = vmatprep.subr.bf16.mxu0 0
    %2461 = vmatpush2.bf16.msra.mxu0 0
    %2462 = vmatprep.mubr.bf16.mxu0 0
    %2463 = vmatmul.mubr.bf16.gmra.mxu0 %v2428
    %v2464 = vpop.f32.mrf.mxu0
    %v2465 = vadd.f32 0.0, %v2464
    %v2466 = vpop.f32.mrf.mxu0
    %v2467 = vpop.f32.mrf.mxu0
    %v2468 = vadd.f32 0.0, %v2467
    %v2469 = vpop.f32.mrf.mxu0
    %2470 = vdwg.mxu0
    %v2471 = vpack.c.bf16 %v2421, %v2418
    %v2472 = vpack.c.bf16 %v2468, %v2465
    %v2473 = vpack.c.bf16 %v1973, %v1973
    %v2475 = vsel %vm329, %v2471, 0
    %v2478 = vsel %vm329, %v2472, 0
    %v2481 = vsel %vm824, %v2473, 0
    %2483 = vmatprep.subr.bf16.mxu0 0
    %2484 = vmatpush1.bf16.msra.mxu0 0
    %2485 = vmatprep.subr.bf16.mxu0 0
    %2486 = vmatpush1.bf16.msra.mxu0 0
    %2487 = vmatprep.subr.bf16.mxu0 0
    %2488 = vmatpush1.bf16.msra.mxu0 0
    %2489 = vmatprep.subr.bf16.mxu0 0
    %2490 = vmatpush1.bf16.msra.mxu0 0
    %2491 = vmatprep.subr.bf16.mxu0 0
    %2492 = vmatpush1.bf16.msra.mxu0 0
    %2493 = vmatprep.subr.bf16.mxu0 0
    %2494 = vmatpush1.bf16.msra.mxu0 0
    %2495 = vmatprep.subr.bf16.mxu0 0
    %2496 = vmatpush1.bf16.msra.mxu0 0
    %2497 = vmatprep.subr.bf16.mxu0 0
    %2498 = vmatpush1.bf16.msra.mxu0 %v2481
    %2499 = vmatprep.subr.bf16.mxu0 0
    %2500 = vmatpush2.bf16.msra.mxu0 0
    %2501 = vmatprep.subr.bf16.mxu0 0
    %2502 = vmatpush2.bf16.msra.mxu0 0
    %2503 = vmatprep.subr.bf16.mxu0 0
    %2504 = vmatpush2.bf16.msra.mxu0 0
    %2505 = vmatprep.subr.bf16.mxu0 0
    %2506 = vmatpush2.bf16.msra.mxu0 0
    %2507 = vmatprep.subr.bf16.mxu0 0
    %2508 = vmatpush2.bf16.msra.mxu0 0
    %2509 = vmatprep.subr.bf16.mxu0 0
    %2510 = vmatpush2.bf16.msra.mxu0 0
    %2511 = vmatprep.subr.bf16.mxu0 0
    %2512 = vmatpush2.bf16.msra.mxu0 0
    %2513 = vmatprep.subr.bf16.mxu0 0
    %2514 = vmatpush2.bf16.msra.mxu0 0
    %2515 = vmatprep.mubr.bf16.mxu0 0
    %2516 = vmatmul.mubr.bf16.gmra.mxu0 %v2475
    %v2517 = vpop.f32.mrf.mxu0
    %v2518 = vadd.f32 0.0, %v2517
    %v2519 = vpop.f32.mrf.mxu0
    %v2520 = vpop.f32.mrf.mxu0
    %v2521 = vadd.f32 0.0, %v2520
    %v2522 = vpop.f32.mrf.mxu0
    %2523 = vmatprep.mubr.bf16.mxu0 0
    %2524 = vmatmul.mubr.bf16.gmra.mxu0 %v2478
    %v2525 = vpop.f32.mrf.mxu0
    %v2526 = vadd.f32 0.0, %v2525
    %v2527 = vpop.f32.mrf.mxu0
    %v2528 = vpop.f32.mrf.mxu0
    %v2529 = vadd.f32 0.0, %v2528
    %v2530 = vpop.f32.mrf.mxu0
    %2531 = vdwg.mxu0
    %v2533 = vsel %vm329, %v2224, 0
    %v2536 = vsel %vm329, %v2225, 0
    %v2539 = vsel %vm824, %v2226, 0
    %2541 = vmatprep.subr.bf16.mxu0 0
    %2542 = vmatpush1.bf16.msra.mxu0 0
    %2543 = vmatprep.subr.bf16.mxu0 0
    %2544 = vmatpush1.bf16.msra.mxu0 0
    %2545 = vmatprep.subr.bf16.mxu0 0
    %2546 = vmatpush1.bf16.msra.mxu0 0
    %2547 = vmatprep.subr.bf16.mxu0 0
    %2548 = vmatpush1.bf16.msra.mxu0 0
    %2549 = vmatprep.subr.bf16.mxu0 0
    %2550 = vmatpush1.bf16.msra.mxu0 0
    %2551 = vmatprep.subr.bf16.mxu0 0
    %2552 = vmatpush1.bf16.msra.mxu0 0
    %2553 = vmatprep.subr.bf16.mxu0 0
    %2554 = vmatpush1.bf16.msra.mxu0 0
    %2555 = vmatprep.subr.bf16.mxu0 0
    %2556 = vmatpush1.bf16.msra.mxu0 %v2539
    %2557 = vmatprep.subr.bf16.mxu0 0
    %2558 = vmatpush2.bf16.msra.mxu0 0
    %2559 = vmatprep.subr.bf16.mxu0 0
    %2560 = vmatpush2.bf16.msra.mxu0 0
    %2561 = vmatprep.subr.bf16.mxu0 0
    %2562 = vmatpush2.bf16.msra.mxu0 0
    %2563 = vmatprep.subr.bf16.mxu0 0
    %2564 = vmatpush2.bf16.msra.mxu0 0
    %2565 = vmatprep.subr.bf16.mxu0 0
    %2566 = vmatpush2.bf16.msra.mxu0 0
    %2567 = vmatprep.subr.bf16.mxu0 0
    %2568 = vmatpush2.bf16.msra.mxu0 0
    %2569 = vmatprep.subr.bf16.mxu0 0
    %2570 = vmatpush2.bf16.msra.mxu0 0
    %2571 = vmatprep.subr.bf16.mxu0 0
    %2572 = vmatpush2.bf16.msra.mxu0 0
    %2573 = vmatprep.mubr.bf16.mxu0 0
    %2574 = vmatmul.mubr.bf16.gmra.mxu0 %v2533
    %v2575 = vpop.f32.mrf.mxu0
    %v2576 = vadd.f32 %v2518, %v2575
    %v2577 = vpop.f32.mrf.mxu0
    %v2578 = vpop.f32.mrf.mxu0
    %v2579 = vadd.f32 %v2521, %v2578
    %v2580 = vpop.f32.mrf.mxu0
    %2581 = vmatprep.mubr.bf16.mxu0 0
    %2582 = vmatmul.mubr.bf16.gmra.mxu0 %v2536
    %v2583 = vpop.f32.mrf.mxu0
    %v2584 = vadd.f32 %v2526, %v2583
    %v2585 = vpop.f32.mrf.mxu0
    %v2586 = vpop.f32.mrf.mxu0
    %v2587 = vadd.f32 %v2529, %v2586
    %v2588 = vpop.f32.mrf.mxu0
    %2589 = vdwg.mxu0
    %2590 = vrot.lane.b32.xlu0 %v1980, 112
    %v2591 = vpop.permute.xlu0 %2590
    %2592 = vrot.lane.b32.xlu0 %v1982, 80
    %v2593 = vpop.permute.xlu0 %2592
    %v2595 = vsel %vm329, %v2591, 0
    %v2598 = vsel %vm329, %v2593, 0
    %2600 = vmatprep.subr.bf16.mxu0 0
    %2601 = vmatpush1.bf16.xpose.msra.mxu0 0
    %2602 = vmatprep.subr.bf16.mxu0 0
    %2603 = vmatpush1.bf16.xpose.msra.mxu0 0
    %2604 = vmatprep.subr.bf16.mxu0 0
    %2605 = vmatpush1.bf16.xpose.msra.mxu0 0
    %2606 = vmatprep.subr.bf16.mxu0 0
    %2607 = vmatpush1.bf16.xpose.msra.mxu0 0
    %2608 = vmatprep.subr.bf16.mxu0 0
    %2609 = vmatpush1.bf16.xpose.msra.mxu0 0
    %2610 = vmatprep.subr.bf16.mxu0 0
    %2611 = vmatpush1.bf16.xpose.msra.mxu0 0
    %2612 = vmatprep.subr.bf16.mxu0 0
    %2613 = vmatpush1.bf16.xpose.msra.mxu0 0
    %2614 = vmatprep.subr.bf16.mxu0 0
    %2615 = vmatpush1.bf16.xpose.msra.mxu0 %v2598
    %2616 = vmatprep.subr.bf16.mxu0 0
    %2617 = vmatpush2.bf16.xpose.msra.mxu0 0
    %2618 = vmatprep.subr.bf16.mxu0 0
    %2619 = vmatpush2.bf16.xpose.msra.mxu0 0
    %2620 = vmatprep.subr.bf16.mxu0 0
    %2621 = vmatpush2.bf16.xpose.msra.mxu0 0
    %2622 = vmatprep.subr.bf16.mxu0 0
    %2623 = vmatpush2.bf16.xpose.msra.mxu0 0
    %2624 = vmatprep.subr.bf16.mxu0 0
    %2625 = vmatpush2.bf16.xpose.msra.mxu0 0
    %2626 = vmatprep.subr.bf16.mxu0 0
    %2627 = vmatpush2.bf16.xpose.msra.mxu0 0
    %2628 = vmatprep.subr.bf16.mxu0 0
    %2629 = vmatpush2.bf16.xpose.msra.mxu0 0
    %2630 = vmatprep.subr.bf16.mxu0 0
    %2631 = vmatpush2.bf16.xpose.msra.mxu0 0
    %2632 = vmatprep.mubr.bf16.mxu0 0
    %2633 = vmatmul.mubr.bf16.gmra.mxu0 %v2595
    %v2634 = vpop.f32.mrf.mxu0
    %v2635 = vadd.f32 %v160, %v2634
    %v2636 = vpop.f32.mrf.mxu0
    %v2637 = vpop.f32.mrf.mxu0
    %v2638 = vadd.f32 %v161, %v2637
    %v2639 = vpop.f32.mrf.mxu0
    %2640 = vdwg.mxu0
    %2641 = vrot.lane.b32.xlu0 %v1981, 112
    %v2642 = vpop.permute.xlu0 %2641
    %2643 = vrot.lane.b32.xlu0 %v1983, 80
    %v2644 = vpop.permute.xlu0 %2643
    %v2646 = vsel %vm329, %v2642, 0
    %v2649 = vsel %vm329, %v2644, 0
    %2651 = vmatprep.subr.bf16.mxu0 0
    %2652 = vmatpush1.bf16.xpose.msra.mxu0 0
    %2653 = vmatprep.subr.bf16.mxu0 0
    %2654 = vmatpush1.bf16.xpose.msra.mxu0 0
    %2655 = vmatprep.subr.bf16.mxu0 0
    %2656 = vmatpush1.bf16.xpose.msra.mxu0 0
    %2657 = vmatprep.subr.bf16.mxu0 0
    %2658 = vmatpush1.bf16.xpose.msra.mxu0 0
    %2659 = vmatprep.subr.bf16.mxu0 0
    %2660 = vmatpush1.bf16.xpose.msra.mxu0 0
    %2661 = vmatprep.subr.bf16.mxu0 0
    %2662 = vmatpush1.bf16.xpose.msra.mxu0 0
    %2663 = vmatprep.subr.bf16.mxu0 0
    %2664 = vmatpush1.bf16.xpose.msra.mxu0 0
    %2665 = vmatprep.subr.bf16.mxu0 0
    %2666 = vmatpush1.bf16.xpose.msra.mxu0 %v2649
    %2667 = vmatprep.subr.bf16.mxu0 0
    %2668 = vmatpush2.bf16.xpose.msra.mxu0 0
    %2669 = vmatprep.subr.bf16.mxu0 0
    %2670 = vmatpush2.bf16.xpose.msra.mxu0 0
    %2671 = vmatprep.subr.bf16.mxu0 0
    %2672 = vmatpush2.bf16.xpose.msra.mxu0 0
    %2673 = vmatprep.subr.bf16.mxu0 0
    %2674 = vmatpush2.bf16.xpose.msra.mxu0 0
    %2675 = vmatprep.subr.bf16.mxu0 0
    %2676 = vmatpush2.bf16.xpose.msra.mxu0 0
    %2677 = vmatprep.subr.bf16.mxu0 0
    %2678 = vmatpush2.bf16.xpose.msra.mxu0 0
    %2679 = vmatprep.subr.bf16.mxu0 0
    %2680 = vmatpush2.bf16.xpose.msra.mxu0 0
    %2681 = vmatprep.subr.bf16.mxu0 0
    %2682 = vmatpush2.bf16.xpose.msra.mxu0 0
    %2683 = vmatprep.mubr.bf16.mxu0 0
    %2684 = vmatmul.mubr.bf16.gmra.mxu0 %v2646
    %v2685 = vpop.f32.mrf.mxu0
    %v2686 = vadd.f32 %v162, %v2685
    %v2687 = vpop.f32.mrf.mxu0
    %v2688 = vpop.f32.mrf.mxu0
    %v2689 = vadd.f32 %v163, %v2688
    %v2690 = vpop.f32.mrf.mxu0
    %2691 = vdwg.mxu0
    %v2692 = vsel %vm427, %v2635, -inf
    %2693 = vmax.xlane.f32.xlu0 %v2692
    %v2694 = vpop.xlane.xlu0 %2693
    %v2695 = vsel %vm427, %v2638, -inf
    %2696 = vmax.xlane.f32.xlu0 %v2695
    %v2697 = vpop.xlane.xlu0 %2696
    %v2698 = vsel %vm427, %v2686, -inf
    %2699 = vmax.xlane.f32.xlu0 %v2698
    %v2700 = vpop.xlane.xlu0 %2699
    %v2701 = vsel %vm427, %v2689, -inf
    %2702 = vmax.xlane.f32.xlu0 %v2701
    %v2703 = vpop.xlane.xlu0 %2702
    %v2704 = vsub.f32 %v2635, %v2694
    %v2705 = vsub.f32 %v2638, %v2697
    %v2706 = vsub.f32 %v2686, %v2700
    %v2707 = vsub.f32 %v2689, %v2703
    %v2708 = vmul.f32 %v2704, 1.442695
    %v2709 = vpow.pop %v2708
    %v2710 = vmul.f32 %v2705, 1.442695
    %v2711 = vpow.pop %v2710
    %v2712 = vmul.f32 %v2706, 1.442695
    %v2713 = vpow.pop %v2712
    %v2714 = vmul.f32 %v2707, 1.442695
    %v2715 = vpow.pop %v2714
    %v2716 = vsel %vm427, %v2709, 0.0
    %2717 = vadd.xlane.f32.xlu0 %v2716
    %v2718 = vpop.xlane.xlu0 %2717
    %v2719 = vsel %vm427, %v2711, 0.0
    %2720 = vadd.xlane.f32.xlu0 %v2719
    %v2721 = vpop.xlane.xlu0 %2720
    %v2722 = vsel %vm427, %v2713, 0.0
    %2723 = vadd.xlane.f32.xlu0 %v2722
    %v2724 = vpop.xlane.xlu0 %2723
    %v2725 = vsel %vm427, %v2715, 0.0
    %2726 = vadd.xlane.f32.xlu0 %v2725
    %v2727 = vpop.xlane.xlu0 %2726
    %v2728 = vrcp.pop %v2718
    %v2729 = vrcp.pop %v2721
    %v2730 = vrcp.pop %v2724
    %v2731 = vrcp.pop %v2727
    %v2732 = vmul.f32 %v2709, %v2728
    %v2733 = vmul.f32 %v2711, %v2729
    %v2734 = vmul.f32 %v2713, %v2730
    %v2735 = vmul.f32 %v2715, %v2731
    %v2736 = vpack.c.bf16 %v2733, %v2732
    %v2737 = vpack.c.bf16 %v2735, %v2734
    %2738 = vrot.lane.b32.xlu0 %v1982, 48
    %v2739 = vpop.permute.xlu0 %2738
    %v2742 = vsel %vm427, %v2736, 0
    %2744 = vmatprep.subr.bf16.mxu0 0
    %2745 = vmatpush1.bf16.msra.mxu0 0
    %2746 = vmatprep.subr.bf16.mxu0 0
    %2747 = vmatpush1.bf16.msra.mxu0 0
    %2748 = vmatprep.subr.bf16.mxu0 0
    %2749 = vmatpush1.bf16.msra.mxu0 0
    %2750 = vmatprep.subr.bf16.mxu0 0
    %2751 = vmatpush1.bf16.msra.mxu0 0
    %2752 = vmatprep.subr.bf16.mxu0 0
    %2753 = vmatpush1.bf16.msra.mxu0 0
    %2754 = vmatprep.subr.bf16.mxu0 0
    %2755 = vmatpush1.bf16.msra.mxu0 0
    %2756 = vmatprep.subr.bf16.mxu0 0
    %2757 = vmatpush1.bf16.msra.mxu0 0
    %2758 = vmatprep.subr.bf16.mxu0 0
    %2759 = vmatpush1.bf16.msra.mxu0 %v2739
    %2760 = vmatprep.subr.bf16.mxu0 0
    %2761 = vmatpush2.bf16.msra.mxu0 0
    %2762 = vmatprep.subr.bf16.mxu0 0
    %2763 = vmatpush2.bf16.msra.mxu0 0
    %2764 = vmatprep.subr.bf16.mxu0 0
    %2765 = vmatpush2.bf16.msra.mxu0 0
    %2766 = vmatprep.subr.bf16.mxu0 0
    %2767 = vmatpush2.bf16.msra.mxu0 0
    %2768 = vmatprep.subr.bf16.mxu0 0
    %2769 = vmatpush2.bf16.msra.mxu0 0
    %2770 = vmatprep.subr.bf16.mxu0 0
    %2771 = vmatpush2.bf16.msra.mxu0 0
    %2772 = vmatprep.subr.bf16.mxu0 0
    %2773 = vmatpush2.bf16.msra.mxu0 0
    %2774 = vmatprep.subr.bf16.mxu0 0
    %2775 = vmatpush2.bf16.msra.mxu0 0
    %2776 = vmatprep.mubr.bf16.mxu0 0
    %2777 = vmatmul.mubr.bf16.gmra.mxu0 %v2742
    %v2778 = vpop.f32.mrf.mxu0
    %v2779 = vadd.f32 0.0, %v2778
    %v2780 = vpop.f32.mrf.mxu0
    %v2781 = vpop.f32.mrf.mxu0
    %v2782 = vadd.f32 0.0, %v2781
    %v2783 = vpop.f32.mrf.mxu0
    %2784 = vdwg.mxu0
    %2785 = vrot.lane.b32.xlu0 %v1983, 48
    %v2786 = vpop.permute.xlu0 %2785
    %v2789 = vsel %vm427, %v2737, 0
    %2791 = vmatprep.subr.bf16.mxu0 0
    %2792 = vmatpush1.bf16.msra.mxu0 0
    %2793 = vmatprep.subr.bf16.mxu0 0
    %2794 = vmatpush1.bf16.msra.mxu0 0
    %2795 = vmatprep.subr.bf16.mxu0 0
    %2796 = vmatpush1.bf16.msra.mxu0 0
    %2797 = vmatprep.subr.bf16.mxu0 0
    %2798 = vmatpush1.bf16.msra.mxu0 0
    %2799 = vmatprep.subr.bf16.mxu0 0
    %2800 = vmatpush1.bf16.msra.mxu0 0
    %2801 = vmatprep.subr.bf16.mxu0 0
    %2802 = vmatpush1.bf16.msra.mxu0 0
    %2803 = vmatprep.subr.bf16.mxu0 0
    %2804 = vmatpush1.bf16.msra.mxu0 0
    %2805 = vmatprep.subr.bf16.mxu0 0
    %2806 = vmatpush1.bf16.msra.mxu0 %v2786
    %2807 = vmatprep.subr.bf16.mxu0 0
    %2808 = vmatpush2.bf16.msra.mxu0 0
    %2809 = vmatprep.subr.bf16.mxu0 0
    %2810 = vmatpush2.bf16.msra.mxu0 0
    %2811 = vmatprep.subr.bf16.mxu0 0
    %2812 = vmatpush2.bf16.msra.mxu0 0
    %2813 = vmatprep.subr.bf16.mxu0 0
    %2814 = vmatpush2.bf16.msra.mxu0 0
    %2815 = vmatprep.subr.bf16.mxu0 0
    %2816 = vmatpush2.bf16.msra.mxu0 0
    %2817 = vmatprep.subr.bf16.mxu0 0
    %2818 = vmatpush2.bf16.msra.mxu0 0
    %2819 = vmatprep.subr.bf16.mxu0 0
    %2820 = vmatpush2.bf16.msra.mxu0 0
    %2821 = vmatprep.subr.bf16.mxu0 0
    %2822 = vmatpush2.bf16.msra.mxu0 0
    %2823 = vmatprep.mubr.bf16.mxu0 0
    %2824 = vmatmul.mubr.bf16.gmra.mxu0 %v2789
    %v2825 = vpop.f32.mrf.mxu0
    %v2826 = vadd.f32 0.0, %v2825
    %v2827 = vpop.f32.mrf.mxu0
    %v2828 = vpop.f32.mrf.mxu0
    %v2829 = vadd.f32 0.0, %v2828
    %v2830 = vpop.f32.mrf.mxu0
    %2831 = vdwg.mxu0
    %v2832 = vpack.c.bf16 %v2782, %v2779
    %v2833 = vpack.c.bf16 %v2829, %v2826
    %v2834 = vpack.c.bf16 %v1974, %v1974
    %v2836 = vsel %vm329, %v2832, 0
    %v2839 = vsel %vm329, %v2833, 0
    %v2842 = vsel %vm824, %v2834, 0
    %2844 = vmatprep.subr.bf16.mxu0 0
    %2845 = vmatpush1.bf16.msra.mxu0 0
    %2846 = vmatprep.subr.bf16.mxu0 0
    %2847 = vmatpush1.bf16.msra.mxu0 0
    %2848 = vmatprep.subr.bf16.mxu0 0
    %2849 = vmatpush1.bf16.msra.mxu0 0
    %2850 = vmatprep.subr.bf16.mxu0 0
    %2851 = vmatpush1.bf16.msra.mxu0 0
    %2852 = vmatprep.subr.bf16.mxu0 0
    %2853 = vmatpush1.bf16.msra.mxu0 0
    %2854 = vmatprep.subr.bf16.mxu0 0
    %2855 = vmatpush1.bf16.msra.mxu0 0
    %2856 = vmatprep.subr.bf16.mxu0 0
    %2857 = vmatpush1.bf16.msra.mxu0 0
    %2858 = vmatprep.subr.bf16.mxu0 0
    %2859 = vmatpush1.bf16.msra.mxu0 %v2842
    %2860 = vmatprep.subr.bf16.mxu0 0
    %2861 = vmatpush2.bf16.msra.mxu0 0
    %2862 = vmatprep.subr.bf16.mxu0 0
    %2863 = vmatpush2.bf16.msra.mxu0 0
    %2864 = vmatprep.subr.bf16.mxu0 0
    %2865 = vmatpush2.bf16.msra.mxu0 0
    %2866 = vmatprep.subr.bf16.mxu0 0
    %2867 = vmatpush2.bf16.msra.mxu0 0
    %2868 = vmatprep.subr.bf16.mxu0 0
    %2869 = vmatpush2.bf16.msra.mxu0 0
    %2870 = vmatprep.subr.bf16.mxu0 0
    %2871 = vmatpush2.bf16.msra.mxu0 0
    %2872 = vmatprep.subr.bf16.mxu0 0
    %2873 = vmatpush2.bf16.msra.mxu0 0
    %2874 = vmatprep.subr.bf16.mxu0 0
    %2875 = vmatpush2.bf16.msra.mxu0 0
    %2876 = vmatprep.mubr.bf16.mxu0 0
    %2877 = vmatmul.mubr.bf16.gmra.mxu0 %v2836
    %v2878 = vpop.f32.mrf.mxu0
    %v2879 = vadd.f32 0.0, %v2878
    %v2880 = vpop.f32.mrf.mxu0
    %v2881 = vpop.f32.mrf.mxu0
    %v2882 = vadd.f32 0.0, %v2881
    %v2883 = vpop.f32.mrf.mxu0
    %2884 = vmatprep.mubr.bf16.mxu0 0
    %2885 = vmatmul.mubr.bf16.gmra.mxu0 %v2839
    %v2886 = vpop.f32.mrf.mxu0
    %v2887 = vadd.f32 0.0, %v2886
    %v2888 = vpop.f32.mrf.mxu0
    %v2889 = vpop.f32.mrf.mxu0
    %v2890 = vadd.f32 0.0, %v2889
    %v2891 = vpop.f32.mrf.mxu0
    %2892 = vdwg.mxu0
    %v2893 = vadd.f32 %v2576, %v2879
    %v2894 = vadd.f32 %v2579, %v2882
    %v2895 = vadd.f32 %v2584, %v2887
    %v2896 = vadd.f32 %v2587, %v2890
    %2897 = vrot.lane.b32.xlu0 %v1980, 104
    %v2898 = vpop.permute.xlu0 %2897
    %2899 = vrot.lane.b32.xlu0 %v1982, 72
    %v2900 = vpop.permute.xlu0 %2899
    %v2902 = vsel %vm329, %v2898, 0
    %v2905 = vsel %vm329, %v2900, 0
    %2907 = vmatprep.subr.bf16.mxu0 0
    %2908 = vmatpush1.bf16.xpose.msra.mxu0 0
    %2909 = vmatprep.subr.bf16.mxu0 0
    %2910 = vmatpush1.bf16.xpose.msra.mxu0 0
    %2911 = vmatprep.subr.bf16.mxu0 0
    %2912 = vmatpush1.bf16.xpose.msra.mxu0 0
    %2913 = vmatprep.subr.bf16.mxu0 0
    %2914 = vmatpush1.bf16.xpose.msra.mxu0 0
    %2915 = vmatprep.subr.bf16.mxu0 0
    %2916 = vmatpush1.bf16.xpose.msra.mxu0 0
    %2917 = vmatprep.subr.bf16.mxu0 0
    %2918 = vmatpush1.bf16.xpose.msra.mxu0 0
    %2919 = vmatprep.subr.bf16.mxu0 0
    %2920 = vmatpush1.bf16.xpose.msra.mxu0 0
    %2921 = vmatprep.subr.bf16.mxu0 0
    %2922 = vmatpush1.bf16.xpose.msra.mxu0 %v2905
    %2923 = vmatprep.subr.bf16.mxu0 0
    %2924 = vmatpush2.bf16.xpose.msra.mxu0 0
    %2925 = vmatprep.subr.bf16.mxu0 0
    %2926 = vmatpush2.bf16.xpose.msra.mxu0 0
    %2927 = vmatprep.subr.bf16.mxu0 0
    %2928 = vmatpush2.bf16.xpose.msra.mxu0 0
    %2929 = vmatprep.subr.bf16.mxu0 0
    %2930 = vmatpush2.bf16.xpose.msra.mxu0 0
    %2931 = vmatprep.subr.bf16.mxu0 0
    %2932 = vmatpush2.bf16.xpose.msra.mxu0 0
    %2933 = vmatprep.subr.bf16.mxu0 0
    %2934 = vmatpush2.bf16.xpose.msra.mxu0 0
    %2935 = vmatprep.subr.bf16.mxu0 0
    %2936 = vmatpush2.bf16.xpose.msra.mxu0 0
    %2937 = vmatprep.subr.bf16.mxu0 0
    %2938 = vmatpush2.bf16.xpose.msra.mxu0 0
    %2939 = vmatprep.mubr.bf16.mxu0 0
    %2940 = vmatmul.mubr.bf16.gmra.mxu0 %v2902
    %v2941 = vpop.f32.mrf.mxu0
    %v2942 = vadd.f32 %v160, %v2941
    %v2943 = vpop.f32.mrf.mxu0
    %v2944 = vpop.f32.mrf.mxu0
    %v2945 = vadd.f32 %v161, %v2944
    %v2946 = vpop.f32.mrf.mxu0
    %2947 = vdwg.mxu0
    %2948 = vrot.lane.b32.xlu0 %v1981, 104
    %v2949 = vpop.permute.xlu0 %2948
    %2950 = vrot.lane.b32.xlu0 %v1983, 72
    %v2951 = vpop.permute.xlu0 %2950
    %v2953 = vsel %vm329, %v2949, 0
    %v2956 = vsel %vm329, %v2951, 0
    %2958 = vmatprep.subr.bf16.mxu0 0
    %2959 = vmatpush1.bf16.xpose.msra.mxu0 0
    %2960 = vmatprep.subr.bf16.mxu0 0
    %2961 = vmatpush1.bf16.xpose.msra.mxu0 0
    %2962 = vmatprep.subr.bf16.mxu0 0
    %2963 = vmatpush1.bf16.xpose.msra.mxu0 0
    %2964 = vmatprep.subr.bf16.mxu0 0
    %2965 = vmatpush1.bf16.xpose.msra.mxu0 0
    %2966 = vmatprep.subr.bf16.mxu0 0
    %2967 = vmatpush1.bf16.xpose.msra.mxu0 0
    %2968 = vmatprep.subr.bf16.mxu0 0
    %2969 = vmatpush1.bf16.xpose.msra.mxu0 0
    %2970 = vmatprep.subr.bf16.mxu0 0
    %2971 = vmatpush1.bf16.xpose.msra.mxu0 0
    %2972 = vmatprep.subr.bf16.mxu0 0
    %2973 = vmatpush1.bf16.xpose.msra.mxu0 %v2956
    %2974 = vmatprep.subr.bf16.mxu0 0
    %2975 = vmatpush2.bf16.xpose.msra.mxu0 0
    %2976 = vmatprep.subr.bf16.mxu0 0
    %2977 = vmatpush2.bf16.xpose.msra.mxu0 0
    %2978 = vmatprep.subr.bf16.mxu0 0
    %2979 = vmatpush2.bf16.xpose.msra.mxu0 0
    %2980 = vmatprep.subr.bf16.mxu0 0
    %2981 = vmatpush2.bf16.xpose.msra.mxu0 0
    %2982 = vmatprep.subr.bf16.mxu0 0
    %2983 = vmatpush2.bf16.xpose.msra.mxu0 0
    %2984 = vmatprep.subr.bf16.mxu0 0
    %2985 = vmatpush2.bf16.xpose.msra.mxu0 0
    %2986 = vmatprep.subr.bf16.mxu0 0
    %2987 = vmatpush2.bf16.xpose.msra.mxu0 0
    %2988 = vmatprep.subr.bf16.mxu0 0
    %2989 = vmatpush2.bf16.xpose.msra.mxu0 0
    %2990 = vmatprep.mubr.bf16.mxu0 0
    %2991 = vmatmul.mubr.bf16.gmra.mxu0 %v2953
    %v2992 = vpop.f32.mrf.mxu0
    %v2993 = vadd.f32 %v162, %v2992
    %v2994 = vpop.f32.mrf.mxu0
    %v2995 = vpop.f32.mrf.mxu0
    %v2996 = vadd.f32 %v163, %v2995
    %v2997 = vpop.f32.mrf.mxu0
    %2998 = vdwg.mxu0
    %v2999 = vsel %vm427, %v2942, -inf
    %3000 = vmax.xlane.f32.xlu0 %v2999
    %v3001 = vpop.xlane.xlu0 %3000
    %v3002 = vsel %vm427, %v2945, -inf
    %3003 = vmax.xlane.f32.xlu0 %v3002
    %v3004 = vpop.xlane.xlu0 %3003
    %v3005 = vsel %vm427, %v2993, -inf
    %3006 = vmax.xlane.f32.xlu0 %v3005
    %v3007 = vpop.xlane.xlu0 %3006
    %v3008 = vsel %vm427, %v2996, -inf
    %3009 = vmax.xlane.f32.xlu0 %v3008
    %v3010 = vpop.xlane.xlu0 %3009
    %v3011 = vsub.f32 %v2942, %v3001
    %v3012 = vsub.f32 %v2945, %v3004
    %v3013 = vsub.f32 %v2993, %v3007
    %v3014 = vsub.f32 %v2996, %v3010
    %v3015 = vmul.f32 %v3011, 1.442695
    %v3016 = vpow.pop %v3015
    %v3017 = vmul.f32 %v3012, 1.442695
    %v3018 = vpow.pop %v3017
    %v3019 = vmul.f32 %v3013, 1.442695
    %v3020 = vpow.pop %v3019
    %v3021 = vmul.f32 %v3014, 1.442695
    %v3022 = vpow.pop %v3021
    %v3023 = vsel %vm427, %v3016, 0.0
    %3024 = vadd.xlane.f32.xlu0 %v3023
    %v3025 = vpop.xlane.xlu0 %3024
    %v3026 = vsel %vm427, %v3018, 0.0
    %3027 = vadd.xlane.f32.xlu0 %v3026
    %v3028 = vpop.xlane.xlu0 %3027
    %v3029 = vsel %vm427, %v3020, 0.0
    %3030 = vadd.xlane.f32.xlu0 %v3029
    %v3031 = vpop.xlane.xlu0 %3030
    %v3032 = vsel %vm427, %v3022, 0.0
    %3033 = vadd.xlane.f32.xlu0 %v3032
    %v3034 = vpop.xlane.xlu0 %3033
    %v3035 = vrcp.pop %v3025
    %v3036 = vrcp.pop %v3028
    %v3037 = vrcp.pop %v3031
    %v3038 = vrcp.pop %v3034
    %v3039 = vmul.f32 %v3016, %v3035
    %v3040 = vmul.f32 %v3018, %v3036
    %v3041 = vmul.f32 %v3020, %v3037
    %v3042 = vmul.f32 %v3022, %v3038
    %v3043 = vpack.c.bf16 %v3040, %v3039
    %v3044 = vpack.c.bf16 %v3042, %v3041
    %3045 = vrot.lane.b32.xlu0 %v1982, 40
    %v3046 = vpop.permute.xlu0 %3045
    %v3049 = vsel %vm427, %v3043, 0
    %3051 = vmatprep.subr.bf16.mxu0 0
    %3052 = vmatpush1.bf16.msra.mxu0 0
    %3053 = vmatprep.subr.bf16.mxu0 0
    %3054 = vmatpush1.bf16.msra.mxu0 0
    %3055 = vmatprep.subr.bf16.mxu0 0
    %3056 = vmatpush1.bf16.msra.mxu0 0
    %3057 = vmatprep.subr.bf16.mxu0 0
    %3058 = vmatpush1.bf16.msra.mxu0 0
    %3059 = vmatprep.subr.bf16.mxu0 0
    %3060 = vmatpush1.bf16.msra.mxu0 0
    %3061 = vmatprep.subr.bf16.mxu0 0
    %3062 = vmatpush1.bf16.msra.mxu0 0
    %3063 = vmatprep.subr.bf16.mxu0 0
    %3064 = vmatpush1.bf16.msra.mxu0 0
    %3065 = vmatprep.subr.bf16.mxu0 0
    %3066 = vmatpush1.bf16.msra.mxu0 %v3046
    %3067 = vmatprep.subr.bf16.mxu0 0
    %3068 = vmatpush2.bf16.msra.mxu0 0
    %3069 = vmatprep.subr.bf16.mxu0 0
    %3070 = vmatpush2.bf16.msra.mxu0 0
    %3071 = vmatprep.subr.bf16.mxu0 0
    %3072 = vmatpush2.bf16.msra.mxu0 0
    %3073 = vmatprep.subr.bf16.mxu0 0
    %3074 = vmatpush2.bf16.msra.mxu0 0
    %3075 = vmatprep.subr.bf16.mxu0 0
    %3076 = vmatpush2.bf16.msra.mxu0 0
    %3077 = vmatprep.subr.bf16.mxu0 0
    %3078 = vmatpush2.bf16.msra.mxu0 0
    %3079 = vmatprep.subr.bf16.mxu0 0
    %3080 = vmatpush2.bf16.msra.mxu0 0
    %3081 = vmatprep.subr.bf16.mxu0 0
    %3082 = vmatpush2.bf16.msra.mxu0 0
    %3083 = vmatprep.mubr.bf16.mxu0 0
    %3084 = vmatmul.mubr.bf16.gmra.mxu0 %v3049
    %v3085 = vpop.f32.mrf.mxu0
    %v3086 = vadd.f32 0.0, %v3085
    %v3087 = vpop.f32.mrf.mxu0
    %v3088 = vpop.f32.mrf.mxu0
    %v3089 = vadd.f32 0.0, %v3088
    %v3090 = vpop.f32.mrf.mxu0
    %3091 = vdwg.mxu0
    %3092 = vrot.lane.b32.xlu0 %v1983, 40
    %v3093 = vpop.permute.xlu0 %3092
    %v3096 = vsel %vm427, %v3044, 0
    %3098 = vmatprep.subr.bf16.mxu0 0
    %3099 = vmatpush1.bf16.msra.mxu0 0
    %3100 = vmatprep.subr.bf16.mxu0 0
    %3101 = vmatpush1.bf16.msra.mxu0 0
    %3102 = vmatprep.subr.bf16.mxu0 0
    %3103 = vmatpush1.bf16.msra.mxu0 0
    %3104 = vmatprep.subr.bf16.mxu0 0
    %3105 = vmatpush1.bf16.msra.mxu0 0
    %3106 = vmatprep.subr.bf16.mxu0 0
    %3107 = vmatpush1.bf16.msra.mxu0 0
    %3108 = vmatprep.subr.bf16.mxu0 0
    %3109 = vmatpush1.bf16.msra.mxu0 0
    %3110 = vmatprep.subr.bf16.mxu0 0
    %3111 = vmatpush1.bf16.msra.mxu0 0
    %3112 = vmatprep.subr.bf16.mxu0 0
    %3113 = vmatpush1.bf16.msra.mxu0 %v3093
    %3114 = vmatprep.subr.bf16.mxu0 0
    %3115 = vmatpush2.bf16.msra.mxu0 0
    %3116 = vmatprep.subr.bf16.mxu0 0
    %3117 = vmatpush2.bf16.msra.mxu0 0
    %3118 = vmatprep.subr.bf16.mxu0 0
    %3119 = vmatpush2.bf16.msra.mxu0 0
    %3120 = vmatprep.subr.bf16.mxu0 0
    %3121 = vmatpush2.bf16.msra.mxu0 0
    %3122 = vmatprep.subr.bf16.mxu0 0
    %3123 = vmatpush2.bf16.msra.mxu0 0
    %3124 = vmatprep.subr.bf16.mxu0 0
    %3125 = vmatpush2.bf16.msra.mxu0 0
    %3126 = vmatprep.subr.bf16.mxu0 0
    %3127 = vmatpush2.bf16.msra.mxu0 0
    %3128 = vmatprep.subr.bf16.mxu0 0
    %3129 = vmatpush2.bf16.msra.mxu0 0
    %3130 = vmatprep.mubr.bf16.mxu0 0
    %3131 = vmatmul.mubr.bf16.gmra.mxu0 %v3096
    %v3132 = vpop.f32.mrf.mxu0
    %v3133 = vadd.f32 0.0, %v3132
    %v3134 = vpop.f32.mrf.mxu0
    %v3135 = vpop.f32.mrf.mxu0
    %v3136 = vadd.f32 0.0, %v3135
    %v3137 = vpop.f32.mrf.mxu0
    %3138 = vdwg.mxu0
    %v3139 = vpack.c.bf16 %v3089, %v3086
    %v3140 = vpack.c.bf16 %v3136, %v3133
    %v3141 = vpack.c.bf16 %v1975, %v1975
    %v3143 = vsel %vm329, %v3139, 0
    %v3146 = vsel %vm329, %v3140, 0
    %v3149 = vsel %vm824, %v3141, 0
    %3151 = vmatprep.subr.bf16.mxu0 0
    %3152 = vmatpush1.bf16.msra.mxu0 0
    %3153 = vmatprep.subr.bf16.mxu0 0
    %3154 = vmatpush1.bf16.msra.mxu0 0
    %3155 = vmatprep.subr.bf16.mxu0 0
    %3156 = vmatpush1.bf16.msra.mxu0 0
    %3157 = vmatprep.subr.bf16.mxu0 0
    %3158 = vmatpush1.bf16.msra.mxu0 0
    %3159 = vmatprep.subr.bf16.mxu0 0
    %3160 = vmatpush1.bf16.msra.mxu0 0
    %3161 = vmatprep.subr.bf16.mxu0 0
    %3162 = vmatpush1.bf16.msra.mxu0 0
    %3163 = vmatprep.subr.bf16.mxu0 0
    %3164 = vmatpush1.bf16.msra.mxu0 0
    %3165 = vmatprep.subr.bf16.mxu0 0
    %3166 = vmatpush1.bf16.msra.mxu0 %v3149
    %3167 = vmatprep.subr.bf16.mxu0 0
    %3168 = vmatpush2.bf16.msra.mxu0 0
    %3169 = vmatprep.subr.bf16.mxu0 0
    %3170 = vmatpush2.bf16.msra.mxu0 0
    %3171 = vmatprep.subr.bf16.mxu0 0
    %3172 = vmatpush2.bf16.msra.mxu0 0
    %3173 = vmatprep.subr.bf16.mxu0 0
    %3174 = vmatpush2.bf16.msra.mxu0 0
    %3175 = vmatprep.subr.bf16.mxu0 0
    %3176 = vmatpush2.bf16.msra.mxu0 0
    %3177 = vmatprep.subr.bf16.mxu0 0
    %3178 = vmatpush2.bf16.msra.mxu0 0
    %3179 = vmatprep.subr.bf16.mxu0 0
    %3180 = vmatpush2.bf16.msra.mxu0 0
    %3181 = vmatprep.subr.bf16.mxu0 0
    %3182 = vmatpush2.bf16.msra.mxu0 0
    %3183 = vmatprep.mubr.bf16.mxu0 0
    %3184 = vmatmul.mubr.bf16.gmra.mxu0 %v3143
    %v3185 = vpop.f32.mrf.mxu0
    %v3186 = vadd.f32 0.0, %v3185
    %v3187 = vpop.f32.mrf.mxu0
    %v3188 = vpop.f32.mrf.mxu0
    %v3189 = vadd.f32 0.0, %v3188
    %v3190 = vpop.f32.mrf.mxu0
    %3191 = vmatprep.mubr.bf16.mxu0 0
    %3192 = vmatmul.mubr.bf16.gmra.mxu0 %v3146
    %v3193 = vpop.f32.mrf.mxu0
    %v3194 = vadd.f32 0.0, %v3193
    %v3195 = vpop.f32.mrf.mxu0
    %v3196 = vpop.f32.mrf.mxu0
    %v3197 = vadd.f32 0.0, %v3196
    %v3198 = vpop.f32.mrf.mxu0
    %3199 = vdwg.mxu0
    %v3200 = vadd.f32 %v2893, %v3186
    %v3201 = vadd.f32 %v2894, %v3189
    %v3202 = vadd.f32 %v2895, %v3194
    %v3203 = vadd.f32 %v2896, %v3197
    %s3204 = scalar_lea.vmem %s9, 1
    %v3205 = vld [vmem:[%s3204] sm:$0x1]
    %v3207 = vlaneseq
    %v3208 = vshrl.u32 %v3207, 7
    %v3209 = vsub.s32 0, %v3208
    %v3210 = vrot.slane %v3205, %v3209
    %v3212 = vadd.f32 %v3200, %v3210
    %v3213 = vadd.f32 %v3201, %v3210
    %v3214 = vadd.f32 %v3202, %v3210
    %v3215 = vadd.f32 %v3203, %v3210
    %v3216 = vadd.f32 %v1895, %v3212
    %v3217 = vadd.f32 %v1896, %v3213
    %v3218 = vadd.f32 %v1897, %v3214
    %v3219 = vadd.f32 %v1898, %v3215
    %s3220 = scalar_lea.vmem %s10, 1
    %v3221 = vld [vmem:[%s3220] sm:$0x1]
    %s3222 = scalar_lea.vmem %s11, 1
    %v3223 = vld [vmem:[%s3222] sm:$0x1]
    %v3224 = vsel %vm170, %v3216, 0.0
    %3225 = vadd.xlane.f32.xlu0 %v3224
    %v3226 = vpop.xlane.xlu0 %3225
    %v3227 = vsel %vm170, %v3217, 0.0
    %3228 = vadd.xlane.f32.xlu0 %v3227
    %v3229 = vpop.xlane.xlu0 %3228
    %v3230 = vsel %vm170, %v3218, 0.0
    %3231 = vadd.xlane.f32.xlu0 %v3230
    %v3232 = vpop.xlane.xlu0 %3231
    %v3233 = vsel %vm170, %v3219, 0.0
    %3234 = vadd.xlane.f32.xlu0 %v3233
    %v3235 = vpop.xlane.xlu0 %3234
    %v3236 = vmul.f32 %v3226, %v183
    %v3237 = vmul.f32 %v3229, %v183
    %v3238 = vmul.f32 %v3232, %v183
    %v3239 = vmul.f32 %v3235, %v183
    %v3240 = vsub.f32 %v3216, %v3236
    %v3241 = vsub.f32 %v3217, %v3237
    %v3242 = vsub.f32 %v3218, %v3238
    %v3243 = vsub.f32 %v3219, %v3239
    %v3244 = vmul.f32 %v3240, %v3240
    %v3245 = vmul.f32 %v3241, %v3241
    %v3246 = vmul.f32 %v3242, %v3242
    %v3247 = vmul.f32 %v3243, %v3243
    %v3248 = vsel %vm170, %v3244, 0.0
    %3249 = vadd.xlane.f32.xlu0 %v3248
    %v3250 = vpop.xlane.xlu0 %3249
    %v3251 = vsel %vm170, %v3245, 0.0
    %3252 = vadd.xlane.f32.xlu0 %v3251
    %v3253 = vpop.xlane.xlu0 %3252
    %v3254 = vsel %vm170, %v3246, 0.0
    %3255 = vadd.xlane.f32.xlu0 %v3254
    %v3256 = vpop.xlane.xlu0 %3255
    %v3257 = vsel %vm170, %v3247, 0.0
    %3258 = vadd.xlane.f32.xlu0 %v3257
    %v3259 = vpop.xlane.xlu0 %3258
    %v3260 = vmul.f32 %v3250, %v183
    %v3261 = vmul.f32 %v3253, %v183
    %v3262 = vmul.f32 %v3256, %v183
    %v3263 = vmul.f32 %v3259, %v183
    %v3264 = vadd.f32 %v3260, 1e-05
    %v3265 = vadd.f32 %v3261, 1e-05
    %v3266 = vadd.f32 %v3262, 1e-05
    %v3267 = vadd.f32 %v3263, 1e-05
    %v3268 = vrsqrt.pop %v3264
    %v3269 = vrsqrt.pop %v3265
    %v3270 = vrsqrt.pop %v3266
    %v3271 = vrsqrt.pop %v3267
    %v3272 = vmul.f32 %v3240, %v3268
    %v3273 = vmul.f32 %v3241, %v3269
    %v3274 = vmul.f32 %v3242, %v3270
    %v3275 = vmul.f32 %v3243, %v3271
    %v3277 = vlaneseq
    %v3278 = vshrl.u32 %v3277, 7
    %v3279 = vsub.s32 0, %v3278
    %v3280 = vrot.slane %v3221, %v3279
    %v3282 = vmul.f32 %v3272, %v3280
    %v3283 = vmul.f32 %v3273, %v3280
    %v3284 = vmul.f32 %v3274, %v3280
    %v3285 = vmul.f32 %v3275, %v3280
    %v3287 = vlaneseq
    %v3288 = vshrl.u32 %v3287, 7
    %v3289 = vsub.s32 0, %v3288
    %v3290 = vrot.slane %v3223, %v3289
    %v3292 = vadd.f32 %v3282, %v3290
    %v3293 = vadd.f32 %v3283, %v3290
    %v3294 = vadd.f32 %v3284, %v3290
    %v3295 = vadd.f32 %v3285, %v3290
    %s3296 = scalar_lea.vmem %s12, 32
    %v3297 = vld [vmem:[%s3296] sm:$0xff]
    %v3298 = vld [vmem:[%s3296 + $0x8] sm:$0xff]
    %v3299 = vld [vmem:[%s3296 + $0x10] sm:$0xff]
    %v3300 = vld [vmem:[%s3296 + $0x18] sm:$0xff]
    %v3301 = vpack.c.bf16 %v3293, %v3292
    %v3302 = vpack.c.bf16 %v3295, %v3294
    %v3303 = vpack.c.bf16 %v3298, %v3297
    %v3304 = vpack.c.bf16 %v3300, %v3299
    %s3305 = scalar_lea.vmem %s13, 1
    %v3306 = vld [vmem:[%s3305] sm:$0x1]
    %v3308 = vlaneseq
    %v3309 = vshrl.u32 %v3308, 7
    %v3310 = vsub.s32 0, %v3309
    %v3311 = vrot.slane %v3306, %v3310
    %v3314 = vsel %vm170, %v3301, 0
    %v3317 = vsel %vm170, %v3302, 0
    %3319 = vmatprep.subr.bf16.mxu0 0
    %3320 = vmatpush1.bf16.msra.mxu0 0
    %3321 = vmatprep.subr.bf16.mxu0 0
    %3322 = vmatpush1.bf16.msra.mxu0 0
    %3323 = vmatprep.subr.bf16.mxu0 0
    %3324 = vmatpush1.bf16.msra.mxu0 0
    %3325 = vmatprep.subr.bf16.mxu0 0
    %3326 = vmatpush1.bf16.msra.mxu0 0
    %3327 = vmatprep.subr.bf16.mxu0 0
    %3328 = vmatpush1.bf16.msra.mxu0 0
    %3329 = vmatprep.subr.bf16.mxu0 0
    %3330 = vmatpush1.bf16.msra.mxu0 0
    %3331 = vmatprep.subr.bf16.mxu0 0
    %3332 = vmatpush1.bf16.msra.mxu0 %v3304
    %3333 = vmatprep.subr.bf16.mxu0 0
    %3334 = vmatpush1.bf16.msra.mxu0 %v3303
    %3335 = vmatprep.subr.bf16.mxu0 0
    %3336 = vmatpush2.bf16.msra.mxu0 0
    %3337 = vmatprep.subr.bf16.mxu0 0
    %3338 = vmatpush2.bf16.msra.mxu0 0
    %3339 = vmatprep.subr.bf16.mxu0 0
    %3340 = vmatpush2.bf16.msra.mxu0 0
    %3341 = vmatprep.subr.bf16.mxu0 0
    %3342 = vmatpush2.bf16.msra.mxu0 0
    %3343 = vmatprep.subr.bf16.mxu0 0
    %3344 = vmatpush2.bf16.msra.mxu0 0
    %3345 = vmatprep.subr.bf16.mxu0 0
    %3346 = vmatpush2.bf16.msra.mxu0 0
    %3347 = vmatprep.subr.bf16.mxu0 0
    %3348 = vmatpush2.bf16.msra.mxu0 0
    %3349 = vmatprep.subr.bf16.mxu0 0
    %3350 = vmatpush2.bf16.msra.mxu0 0
    %3351 = vmatprep.mubr.bf16.mxu0 0
    %3352 = vmatmul.mubr.bf16.gmra.mxu0 %v3314
    %v3353 = vpop.f32.mrf.mxu0
    %v3354 = vadd.f32 %v3311, %v3353
    %v3355 = vpop.f32.mrf.mxu0
    %v3356 = vpop.f32.mrf.mxu0
    %v3357 = vadd.f32 %v3311, %v3356
    %v3358 = vpop.f32.mrf.mxu0
    %3359 = vmatprep.mubr.bf16.mxu0 0
    %3360 = vmatmul.mubr.bf16.gmra.mxu0 %v3317
    %v3361 = vpop.f32.mrf.mxu0
    %v3362 = vadd.f32 %v3311, %v3361
    %v3363 = vpop.f32.mrf.mxu0
    %v3364 = vpop.f32.mrf.mxu0
    %v3365 = vadd.f32 %v3311, %v3364
    %v3366 = vpop.f32.mrf.mxu0
    %3367 = vdwg.mxu0
    %v3368 = vmul.f32 %v3354, 0.5
    %v3369 = vmul.f32 %v3357, 0.5
    %v3370 = vmul.f32 %v3362, 0.5
    %v3371 = vmul.f32 %v3365, 0.5
    %v3372 = vmul.f32 %v3354, 0.044715
    %v3373 = vmul.f32 %v3357, 0.044715
    %v3374 = vmul.f32 %v3362, 0.044715
    %v3375 = vmul.f32 %v3365, 0.044715
    %v3376 = vmul.f32 %v3372, %v3354
    %v3377 = vmul.f32 %v3373, %v3357
    %v3378 = vmul.f32 %v3374, %v3362
    %v3379 = vmul.f32 %v3375, %v3365
    %v3380 = vmul.f32 %v3376, %v3354
    %v3381 = vmul.f32 %v3377, %v3357
    %v3382 = vmul.f32 %v3378, %v3362
    %v3383 = vmul.f32 %v3379, %v3365
    %v3384 = vadd.f32 %v3354, %v3380
    %v3385 = vadd.f32 %v3357, %v3381
    %v3386 = vadd.f32 %v3362, %v3382
    %v3387 = vadd.f32 %v3365, %v3383
    %v3388 = vmul.f32 %v3384, 0.7978846
    %v3389 = vmul.f32 %v3385, 0.7978846
    %v3390 = vmul.f32 %v3386, 0.7978846
    %v3391 = vmul.f32 %v3387, 0.7978846
    %v3392 = vtanh.pop %v3388
    %v3393 = vtanh.pop %v3389
    %v3394 = vtanh.pop %v3390
    %v3395 = vtanh.pop %v3391
    %v3396 = vadd.f32 %v3392, 1.0
    %v3397 = vadd.f32 %v3393, 1.0
    %v3398 = vadd.f32 %v3394, 1.0
    %v3399 = vadd.f32 %v3395, 1.0
    %v3400 = vmul.f32 %v3368, %v3396
    %v3401 = vmul.f32 %v3369, %v3397
    %v3402 = vmul.f32 %v3370, %v3398
    %v3403 = vmul.f32 %v3371, %v3399
    %s3404 = scalar_lea.vmem %s14, 64
    %v3405 = vld [vmem:[%s3404] sm:$0xff]
    %v3406 = vld [vmem:[%s3404 + $0x8] sm:$0xff]
    %v3407 = vld [vmem:[%s3404 + $0x10] sm:$0xff]
    %v3408 = vld [vmem:[%s3404 + $0x18] sm:$0xff]
    %v3409 = vld [vmem:[%s3404 + $0x20] sm:$0xff]
    %v3410 = vld [vmem:[%s3404 + $0x28] sm:$0xff]
    %v3411 = vld [vmem:[%s3404 + $0x30] sm:$0xff]
    %v3412 = vld [vmem:[%s3404 + $0x38] sm:$0xff]
    %v3413 = vpack.c.bf16 %v3401, %v3400
    %v3414 = vpack.c.bf16 %v3403, %v3402
    %v3415 = vpack.c.bf16 %v3406, %v3405
    %v3416 = vpack.c.bf16 %v3408, %v3407
    %v3417 = vpack.c.bf16 %v3410, %v3409
    %v3418 = vpack.c.bf16 %v3412, %v3411
    %s3419 = scalar_lea.vmem %s15, 1
    %v3420 = vld [vmem:[%s3419] sm:$0x1]
    %v3422 = vlaneseq
    %v3423 = vshrl.u32 %v3422, 7
    %v3424 = vsub.s32 0, %v3423
    %v3425 = vrot.slane %v3420, %v3424
    %v3428 = vsel %vm1765, %v3413, 0
    %v3431 = vsel %vm1765, %v3414, 0
    %3433 = vmatprep.subr.bf16.mxu0 0
    %3434 = vmatpush1.bf16.msra.mxu0 0
    %3435 = vmatprep.subr.bf16.mxu0 0
    %3436 = vmatpush1.bf16.msra.mxu0 0
    %3437 = vmatprep.subr.bf16.mxu0 0
    %3438 = vmatpush1.bf16.msra.mxu0 0
    %3439 = vmatprep.subr.bf16.mxu0 0
    %3440 = vmatpush1.bf16.msra.mxu0 0
    %3441 = vmatprep.subr.bf16.mxu0 0
    %3442 = vmatpush1.bf16.msra.mxu0 %v3418
    %3443 = vmatprep.subr.bf16.mxu0 0
    %3444 = vmatpush1.bf16.msra.mxu0 %v3417
    %3445 = vmatprep.subr.bf16.mxu0 0
    %3446 = vmatpush1.bf16.msra.mxu0 %v3416
    %3447 = vmatprep.subr.bf16.mxu0 0
    %3448 = vmatpush1.bf16.msra.mxu0 %v3415
    %3449 = vmatprep.subr.bf16.mxu0 0
    %3450 = vmatpush2.bf16.msra.mxu0 0
    %3451 = vmatprep.subr.bf16.mxu0 0
    %3452 = vmatpush2.bf16.msra.mxu0 0
    %3453 = vmatprep.subr.bf16.mxu0 0
    %3454 = vmatpush2.bf16.msra.mxu0 0
    %3455 = vmatprep.subr.bf16.mxu0 0
    %3456 = vmatpush2.bf16.msra.mxu0 0
    %3457 = vmatprep.subr.bf16.mxu0 0
    %3458 = vmatpush2.bf16.msra.mxu0 0
    %3459 = vmatprep.subr.bf16.mxu0 0
    %3460 = vmatpush2.bf16.msra.mxu0 0
    %3461 = vmatprep.subr.bf16.mxu0 0
    %3462 = vmatpush2.bf16.msra.mxu0 0
    %3463 = vmatprep.subr.bf16.mxu0 0
    %3464 = vmatpush2.bf16.msra.mxu0 0
    %3465 = vmatprep.mubr.bf16.mxu0 0
    %3466 = vmatmul.mubr.bf16.gmra.mxu0 %v3428
    %v3467 = vpop.f32.mrf.mxu0
    %v3468 = vadd.f32 %v3425, %v3467
    %v3469 = vpop.f32.mrf.mxu0
    %v3470 = vpop.f32.mrf.mxu0
    %v3471 = vpop.f32.mrf.mxu0
    %3472 = vmatprep.mubr.bf16.mxu0 0
    %3473 = vmatmul.mubr.bf16.gmra.mxu0 %v3431
    %v3474 = vpop.f32.mrf.mxu0
    %v3475 = vadd.f32 %v3425, %v3474
    %v3476 = vpop.f32.mrf.mxu0
    %v3477 = vpop.f32.mrf.mxu0
    %v3478 = vpop.f32.mrf.mxu0
    %3479 = vdwg.mxu0
    %v3480 = vadd.f32 %v3292, %v3468
    %v3481 = vadd.f32 %v3294, %v3475
    %s3482 = scalar_lea.vmem %s16, 1
    %v3483 = vld [vmem:[%s3482] sm:$0x1]
    %s3484 = scalar_lea.vmem %s17, 1
    %v3485 = vld [vmem:[%s3484] sm:$0x1]
    %v3486 = vsel %vm170, %v3480, 0.0
    %3487 = vadd.xlane.f32.xlu0 %v3486
    %v3488 = vpop.xlane.xlu0 %3487
    %v3489 = vsel %vm170, %v3481, 0.0
    %3490 = vadd.xlane.f32.xlu0 %v3489
    %v3491 = vpop.xlane.xlu0 %3490
    %v3492 = vmul.f32 %v3488, %v183
    %v3493 = vmul.f32 %v3491, %v183
    %v3494 = vsub.f32 %v3480, %v3492
    %v3495 = vsub.f32 %v3481, %v3493
    %v3496 = vmul.f32 %v3494, %v3494
    %v3497 = vmul.f32 %v3495, %v3495
    %v3498 = vsel %vm170, %v3496, 0.0
    %3499 = vadd.xlane.f32.xlu0 %v3498
    %v3500 = vpop.xlane.xlu0 %3499
    %v3501 = vsel %vm170, %v3497, 0.0
    %3502 = vadd.xlane.f32.xlu0 %v3501
    %v3503 = vpop.xlane.xlu0 %3502
    %v3504 = vmul.f32 %v3500, %v183
    %v3505 = vmul.f32 %v3503, %v183
    %v3506 = vadd.f32 %v3504, 1e-05
    %v3507 = vadd.f32 %v3505, 1e-05
    %v3508 = vrsqrt.pop %v3506
    %v3509 = vrsqrt.pop %v3507
    %v3510 = vmul.f32 %v3494, %v3508
    %v3511 = vmul.f32 %v3495, %v3509
    %v3513 = vlaneseq
    %v3514 = vshrl.u32 %v3513, 7
    %v3515 = vsub.s32 0, %v3514
    %v3516 = vrot.slane %v3483, %v3515
    %v3518 = vmul.f32 %v3510, %v3516
    %v3519 = vmul.f32 %v3511, %v3516
    %v3521 = vlaneseq
    %v3522 = vshrl.u32 %v3521, 7
    %v3523 = vsub.s32 0, %v3522
    %v3524 = vrot.slane %v3485, %v3523
    %v3526 = vadd.f32 %v3518, %v3524
    %v3527 = vadd.f32 %v3519, %v3524
    %v3529 = vrot.slane %v3527, 7
    %vm3531 = vcmask 1040384
    %v3532 = vsel %vm3531, %v3526, %v3529
    %v3533 = vld [vmem:[%s18] sm:$0xff]
    %v3534 = vld [vmem:[%s18 + $0x8] sm:$0xff]
    %v3535 = vld [vmem:[%s18 + $0x10] sm:$0xff]
    %v3536 = vld [vmem:[%s18 + $0x18] sm:$0xff]
    %v3537 = vpack.c.bf16 %v3532, %v3532
    %v3538 = vpack.c.bf16 %v3534, %v3533
    %v3539 = vpack.c.bf16 %v3536, %v3535
    %v3540 = vld [vmem:[%s19] sm:$0x1]
    %v3542 = vlaneseq
    %v3543 = vshrl.u32 %v3542, 7
    %v3544 = vsub.s32 0, %v3543
    %v3545 = vrot.slane %v3540, %v3544
    %v3548 = vsel %vm170, %v3537, 0
    %3550 = vmatprep.subr.bf16.mxu0 0
    %3551 = vmatpush1.bf16.msra.mxu0 0
    %3552 = vmatprep.subr.bf16.mxu0 0
    %3553 = vmatpush1.bf16.msra.mxu0 0
    %3554 = vmatprep.subr.bf16.mxu0 0
    %3555 = vmatpush1.bf16.msra.mxu0 0
    %3556 = vmatprep.subr.bf16.mxu0 0
    %3557 = vmatpush1.bf16.msra.mxu0 0
    %3558 = vmatprep.subr.bf16.mxu0 0
    %3559 = vmatpush1.bf16.msra.mxu0 0
    %3560 = vmatprep.subr.bf16.mxu0 0
    %3561 = vmatpush1.bf16.msra.mxu0 0
    %3562 = vmatprep.subr.bf16.mxu0 0
    %3563 = vmatpush1.bf16.msra.mxu0 %v3539
    %3564 = vmatprep.subr.bf16.mxu0 0
    %3565 = vmatpush1.bf16.msra.mxu0 %v3538
    %3566 = vmatprep.subr.bf16.mxu0 0
    %3567 = vmatpush2.bf16.msra.mxu0 0
    %3568 = vmatprep.subr.bf16.mxu0 0
    %3569 = vmatpush2.bf16.msra.mxu0 0
    %3570 = vmatprep.subr.bf16.mxu0 0
    %3571 = vmatpush2.bf16.msra.mxu0 0
    %3572 = vmatprep.subr.bf16.mxu0 0
    %3573 = vmatpush2.bf16.msra.mxu0 0
    %3574 = vmatprep.subr.bf16.mxu0 0
    %3575 = vmatpush2.bf16.msra.mxu0 0
    %3576 = vmatprep.subr.bf16.mxu0 0
    %3577 = vmatpush2.bf16.msra.mxu0 0
    %3578 = vmatprep.subr.bf16.mxu0 0
    %3579 = vmatpush2.bf16.msra.mxu0 0
    %3580 = vmatprep.subr.bf16.mxu0 0
    %3581 = vmatpush2.bf16.msra.mxu0 0
    %3582 = vmatprep.mubr.bf16.mxu0 0
    %3583 = vmatmul.mubr.bf16.gmra.mxu0 %v3548
    %v3584 = vpop.f32.mrf.mxu0
    %v3585 = vadd.f32 %v3545, %v3584
    %v3586 = vpop.f32.mrf.mxu0
    %v3587 = vpop.f32.mrf.mxu0
    %v3588 = vpop.f32.mrf.mxu0
    %3589 = vdwg.mxu0
    %v3590 = vtanh.pop %v3585
    %v3591 = vld [vmem:[%s20] sm:$0xff]
    %v3592 = vld [vmem:[%s20 + $0x8] sm:$0xff]
    %v3593 = vld [vmem:[%s20 + $0x10] sm:$0xff]
    %v3594 = vld [vmem:[%s20 + $0x18] sm:$0xff]
    %v3595 = vpack.c.bf16 %v3590, %v3590
    %v3596 = vpack.c.bf16 %v3592, %v3591
    %v3597 = vpack.c.bf16 %v3594, %v3593
    %v3598 = vld [vmem:[%s21] sm:$0x1]
    %v3600 = vlaneseq
    %v3601 = vshrl.u32 %v3600, 7
    %v3602 = vsub.s32 0, %v3601
    %v3603 = vrot.slane %v3598, %v3602
    %v3606 = vsel %vm170, %v3595, 0
    %3608 = vmatprep.subr.bf16.mxu0 0
    %3609 = vmatpush1.bf16.msra.mxu0 0
    %3610 = vmatprep.subr.bf16.mxu0 0
    %3611 = vmatpush1.bf16.msra.mxu0 0
    %3612 = vmatprep.subr.bf16.mxu0 0
    %3613 = vmatpush1.bf16.msra.mxu0 0
    %3614 = vmatprep.subr.bf16.mxu0 0
    %3615 = vmatpush1.bf16.msra.mxu0 0
    %3616 = vmatprep.subr.bf16.mxu0 0
    %3617 = vmatpush1.bf16.msra.mxu0 0
    %3618 = vmatprep.subr.bf16.mxu0 0
    %3619 = vmatpush1.bf16.msra.mxu0 0
    %3620 = vmatprep.subr.bf16.mxu0 0
    %3621 = vmatpush1.bf16.msra.mxu0 %v3597
    %3622 = vmatprep.subr.bf16.mxu0 0
    %3623 = vmatpush1.bf16.msra.mxu0 %v3596
    %3624 = vmatprep.subr.bf16.mxu0 0
    %3625 = vmatpush2.bf16.msra.mxu0 0
    %3626 = vmatprep.subr.bf16.mxu0 0
    %3627 = vmatpush2.bf16.msra.mxu0 0
    %3628 = vmatprep.subr.bf16.mxu0 0
    %3629 = vmatpush2.bf16.msra.mxu0 0
    %3630 = vmatprep.subr.bf16.mxu0 0
    %3631 = vmatpush2.bf16.msra.mxu0 0
    %3632 = vmatprep.subr.bf16.mxu0 0
    %3633 = vmatpush2.bf16.msra.mxu0 0
    %3634 = vmatprep.subr.bf16.mxu0 0
    %3635 = vmatpush2.bf16.msra.mxu0 0
    %3636 = vmatprep.subr.bf16.mxu0 0
    %3637 = vmatpush2.bf16.msra.mxu0 0
    %3638 = vmatprep.subr.bf16.mxu0 0
    %3639 = vmatpush2.bf16.msra.mxu0 0
    %3640 = vmatprep.mubr.bf16.mxu0 0
    %3641 = vmatmul.mubr.bf16.gmra.mxu0 %v3606
    %v3642 = vpop.f32.mrf.mxu0
    %v3643 = vadd.f32 %v3603, %v3642
    %v3644 = vpop.f32.mrf.mxu0
    %v3645 = vpop.f32.mrf.mxu0
    %v3646 = vpop.f32.mrf.mxu0
    %3647 = vdwg.mxu0
    %vm3648 = vcmask 33792
    %3649 = vst.msk [vmem:[#allocation2] sm:$0x3] %vm3648, %v3643
    // Predicated region
    $region90: #{longformer_articles_labeling_forward.1} parent=1 // pred_check
      _
    $region91: #{longformer_articles_labeling_forward.1} parent=1 // pred_check_branch
      %3651 = sbr.rel (0) target = $region93
    $region92: #{longformer_articles_labeling_forward.1} parent=1 // pred_region
      %s3653 = ssub.s32 32, 32
      %3654 = vsyncadd [#allocation3], %s3653
      %s3656 = sshll.u32 [#allocation2], 4
      %s3657 = int_to_ptr.vmem [resolvable:$true] %s3656
      %3659 = dma.vmem_to_hbm [thread:$0]  %s3657, 32, %s22, [#allocation3]
    $region93: #{longformer_articles_labeling_forward.1} parent=1 // pred_fallthru
      _
    // Predicated region
    $region94: #{longformer_articles_labeling_forward.1} parent=1 // pred_check
      _
    $region95: #{longformer_articles_labeling_forward.1} parent=1 // pred_check_branch
      %3661 = sbr.rel (0) target = $region97
    $region96: #{longformer_articles_labeling_forward.1} parent=1 // pred_region
      %3662 = dma.done [#allocation3], 32
    $region97: #{longformer_articles_labeling_forward.1} parent=1 // pred_fallthru
      _
    %3663 = vsyncpa [#allocation3], 1

</llo_original>
